<compile_context>
chip_gen: v6e
topology: v6e:2x2x1
jax: 0.10.0
libtpu: 0.0.40
codegen_flags: <defaults>
</compile_context>

<pallas_src>
import functools

import jax
import jax.numpy as jnp
from jax import lax
from jax.experimental import pallas as pl
from jax.experimental.pallas import tpu as pltpu


MATMUL_DTYPE = jnp.bfloat16          # MXU-native on v5e/v6e/v7x; f32 accumulation everywhere


def _vmem_capacity_bytes():
    try:
        return int(pltpu.get_tpu_info().vmem_capacity_bytes)
    except Exception:
        return 64 * 1024 * 1024      # conservative (v7x-sized) fallback


def _gate_compute_dtype():
    """bf16 gate math on chips with bf16 VPU/EUP (v6e/v7x); f32 on v5e and older."""
    try:
        kind = jax.devices()[0].device_kind.lower()
    except Exception:
        return jnp.float32
    if any(v in kind for v in ("v2", "v3", "v4", "v5")):
        return jnp.float32           # no bf16 VPU/EUP -> casts would only add work
    return jnp.bfloat16


_VMEM_CAP = _vmem_capacity_bytes()
# Per-generation budget: large chunks on 128-MiB parts (v5e/v6e), tighter on 64-MiB v7x.
VMEM_LIMIT_BYTES = min(int(_VMEM_CAP * 3 // 4), 96 * 1024 * 1024)
DEFAULT_TIME_CHUNK = 64 if _VMEM_CAP >= 96 * 1024 * 1024 else 32
GATE_DTYPE = _gate_compute_dtype()
UNROLL = 8                           # partial unroll of the per-step loop


def _pick_time_chunk(T, target):
    return max(1, min(int(target), int(T)))


# ----------------------------------------------------------------------------
# Hoisted input-to-hidden matmul: one big MXU matmul per direction, stored bf16.
# Bias is NOT folded here (added in-kernel in f32 to keep precision).
# ----------------------------------------------------------------------------
def _precompute_gates_tm(x_tbf, w_ih):
    """x (T,B,F) time-major -> x @ W_ih^T, returned as (T,B,4H) bf16."""
    wt = jnp.transpose(w_ih, (1, 0)).astype(MATMUL_DTYPE)              # (F, 4H)
    g = jnp.einsum("tbf,fg->tbg", x_tbf.astype(MATMUL_DTYPE), wt,
                   preferred_element_type=jnp.float32)                 # f32 accumulation
    return g.astype(MATMUL_DTYPE)                                      # stream as bf16


# ----------------------------------------------------------------------------
# Kernel A: bidirectional LSTM layer, full-sequence output (time-major).
# grid = (direction=2 [parallel], time-chunk [arbitrary]); h/c carried in VMEM scratch.
# Backward direction: chunk order + in-chunk step order reversed via index arithmetic
# (no jnp.flip anywhere); its gx is front-padded so padding is processed last.
# ----------------------------------------------------------------------------
def _bilstm_kernel(gx_ref, bias_ref, whh_hbm, out_ref,
                   whh_sc, h_sc, c_sc, dma_sem, *, hidden, tt, unroll, compute_dtype):
    d = pl.program_id(0)                             # direction (parallel axis)

    @pl.when(pl.program_id(1) == 0)                  # first chunk of this direction
    def _():
        h_sc[d] = jnp.zeros(h_sc.shape[1:], h_sc.dtype)
        c_sc[d] = jnp.zeros(c_sc.shape[1:], c_sc.dtype)
        # W_hh copied ONCE per direction into VMEM (not pipeline double-buffered).
        cp = pltpu.make_async_copy(whh_hbm.at[d], whh_sc.at[d], dma_sem)
        cp.start()
        cp.wait()

    whh = whh_sc[d]                                  # (H, 4H) bf16, resident
    bias = bias_ref[0]                               # (1, 4H) f32

    def step(s, carry):
        h, c = carry                                 # h: compute_dtype, c: f32
        s_eff = s + d * (tt - 1 - 2 * s)             # fwd: s ; bwd: tt-1-s
        gates = (jnp.dot(h.astype(MATMUL_DTYPE), whh,
                         preferred_element_type=jnp.float32)
                 + gx_ref[0, s_eff].astype(jnp.float32) + bias)        # (B, 4H) f32
        g = gates.astype(compute_dtype)
        # PyTorch gate order: input, forget, cell(g), output.
        i_g = jax.nn.sigmoid(g[:, 0 * hidden:1 * hidden])
        f_g = jax.nn.sigmoid(g[:, 1 * hidden:2 * hidden])
        g_g = jnp.tanh(g[:, 2 * hidden:3 * hidden])
        o_g = jax.nn.sigmoid(g[:, 3 * hidden:4 * hidden])
        c_new = f_g.astype(jnp.float32) * c + (i_g * g_g).astype(jnp.float32)
        h_new = o_g * jnp.tanh(c_new.astype(compute_dtype))
        out_ref[0, s_eff] = h_new.astype(out_ref.dtype)                # bf16 writeback
        return h_new, c_new

    h_f, c_f = lax.fori_loop(0, tt, step, (h_sc[d], c_sc[d]), unroll=unroll)
    h_sc[d] = h_f
    c_sc[d] = c_f


def bilstm_layer_full_tm(x_tbf, params, *, time_chunk=None):
    """Bidirectional single LSTM layer (PyTorch semantics), time-major.
       (T,B,F) -> (T,B,2H) bf16."""
    T, B, _ = x_tbf.shape
    H = params["w_hh_f"].shape[1]
    G = 4 * H

    gx_f = _precompute_gates_tm(x_tbf, params["w_ih_f"])               # (T,B,G) bf16
    gx_b = _precompute_gates_tm(x_tbf, params["w_ih_b"])               # (T,B,G) bf16

    tt = _pick_time_chunk(T, time_chunk or DEFAULT_TIME_CHUNK)
    n_chunks = -(-T // tt)
    Tp = n_chunks * tt
    P = Tp - T

    # Single preallocated bf16 buffer; forward real data at [0, :T] (tail pad),
    # backward real data at [1, P:] (front pad -> the reversed pass hits padding LAST,
    # so padded steps never influence any real-timestep output).
    gx = jnp.zeros((2, Tp, B, G), MATMUL_DTYPE)
    gx = lax.dynamic_update_slice(gx, gx_f[None], (0, 0, 0, 0))
    gx = lax.dynamic_update_slice(gx, gx_b[None], (1, P, 0, 0))

    bias = jnp.stack([params["b_ih_f"] + params["b_hh_f"],
                      params["b_ih_b"] + params["b_hh_b"]],
                     axis=0).astype(jnp.float32).reshape(2, 1, G)       # (2,1,4H) f32

    whh = jnp.stack([jnp.transpose(params["w_hh_f"], (1, 0)),
                     jnp.transpose(params["w_hh_b"], (1, 0))],
                    axis=0).astype(MATMUL_DTYPE)                        # (2,H,4H) bf16

    kernel = functools.partial(_bilstm_kernel, hidden=H, tt=tt,
                               unroll=min(UNROLL, tt), compute_dtype=GATE_DTYPE)
    out = pl.pallas_call(
        kernel,
        out_shape=jax.ShapeDtypeStruct((2, Tp, B, H), MATMUL_DTYPE),    # bf16 output
        grid_spec=pltpu.PrefetchScalarGridSpec(
            num_scalar_prefetch=0,
            grid=(2, n_chunks),                                         # (direction, chunk)
            in_specs=[
                # fwd: chunk c ; bwd: chunk n_chunks-1-c  (reversal folded into index_map)
                pl.BlockSpec((1, tt, B, G),
                             lambda d, c: (d, c + d * (n_chunks - 1 - 2 * c), 0, 0)),
                pl.BlockSpec((1, 1, G), lambda d, c: (d, 0, 0)),        # folded bias
                pl.BlockSpec(memory_space=pl.ANY),                      # W_hh stays in HBM
            ],
            out_specs=pl.BlockSpec((1, tt, B, H),
                                   lambda d, c: (d, c + d * (n_chunks - 1 - 2 * c), 0, 0)),
            scratch_shapes=[pltpu.VMEM((2, H, G), MATMUL_DTYPE),        # W_hh, single copy
                            pltpu.VMEM((2, B, H), GATE_DTYPE),          # per-direction h
                            pltpu.VMEM((2, B, H), jnp.float32),         # per-direction c
                            pltpu.SemaphoreType.DMA(())],
        ),
        compiler_params=pltpu.CompilerParams(
            # direction axis is embarrassingly parallel (2 TCs on v7x; no-op on v5e/v6e);
            # if xprof shows both directions on one v7x core, switch to pltpu.CORE_PARALLEL.
            dimension_semantics=("parallel", "arbitrary"),
            vmem_limit_bytes=VMEM_LIMIT_BYTES),
    )(gx, bias, whh)

    fwd = out[0, :T]          # (T,B,H) bf16, already in original time order
    bwd = out[1, P:]          # (T,B,H) bf16, already in original time order (no flip)
    return jnp.concatenate([fwd, bwd], axis=-1)                         # (T,B,2H) bf16


# ----------------------------------------------------------------------------
# Kernel B: single reversed LSTM direction, returns ONLY the hidden state after the
# final processed step (== backward output at original t=0). No (T,B,H) HBM writeback,
# no per-step output store; padded tail steps masked with register selects only.
# ----------------------------------------------------------------------------
def _lstm_rev_last_h_kernel(gx_ref, bias_ref, whh_hbm, out_ref,
                            whh_sc, h_sc, c_sc, dma_sem,
                            *, hidden, tt, t_real, n_chunks, unroll, compute_dtype):
    c_idx = pl.program_id(0)
    padded = (n_chunks * tt) != t_real               # static Python bool

    @pl.when(c_idx == 0)
    def _():
        h_sc[...] = jnp.zeros_like(h_sc)
        c_sc[...] = jnp.zeros_like(c_sc)
        cp = pltpu.make_async_copy(whh_hbm, whh_sc, dma_sem)
        cp.start()
        cp.wait()

    whh = whh_sc[...]                                # (H, 4H) bf16
    bias = bias_ref[...]                             # (1, 4H) f32
    base = (n_chunks - 1 - c_idx) * tt               # start pos of the chunk being processed

    def step(s, carry):
        h, c = carry
        s_eff = tt - 1 - s                           # reverse time order inside the chunk
        gates = (jnp.dot(h.astype(MATMUL_DTYPE), whh,
                         preferred_element_type=jnp.float32)
                 + gx_ref[s_eff].astype(jnp.float32) + bias)
        g = gates.astype(compute_dtype)
        i_g = jax.nn.sigmoid(g[:, 0 * hidden:1 * hidden])
        f_g = jax.nn.sigmoid(g[:, 1 * hidden:2 * hidden])
        g_g = jnp.tanh(g[:, 2 * hidden:3 * hidden])
        o_g = jax.nn.sigmoid(g[:, 3 * hidden:4 * hidden])
        c_new = f_g.astype(jnp.float32) * c + (i_g * g_g).astype(jnp.float32)
        h_new = o_g * jnp.tanh(c_new.astype(compute_dtype))
        if padded:                                   # only emitted when T % tt != 0
            valid = (base + s_eff) < t_real
            h_new = jnp.where(valid, h_new, h)
            c_new = jnp.where(valid, c_new, c)
        return h_new, c_new

    h_f, c_f = lax.fori_loop(0, tt, step, (h_sc[...], c_sc[...]), unroll=unroll)
    h_sc[...] = h_f
    c_sc[...] = c_f
    out_ref[...] = h_f.astype(out_ref.dtype)         # same block every chunk; last write wins


def lstm_reverse_last_h(x_tbf, w_ih, w_hh, b_ih, b_hh, *, time_chunk=None):
    """Backward-direction LSTM over time-major x (T,B,F); returns its final hidden (B,H) f32
       (which equals the backward output at original t=0)."""
    T, B, _ = x_tbf.shape
    H = w_hh.shape[1]
    G = 4 * H

    gx = _precompute_gates_tm(x_tbf, w_ih)                              # (T,B,G) bf16
    tt = _pick_time_chunk(T, time_chunk or DEFAULT_TIME_CHUNK)
    n_chunks = -(-T // tt)
    Tp = n_chunks * tt
    if Tp != T:
        gx = jnp.pad(gx, ((0, Tp - T), (0, 0), (0, 0)))                 # tail pad (masked)

    bias = (b_ih + b_hh).astype(jnp.float32).reshape(1, G)
    whh = jnp.transpose(w_hh, (1, 0)).astype(MATMUL_DTYPE)              # (H,4H)

    kernel = functools.partial(_lstm_rev_last_h_kernel, hidden=H, tt=tt, t_real=T,
                               n_chunks=n_chunks, unroll=min(UNROLL, tt),
                               compute_dtype=GATE_DTYPE)
    return pl.pallas_call(
        kernel,
        out_shape=jax.ShapeDtypeStruct((B, H), jnp.float32),
        grid_spec=pltpu.PrefetchScalarGridSpec(
            num_scalar_prefetch=0,
            grid=(n_chunks,),
            in_specs=[
                pl.BlockSpec((tt, B, G), lambda c: (n_chunks - 1 - c, 0, 0)),  # reversed
                pl.BlockSpec((1, G), lambda c: (0, 0)),
                pl.BlockSpec(memory_space=pl.ANY),                      # W_hh stays in HBM
            ],
            out_specs=pl.BlockSpec((B, H), lambda c: (0, 0)),
            scratch_shapes=[pltpu.VMEM((H, G), MATMUL_DTYPE),
                            pltpu.VMEM((B, H), GATE_DTYPE),
                            pltpu.VMEM((B, H), jnp.float32),
                            pltpu.SemaphoreType.DMA(())],
        ),
        compiler_params=pltpu.CompilerParams(
            dimension_semantics=("arbitrary",),
            vmem_limit_bytes=VMEM_LIMIT_BYTES),
    )(gx, bias, whh)


# ----------------------------------------------------------------------------
# Layer-1 forward direction, t=0 only: one LSTM cell step from zero state
# (h0 = c0 = 0, so the W_hh term and forget gate drop out).  Tiny -> plain JAX.
# ----------------------------------------------------------------------------
def lstm_first_step(x0, w_ih, w_hh, b_ih, b_hh):
    H = w_hh.shape[1]
    gates = (jnp.dot(x0.astype(MATMUL_DTYPE),
                     jnp.transpose(w_ih, (1, 0)).astype(MATMUL_DTYPE),
                     preferred_element_type=jnp.float32)
             + (b_ih + b_hh).astype(jnp.float32))                       # (B, 4H)
    i_g = jax.nn.sigmoid(gates[:, 0 * H:1 * H])
    g_g = jnp.tanh(gates[:, 2 * H:3 * H])
    o_g = jax.nn.sigmoid(gates[:, 3 * H:4 * H])
    return o_g * jnp.tanh(i_g * g_g)                                    # (B, H) f32


# ----------------------------------------------------------------------------
# ReLU + final Linear (bias=False).  Class dim padded to a full 128-lane block
# inside the kernel (lane-dense store), sliced back outside.
# ----------------------------------------------------------------------------
_FC_LANES = 128


def _relu_fc_kernel(x_ref, w_ref, o_ref):
    x = jnp.maximum(x_ref[...], 0.0).astype(MATMUL_DTYPE)
    o_ref[...] = jnp.dot(x, w_ref[...], preferred_element_type=jnp.float32)


def relu_fc(x, w_fc):
    """x: (B, 2H) f32, w_fc: (C, 2H) PyTorch layout. Returns (B, C) f32."""
    B, F = x.shape
    C = w_fc.shape[0]
    Cp = max(_FC_LANES, -(-C // _FC_LANES) * _FC_LANES)
    w = jnp.zeros((F, Cp), MATMUL_DTYPE).at[:, :C].set(
        jnp.transpose(w_fc, (1, 0)).astype(MATMUL_DTYPE))
    out = pl.pallas_call(
        _relu_fc_kernel,
        out_shape=jax.ShapeDtypeStruct((B, Cp), jnp.float32),
    )(x.astype(jnp.float32), w)
    return out[:, :C]


# ----------------------------------------------------------------------------
# Deterministic parameter init (PyTorch-like uniform(-1/sqrt(H), 1/sqrt(H)))
# ----------------------------------------------------------------------------
def init_params(key, vocab_size, hidden_size, num_classes):
    H = hidden_size
    k = 1.0 / jnp.sqrt(jnp.float32(H))
    keys = jax.random.split(key, 32)
    ki = iter(keys)

    def u(shape, scale=k):
        return jax.random.uniform(next(ki), shape, jnp.float32, -scale, scale)

    # TODO(synk): pretrained mBERT encoder (checkpoint-dependent) is not reimplemented;
    # its last-4 hidden states are emulated by deterministic token / token-type embeddings.
    bert_stub = {
        "tok_emb": [u((vocab_size, H), 0.1) for _ in range(4)],
        "type_emb": [u((2, H), 0.1) for _ in range(4)],
    }

    def lstm_layer_params(in_size):
        return {
            "w_ih_f": u((4 * H, in_size)), "w_hh_f": u((4 * H, H)),
            "b_ih_f": u((4 * H,)),         "b_hh_f": u((4 * H,)),
            "w_ih_b": u((4 * H, in_size)), "w_hh_b": u((4 * H, H)),
            "b_ih_b": u((4 * H,)),         "b_hh_b": u((4 * H,)),
        }

    return {
        "bert": bert_stub,
        "lstm_l0": lstm_layer_params(4 * H),   # input = hidden_size * 4 (concat of 4 states)
        "lstm_l1": lstm_layer_params(2 * H),   # input = 2H (bidirectional layer-0 output)
        "fc_w": u((num_classes, 2 * H), 1.0 / jnp.sqrt(jnp.float32(2 * H))),
    }


# ----------------------------------------------------------------------------
# Full forward pass (inference semantics: dropout = identity; MaxPool1d unused).
# Everything is kept time-major (T, B, F) to avoid transpose passes.
# ----------------------------------------------------------------------------
@jax.jit
def my_model_forward(params, input_ids, attn_masks, token_type_ids):
    # --- BERT stub (plain JAX gather), produced directly time-major ---
    ids_tm = jnp.transpose(input_ids)                                   # (T, B)
    typ_tm = jnp.transpose(token_type_ids)
    mask_tm = jnp.transpose(attn_masks).astype(jnp.float32)[..., None]  # (T, B, 1)
    hidden_layers = []
    for l in range(4):
        h_l = (params["bert"]["tok_emb"][l][ids_tm]
               + params["bert"]["type_emb"][l][typ_tm]) * mask_tm       # (T, B, H)
        hidden_layers.append(h_l)
    hidden_states_tm = jnp.concatenate(hidden_layers, axis=-1)          # (T, B, 4H)

    # --- LSTM layer 0: bidirectional, full sequence output (Pallas, bf16) ---
    out0_tm = bilstm_layer_full_tm(hidden_states_tm, params["lstm_l0"])  # (T, B, 2H) bf16
    # dropout(0.3) between LSTM layers: identity in eval mode.

    # --- LSTM layer 1: only out[:, 0, :] is consumed downstream ---
    # forward direction @ t=0 depends only on out0[t=0] and zero state;
    # backward direction @ t=0 equals its final hidden state after the reversed pass.
    p1 = params["lstm_l1"]
    h1_f0 = lstm_first_step(out0_tm[0], p1["w_ih_f"], p1["w_hh_f"],
                            p1["b_ih_f"], p1["b_hh_f"])                 # (B, H)
    h1_b0 = lstm_reverse_last_h(out0_tm, p1["w_ih_b"], p1["w_hh_b"],
                                p1["b_ih_b"], p1["b_hh_b"])             # (B, H)
    first = jnp.concatenate([h1_f0, h1_b0], axis=-1)                    # (B, 2H)

    # --- ReLU -> Linear(2H, C, bias=False) ---
    return relu_fc(first, params["fc_w"])                               # (B, C)


if __name__ == "__main__":
    B, T = 2, 8          # batch, sequence length (small test shapes)
    H = 32               # hidden_size (module default 768; small here)
    C = 2                # num_classes
    VOCAB = 100

    key = jax.random.PRNGKey(0)
    kp, kids, kmask, ktype = jax.random.split(key, 4)

    params = init_params(kp, VOCAB, H, C)
    input_ids = jax.random.randint(kids, (B, T), 0, VOCAB, dtype=jnp.int32)
    attn_masks = jnp.ones((B, T), dtype=jnp.int32)
    token_type_ids = jnp.zeros((B, T), dtype=jnp.int32)

    logits = my_model_forward(params, input_ids, attn_masks, token_type_ids)
    jax.block_until_ready(logits)
    assert logits.shape == (B, C) and logits.dtype == jnp.float32
    print("KERNEL_OK")
</pallas_src>

<mosaic_0001>
module attributes {stable_mosaic.version = 11 : i64} {
  func.func @_bilstm_kernel(%arg0: i32, %arg1: i32, %arg2: memref<1x8x2x128xbf16, #tpu.memory_space<vmem>>, %arg3: memref<1x1x128xf32, #tpu.memory_space<vmem>>, %arg4: memref<2x32x128xbf16, #tpu.memory_space<any>>, %arg5: memref<1x8x2x32xbf16, #tpu.memory_space<vmem>>, %arg6: memref<2x32x128xbf16, #tpu.memory_space<vmem>>, %arg7: memref<2x2x32xbf16, #tpu.memory_space<vmem>>, %arg8: memref<2x2x32xf32, #tpu.memory_space<vmem>>, %arg9: memref<!tpu.dma_semaphore, #tpu.memory_space<semaphore_mem>>) attributes {dimension_semantics = [#tpu.dimension_semantics<parallel>, #tpu.dimension_semantics<arbitrary>], iteration_bounds = array<i64: 2, 1>, scalar_prefetch = 0 : i64, scratch_operands = 4 : i64, tpu.core_type = #tpu.core_type<tc>, window_params = [{transform_indices = @transform_0, window_bounds = array<i64: 1, 8, 2, 128>}, {transform_indices = @transform_1, window_bounds = array<i64: 1, 1, 128>}, {}, {transform_indices = @transform_3, window_bounds = array<i64: 1, 8, 2, 32>}]} {
    %c0_i32 = arith.constant 0 : i32
    %0 = arith.cmpi eq, %arg1, %c0_i32 : i32
    %1 = arith.extui %0 : i1 to i32
    %c0_i32_0 = arith.constant 0 : i32
    %2 = arith.cmpi ne, %1, %c0_i32_0 : i32
    scf.if %2 {
      %cst_109 = arith.constant 0.000000e+00 : bf16
      %382 = vector.broadcast %cst_109 : bf16 to vector<2x32xbf16>
      %383 = arith.index_cast %arg0 : i32 to index
      %c0_110 = arith.constant 0 : index
      %c0_111 = arith.constant 0 : index
      %384 = vector.load %arg7[%383, %c0_110, %c0_111] : memref<2x2x32xbf16, #tpu.memory_space<vmem>>, vector<1x2x32xbf16>
      %385 = vector.shape_cast %384 : vector<1x2x32xbf16> to vector<2x32xbf16>
      %386 = vector.shape_cast %382 : vector<2x32xbf16> to vector<1x2x32xbf16>
      tpu.vector_store %arg7[%383, %c0_110, %c0_111], %386 {strides = array<i32>} : memref<2x2x32xbf16, #tpu.memory_space<vmem>>, vector<1x2x32xbf16>,
      %cst_112 = arith.constant 0.000000e+00 : f32
      %387 = vector.broadcast %cst_112 : f32 to vector<2x32xf32>
      %388 = arith.index_cast %arg0 : i32 to index
      %c0_113 = arith.constant 0 : index
      %c0_114 = arith.constant 0 : index
      %389 = vector.load %arg8[%388, %c0_113, %c0_114] : memref<2x2x32xf32, #tpu.memory_space<vmem>>, vector<1x2x32xf32>
      %390 = vector.shape_cast %389 : vector<1x2x32xf32> to vector<2x32xf32>
      %391 = vector.shape_cast %387 : vector<2x32xf32> to vector<1x2x32xf32>
      tpu.vector_store %arg8[%388, %c0_113, %c0_114], %391 {strides = array<i32>} : memref<2x2x32xf32, #tpu.memory_space<vmem>>, vector<1x2x32xf32>,
      %c0_i32_115 = arith.constant 0 : i32
      %c0_i32_116 = arith.constant 0 : i32
      %392 = tpu.memref_slice %arg4[%arg0, %c0_i32_115, %c0_i32_116] : memref<2x32x128xbf16, #tpu.memory_space<any>> -> memref<1x32x128xbf16, #tpu.memory_space<any>>
      %393 = tpu.memref_squeeze %392 : memref<1x32x128xbf16, #tpu.memory_space<any>> -> memref<32x128xbf16, #tpu.memory_space<any>>
      %c0_i32_117 = arith.constant 0 : i32
      %c0_i32_118 = arith.constant 0 : i32
      %394 = tpu.memref_slice %arg6[%arg0, %c0_i32_117, %c0_i32_118] : memref<2x32x128xbf16, #tpu.memory_space<vmem>> -> memref<1x32x128xbf16, #tpu.memory_space<vmem>>
      %395 = tpu.memref_squeeze %394 : memref<1x32x128xbf16, #tpu.memory_space<vmem>> -> memref<32x128xbf16, #tpu.memory_space<vmem>>
      tpu.enqueue_dma source(%393 : memref<32x128xbf16, #tpu.memory_space<any>>) target(%395 : memref<32x128xbf16, #tpu.memory_space<vmem>>) target_semaphore(%arg9 : memref<!tpu.dma_semaphore, #tpu.memory_space<semaphore_mem>>)
      %c0_i32_119 = arith.constant 0 : i32
      %c0_i32_120 = arith.constant 0 : i32
      %396 = tpu.memref_slice %arg4[%arg0, %c0_i32_119, %c0_i32_120] : memref<2x32x128xbf16, #tpu.memory_space<any>> -> memref<1x32x128xbf16, #tpu.memory_space<any>>
      %397 = tpu.memref_squeeze %396 : memref<1x32x128xbf16, #tpu.memory_space<any>> -> memref<32x128xbf16, #tpu.memory_space<any>>
      %c0_i32_121 = arith.constant 0 : i32
      %c0_i32_122 = arith.constant 0 : i32
      %398 = tpu.memref_slice %arg6[%arg0, %c0_i32_121, %c0_i32_122] : memref<2x32x128xbf16, #tpu.memory_space<vmem>> -> memref<1x32x128xbf16, #tpu.memory_space<vmem>>
      %399 = tpu.memref_squeeze %398 : memref<1x32x128xbf16, #tpu.memory_space<vmem>> -> memref<32x128xbf16, #tpu.memory_space<vmem>>
      tpu.wait_dma2 semaphore(%arg9 : memref<!tpu.dma_semaphore, #tpu.memory_space<semaphore_mem>>) src(%397 : memref<32x128xbf16, #tpu.memory_space<any>>) dst(%399 : memref<32x128xbf16, #tpu.memory_space<vmem>>)
    } else {
    }
    %3 = arith.index_cast %arg0 : i32 to index
    %c0 = arith.constant 0 : index
    %c0_1 = arith.constant 0 : index
    %4 = vector.load %arg6[%3, %c0, %c0_1] : memref<2x32x128xbf16, #tpu.memory_space<vmem>>, vector<1x32x128xbf16>
    %5 = vector.shape_cast %4 : vector<1x32x128xbf16> to vector<32x128xbf16>
    %c0_2 = arith.constant 0 : index
    %c0_3 = arith.constant 0 : index
    %c0_4 = arith.constant 0 : index
    %6 = vector.load %arg3[%c0_2, %c0_3, %c0_4] : memref<1x1x128xf32, #tpu.memory_space<vmem>>, vector<1x1x128xf32>
    %7 = vector.shape_cast %6 : vector<1x1x128xf32> to vector<1x128xf32>
    %8 = arith.index_cast %arg0 : i32 to index
    %c0_5 = arith.constant 0 : index
    %c0_6 = arith.constant 0 : index
    %9 = vector.load %arg7[%8, %c0_5, %c0_6] : memref<2x2x32xbf16, #tpu.memory_space<vmem>>, vector<1x2x32xbf16>
    %10 = vector.shape_cast %9 : vector<1x2x32xbf16> to vector<2x32xbf16>
    %11 = arith.index_cast %arg0 : i32 to index
    %c0_7 = arith.constant 0 : index
    %c0_8 = arith.constant 0 : index
    %12 = vector.load %arg8[%11, %c0_7, %c0_8] : memref<2x2x32xf32, #tpu.memory_space<vmem>>, vector<1x2x32xf32>
    %13 = vector.shape_cast %12 : vector<1x2x32xf32> to vector<2x32xf32>
    %c0_i32_9 = arith.constant 0 : i32
    %c2_i32 = arith.constant 2 : i32
    %14 = arith.muli %c2_i32, %c0_i32_9 : i32
    %c7_i32 = arith.constant 7 : i32
    %15 = arith.subi %c7_i32, %14 : i32
    %16 = arith.muli %arg0, %15 : i32
    %17 = arith.addi %c0_i32_9, %16 : i32
    %cst = arith.constant dense<0.000000e+00> : vector<2x128xf32>
    %18 = tpu.matmul %10, %5, %cst {dimension_numbers = #tpu.dot_dimension_numbers<[1], [0], [0], [1], [0, 0, 1, 1], [], []>} : vector<2x32xbf16>, vector<32x128xbf16>, vector<2x128xf32> -> vector<2x128xf32>
    %c0_10 = arith.constant 0 : index
    %19 = arith.index_cast %17 : i32 to index
    %c0_11 = arith.constant 0 : index
    %c0_12 = arith.constant 0 : index
    %20 = vector.load %arg2[%c0_10, %19, %c0_11, %c0_12] : memref<1x8x2x128xbf16, #tpu.memory_space<vmem>>, vector<1x1x2x128xbf16>
    %21 = vector.shape_cast %20 : vector<1x1x2x128xbf16> to vector<2x128xbf16>
    %22 = arith.extf %21 : vector<2x128xbf16> to vector<2x128xf32>
    %23 = arith.addf %18, %22 : vector<2x128xf32>
    %24 = vector.broadcast %7 : vector<1x128xf32> to vector<2x128xf32>
    %25 = arith.addf %23, %24 : vector<2x128xf32>
    %26 = arith.truncf %25 : vector<2x128xf32> to vector<2x128xbf16>
    %27 = vector.extract_strided_slice %26 {offsets = [0, 0], sizes = [2, 32], strides = [1, 1]} : vector<2x128xbf16> to vector<2x32xbf16>
    %28 = arith.negf %27 : vector<2x32xbf16>
    %29 = math.exp %28 : vector<2x32xbf16>
    %cst_13 = arith.constant 1.000000e+00 : bf16
    %30 = vector.broadcast %cst_13 : bf16 to vector<2x32xbf16>
    %31 = arith.addf %30, %29 : vector<2x32xbf16>
    %32 = arith.divf %30, %31 : vector<2x32xbf16>
    %33 = vector.extract_strided_slice %26 {offsets = [0, 32], sizes = [2, 32], strides = [1, 1]} : vector<2x128xbf16> to vector<2x32xbf16>
    %34 = arith.negf %33 : vector<2x32xbf16>
    %35 = math.exp %34 : vector<2x32xbf16>
    %cst_14 = arith.constant 1.000000e+00 : bf16
    %36 = vector.broadcast %cst_14 : bf16 to vector<2x32xbf16>
    %37 = arith.addf %36, %35 : vector<2x32xbf16>
    %38 = arith.divf %36, %37 : vector<2x32xbf16>
    %39 = vector.extract_strided_slice %26 {offsets = [0, 64], sizes = [2, 32], strides = [1, 1]} : vector<2x128xbf16> to vector<2x32xbf16>
    %40 = math.tanh %39 : vector<2x32xbf16>
    %41 = vector.extract_strided_slice %26 {offsets = [0, 96], sizes = [2, 32], strides = [1, 1]} : vector<2x128xbf16> to vector<2x32xbf16>
    %42 = arith.negf %41 : vector<2x32xbf16>
    %43 = math.exp %42 : vector<2x32xbf16>
    %cst_15 = arith.constant 1.000000e+00 : bf16
    %44 = vector.broadcast %cst_15 : bf16 to vector<2x32xbf16>
    %45 = arith.addf %44, %43 : vector<2x32xbf16>
    %46 = arith.divf %44, %45 : vector<2x32xbf16>
    %47 = arith.extf %38 : vector<2x32xbf16> to vector<2x32xf32>
    %48 = arith.mulf %47, %13 : vector<2x32xf32>
    %49 = arith.mulf %32, %40 : vector<2x32xbf16>
    %50 = arith.extf %49 : vector<2x32xbf16> to vector<2x32xf32>
    %51 = arith.addf %48, %50 : vector<2x32xf32>
    %52 = arith.truncf %51 : vector<2x32xf32> to vector<2x32xbf16>
    %53 = math.tanh %52 : vector<2x32xbf16>
    %54 = arith.mulf %46, %53 : vector<2x32xbf16>
    %c0_16 = arith.constant 0 : index
    %55 = arith.index_cast %17 : i32 to index
    %c0_17 = arith.constant 0 : index
    %c0_18 = arith.constant 0 : index
    %56 = vector.load %arg5[%c0_16, %55, %c0_17, %c0_18] : memref<1x8x2x32xbf16, #tpu.memory_space<vmem>>, vector<1x1x2x32xbf16>
    %57 = vector.shape_cast %56 : vector<1x1x2x32xbf16> to vector<2x32xbf16>
    %58 = vector.shape_cast %54 : vector<2x32xbf16> to vector<1x1x2x32xbf16>
    tpu.vector_store %arg5[%c0_16, %55, %c0_17, %c0_18], %58 {strides = array<i32>} : memref<1x8x2x32xbf16, #tpu.memory_space<vmem>>, vector<1x1x2x32xbf16>,
    %c1_i32 = arith.constant 1 : i32
    %c2_i32_19 = arith.constant 2 : i32
    %59 = arith.muli %c2_i32_19, %c1_i32 : i32
    %c7_i32_20 = arith.constant 7 : i32
    %60 = arith.subi %c7_i32_20, %59 : i32
    %61 = arith.muli %arg0, %60 : i32
    %62 = arith.addi %c1_i32, %61 : i32
    %cst_21 = arith.constant dense<0.000000e+00> : vector<2x128xf32>
    %63 = tpu.matmul %54, %5, %cst_21 {dimension_numbers = #tpu.dot_dimension_numbers<[1], [0], [0], [1], [0, 0, 1, 1], [], []>} : vector<2x32xbf16>, vector<32x128xbf16>, vector<2x128xf32> -> vector<2x128xf32>
    %c0_22 = arith.constant 0 : index
    %64 = arith.index_cast %62 : i32 to index
    %c0_23 = arith.constant 0 : index
    %c0_24 = arith.constant 0 : index
    %65 = vector.load %arg2[%c0_22, %64, %c0_23, %c0_24] : memref<1x8x2x128xbf16, #tpu.memory_space<vmem>>, vector<1x1x2x128xbf16>
    %66 = vector.shape_cast %65 : vector<1x1x2x128xbf16> to vector<2x128xbf16>
    %67 = arith.extf %66 : vector<2x128xbf16> to vector<2x128xf32>
    %68 = arith.addf %63, %67 : vector<2x128xf32>
    %69 = vector.broadcast %7 : vector<1x128xf32> to vector<2x128xf32>
    %70 = arith.addf %68, %69 : vector<2x128xf32>
    %71 = arith.truncf %70 : vector<2x128xf32> to vector<2x128xbf16>
    %72 = vector.extract_strided_slice %71 {offsets = [0, 0], sizes = [2, 32], strides = [1, 1]} : vector<2x128xbf16> to vector<2x32xbf16>
    %73 = arith.negf %72 : vector<2x32xbf16>
    %74 = math.exp %73 : vector<2x32xbf16>
    %cst_25 = arith.constant 1.000000e+00 : bf16
    %75 = vector.broadcast %cst_25 : bf16 to vector<2x32xbf16>
    %76 = arith.addf %75, %74 : vector<2x32xbf16>
    %77 = arith.divf %75, %76 : vector<2x32xbf16>
    %78 = vector.extract_strided_slice %71 {offsets = [0, 32], sizes = [2, 32], strides = [1, 1]} : vector<2x128xbf16> to vector<2x32xbf16>
    %79 = arith.negf %78 : vector<2x32xbf16>
    %80 = math.exp %79 : vector<2x32xbf16>
    %cst_26 = arith.constant 1.000000e+00 : bf16
    %81 = vector.broadcast %cst_26 : bf16 to vector<2x32xbf16>
    %82 = arith.addf %81, %80 : vector<2x32xbf16>
    %83 = arith.divf %81, %82 : vector<2x32xbf16>
    %84 = vector.extract_strided_slice %71 {offsets = [0, 64], sizes = [2, 32], strides = [1, 1]} : vector<2x128xbf16> to vector<2x32xbf16>
    %85 = math.tanh %84 : vector<2x32xbf16>
    %86 = vector.extract_strided_slice %71 {offsets = [0, 96], sizes = [2, 32], strides = [1, 1]} : vector<2x128xbf16> to vector<2x32xbf16>
    %87 = arith.negf %86 : vector<2x32xbf16>
    %88 = math.exp %87 : vector<2x32xbf16>
    %cst_27 = arith.constant 1.000000e+00 : bf16
    %89 = vector.broadcast %cst_27 : bf16 to vector<2x32xbf16>
    %90 = arith.addf %89, %88 : vector<2x32xbf16>
    %91 = arith.divf %89, %90 : vector<2x32xbf16>
    %92 = arith.extf %83 : vector<2x32xbf16> to vector<2x32xf32>
    %93 = arith.mulf %92, %51 : vector<2x32xf32>
    %94 = arith.mulf %77, %85 : vector<2x32xbf16>
    %95 = arith.extf %94 : vector<2x32xbf16> to vector<2x32xf32>
    %96 = arith.addf %93, %95 : vector<2x32xf32>
    %97 = arith.truncf %96 : vector<2x32xf32> to vector<2x32xbf16>
    %98 = math.tanh %97 : vector<2x32xbf16>
    %99 = arith.mulf %91, %98 : vector<2x32xbf16>
    %c0_28 = arith.constant 0 : index
    %100 = arith.index_cast %62 : i32 to index
    %c0_29 = arith.constant 0 : index
    %c0_30 = arith.constant 0 : index
    %101 = vector.load %arg5[%c0_28, %100, %c0_29, %c0_30] : memref<1x8x2x32xbf16, #tpu.memory_space<vmem>>, vector<1x1x2x32xbf16>
    %102 = vector.shape_cast %101 : vector<1x1x2x32xbf16> to vector<2x32xbf16>
    %103 = vector.shape_cast %99 : vector<2x32xbf16> to vector<1x1x2x32xbf16>
    tpu.vector_store %arg5[%c0_28, %100, %c0_29, %c0_30], %103 {strides = array<i32>} : memref<1x8x2x32xbf16, #tpu.memory_space<vmem>>, vector<1x1x2x32xbf16>,
    %c2_i32_31 = arith.constant 2 : i32
    %c2_i32_32 = arith.constant 2 : i32
    %104 = arith.muli %c2_i32_32, %c2_i32_31 : i32
    %c7_i32_33 = arith.constant 7 : i32
    %105 = arith.subi %c7_i32_33, %104 : i32
    %106 = arith.muli %arg0, %105 : i32
    %107 = arith.addi %c2_i32_31, %106 : i32
    %cst_34 = arith.constant dense<0.000000e+00> : vector<2x128xf32>
    %108 = tpu.matmul %99, %5, %cst_34 {dimension_numbers = #tpu.dot_dimension_numbers<[1], [0], [0], [1], [0, 0, 1, 1], [], []>} : vector<2x32xbf16>, vector<32x128xbf16>, vector<2x128xf32> -> vector<2x128xf32>
    %c0_35 = arith.constant 0 : index
    %109 = arith.index_cast %107 : i32 to index
    %c0_36 = arith.constant 0 : index
    %c0_37 = arith.constant 0 : index
    %110 = vector.load %arg2[%c0_35, %109, %c0_36, %c0_37] : memref<1x8x2x128xbf16, #tpu.memory_space<vmem>>, vector<1x1x2x128xbf16>
    %111 = vector.shape_cast %110 : vector<1x1x2x128xbf16> to vector<2x128xbf16>
    %112 = arith.extf %111 : vector<2x128xbf16> to vector<2x128xf32>
    %113 = arith.addf %108, %112 : vector<2x128xf32>
    %114 = vector.broadcast %7 : vector<1x128xf32> to vector<2x128xf32>
    %115 = arith.addf %113, %114 : vector<2x128xf32>
    %116 = arith.truncf %115 : vector<2x128xf32> to vector<2x128xbf16>
    %117 = vector.extract_strided_slice %116 {offsets = [0, 0], sizes = [2, 32], strides = [1, 1]} : vector<2x128xbf16> to vector<2x32xbf16>
    %118 = arith.negf %117 : vector<2x32xbf16>
    %119 = math.exp %118 : vector<2x32xbf16>
    %cst_38 = arith.constant 1.000000e+00 : bf16
    %120 = vector.broadcast %cst_38 : bf16 to vector<2x32xbf16>
    %121 = arith.addf %120, %119 : vector<2x32xbf16>
    %122 = arith.divf %120, %121 : vector<2x32xbf16>
    %123 = vector.extract_strided_slice %116 {offsets = [0, 32], sizes = [2, 32], strides = [1, 1]} : vector<2x128xbf16> to vector<2x32xbf16>
    %124 = arith.negf %123 : vector<2x32xbf16>
    %125 = math.exp %124 : vector<2x32xbf16>
    %cst_39 = arith.constant 1.000000e+00 : bf16
    %126 = vector.broadcast %cst_39 : bf16 to vector<2x32xbf16>
    %127 = arith.addf %126, %125 : vector<2x32xbf16>
    %128 = arith.divf %126, %127 : vector<2x32xbf16>
    %129 = vector.extract_strided_slice %116 {offsets = [0, 64], sizes = [2, 32], strides = [1, 1]} : vector<2x128xbf16> to vector<2x32xbf16>
    %130 = math.tanh %129 : vector<2x32xbf16>
    %131 = vector.extract_strided_slice %116 {offsets = [0, 96], sizes = [2, 32], strides = [1, 1]} : vector<2x128xbf16> to vector<2x32xbf16>
    %132 = arith.negf %131 : vector<2x32xbf16>
    %133 = math.exp %132 : vector<2x32xbf16>
    %cst_40 = arith.constant 1.000000e+00 : bf16
    %134 = vector.broadcast %cst_40 : bf16 to vector<2x32xbf16>
    %135 = arith.addf %134, %133 : vector<2x32xbf16>
    %136 = arith.divf %134, %135 : vector<2x32xbf16>
    %137 = arith.extf %128 : vector<2x32xbf16> to vector<2x32xf32>
    %138 = arith.mulf %137, %96 : vector<2x32xf32>
    %139 = arith.mulf %122, %130 : vector<2x32xbf16>
    %140 = arith.extf %139 : vector<2x32xbf16> to vector<2x32xf32>
    %141 = arith.addf %138, %140 : vector<2x32xf32>
    %142 = arith.truncf %141 : vector<2x32xf32> to vector<2x32xbf16>
    %143 = math.tanh %142 : vector<2x32xbf16>
    %144 = arith.mulf %136, %143 : vector<2x32xbf16>
    %c0_41 = arith.constant 0 : index
    %145 = arith.index_cast %107 : i32 to index
    %c0_42 = arith.constant 0 : index
    %c0_43 = arith.constant 0 : index
    %146 = vector.load %arg5[%c0_41, %145, %c0_42, %c0_43] : memref<1x8x2x32xbf16, #tpu.memory_space<vmem>>, vector<1x1x2x32xbf16>
    %147 = vector.shape_cast %146 : vector<1x1x2x32xbf16> to vector<2x32xbf16>
    %148 = vector.shape_cast %144 : vector<2x32xbf16> to vector<1x1x2x32xbf16>
    tpu.vector_store %arg5[%c0_41, %145, %c0_42, %c0_43], %148 {strides = array<i32>} : memref<1x8x2x32xbf16, #tpu.memory_space<vmem>>, vector<1x1x2x32xbf16>,
    %c3_i32 = arith.constant 3 : i32
    %c2_i32_44 = arith.constant 2 : i32
    %149 = arith.muli %c2_i32_44, %c3_i32 : i32
    %c7_i32_45 = arith.constant 7 : i32
    %150 = arith.subi %c7_i32_45, %149 : i32
    %151 = arith.muli %arg0, %150 : i32
    %152 = arith.addi %c3_i32, %151 : i32
    %cst_46 = arith.constant dense<0.000000e+00> : vector<2x128xf32>
    %153 = tpu.matmul %144, %5, %cst_46 {dimension_numbers = #tpu.dot_dimension_numbers<[1], [0], [0], [1], [0, 0, 1, 1], [], []>} : vector<2x32xbf16>, vector<32x128xbf16>, vector<2x128xf32> -> vector<2x128xf32>
    %c0_47 = arith.constant 0 : index
    %154 = arith.index_cast %152 : i32 to index
    %c0_48 = arith.constant 0 : index
    %c0_49 = arith.constant 0 : index
    %155 = vector.load %arg2[%c0_47, %154, %c0_48, %c0_49] : memref<1x8x2x128xbf16, #tpu.memory_space<vmem>>, vector<1x1x2x128xbf16>
    %156 = vector.shape_cast %155 : vector<1x1x2x128xbf16> to vector<2x128xbf16>
    %157 = arith.extf %156 : vector<2x128xbf16> to vector<2x128xf32>
    %158 = arith.addf %153, %157 : vector<2x128xf32>
    %159 = vector.broadcast %7 : vector<1x128xf32> to vector<2x128xf32>
    %160 = arith.addf %158, %159 : vector<2x128xf32>
    %161 = arith.truncf %160 : vector<2x128xf32> to vector<2x128xbf16>
    %162 = vector.extract_strided_slice %161 {offsets = [0, 0], sizes = [2, 32], strides = [1, 1]} : vector<2x128xbf16> to vector<2x32xbf16>
    %163 = arith.negf %162 : vector<2x32xbf16>
    %164 = math.exp %163 : vector<2x32xbf16>
    %cst_50 = arith.constant 1.000000e+00 : bf16
    %165 = vector.broadcast %cst_50 : bf16 to vector<2x32xbf16>
    %166 = arith.addf %165, %164 : vector<2x32xbf16>
    %167 = arith.divf %165, %166 : vector<2x32xbf16>
    %168 = vector.extract_strided_slice %161 {offsets = [0, 32], sizes = [2, 32], strides = [1, 1]} : vector<2x128xbf16> to vector<2x32xbf16>
    %169 = arith.negf %168 : vector<2x32xbf16>
    %170 = math.exp %169 : vector<2x32xbf16>
    %cst_51 = arith.constant 1.000000e+00 : bf16
    %171 = vector.broadcast %cst_51 : bf16 to vector<2x32xbf16>
    %172 = arith.addf %171, %170 : vector<2x32xbf16>
    %173 = arith.divf %171, %172 : vector<2x32xbf16>
    %174 = vector.extract_strided_slice %161 {offsets = [0, 64], sizes = [2, 32], strides = [1, 1]} : vector<2x128xbf16> to vector<2x32xbf16>
    %175 = math.tanh %174 : vector<2x32xbf16>
    %176 = vector.extract_strided_slice %161 {offsets = [0, 96], sizes = [2, 32], strides = [1, 1]} : vector<2x128xbf16> to vector<2x32xbf16>
    %177 = arith.negf %176 : vector<2x32xbf16>
    %178 = math.exp %177 : vector<2x32xbf16>
    %cst_52 = arith.constant 1.000000e+00 : bf16
    %179 = vector.broadcast %cst_52 : bf16 to vector<2x32xbf16>
    %180 = arith.addf %179, %178 : vector<2x32xbf16>
    %181 = arith.divf %179, %180 : vector<2x32xbf16>
    %182 = arith.extf %173 : vector<2x32xbf16> to vector<2x32xf32>
    %183 = arith.mulf %182, %141 : vector<2x32xf32>
    %184 = arith.mulf %167, %175 : vector<2x32xbf16>
    %185 = arith.extf %184 : vector<2x32xbf16> to vector<2x32xf32>
    %186 = arith.addf %183, %185 : vector<2x32xf32>
    %187 = arith.truncf %186 : vector<2x32xf32> to vector<2x32xbf16>
    %188 = math.tanh %187 : vector<2x32xbf16>
    %189 = arith.mulf %181, %188 : vector<2x32xbf16>
    %c0_53 = arith.constant 0 : index
    %190 = arith.index_cast %152 : i32 to index
    %c0_54 = arith.constant 0 : index
    %c0_55 = arith.constant 0 : index
    %191 = vector.load %arg5[%c0_53, %190, %c0_54, %c0_55] : memref<1x8x2x32xbf16, #tpu.memory_space<vmem>>, vector<1x1x2x32xbf16>
    %192 = vector.shape_cast %191 : vector<1x1x2x32xbf16> to vector<2x32xbf16>
    %193 = vector.shape_cast %189 : vector<2x32xbf16> to vector<1x1x2x32xbf16>
    tpu.vector_store %arg5[%c0_53, %190, %c0_54, %c0_55], %193 {strides = array<i32>} : memref<1x8x2x32xbf16, #tpu.memory_space<vmem>>, vector<1x1x2x32xbf16>,
    %c4_i32 = arith.constant 4 : i32
    %c2_i32_56 = arith.constant 2 : i32
    %194 = arith.muli %c2_i32_56, %c4_i32 : i32
    %c7_i32_57 = arith.constant 7 : i32
    %195 = arith.subi %c7_i32_57, %194 : i32
    %196 = arith.muli %arg0, %195 : i32
    %197 = arith.addi %c4_i32, %196 : i32
    %cst_58 = arith.constant dense<0.000000e+00> : vector<2x128xf32>
    %198 = tpu.matmul %189, %5, %cst_58 {dimension_numbers = #tpu.dot_dimension_numbers<[1], [0], [0], [1], [0, 0, 1, 1], [], []>} : vector<2x32xbf16>, vector<32x128xbf16>, vector<2x128xf32> -> vector<2x128xf32>
    %c0_59 = arith.constant 0 : index
    %199 = arith.index_cast %197 : i32 to index
    %c0_60 = arith.constant 0 : index
    %c0_61 = arith.constant 0 : index
    %200 = vector.load %arg2[%c0_59, %199, %c0_60, %c0_61] : memref<1x8x2x128xbf16, #tpu.memory_space<vmem>>, vector<1x1x2x128xbf16>
    %201 = vector.shape_cast %200 : vector<1x1x2x128xbf16> to vector<2x128xbf16>
    %202 = arith.extf %201 : vector<2x128xbf16> to vector<2x128xf32>
    %203 = arith.addf %198, %202 : vector<2x128xf32>
    %204 = vector.broadcast %7 : vector<1x128xf32> to vector<2x128xf32>
    %205 = arith.addf %203, %204 : vector<2x128xf32>
    %206 = arith.truncf %205 : vector<2x128xf32> to vector<2x128xbf16>
    %207 = vector.extract_strided_slice %206 {offsets = [0, 0], sizes = [2, 32], strides = [1, 1]} : vector<2x128xbf16> to vector<2x32xbf16>
    %208 = arith.negf %207 : vector<2x32xbf16>
    %209 = math.exp %208 : vector<2x32xbf16>
    %cst_62 = arith.constant 1.000000e+00 : bf16
    %210 = vector.broadcast %cst_62 : bf16 to vector<2x32xbf16>
    %211 = arith.addf %210, %209 : vector<2x32xbf16>
    %212 = arith.divf %210, %211 : vector<2x32xbf16>
    %213 = vector.extract_strided_slice %206 {offsets = [0, 32], sizes = [2, 32], strides = [1, 1]} : vector<2x128xbf16> to vector<2x32xbf16>
    %214 = arith.negf %213 : vector<2x32xbf16>
    %215 = math.exp %214 : vector<2x32xbf16>
    %cst_63 = arith.constant 1.000000e+00 : bf16
    %216 = vector.broadcast %cst_63 : bf16 to vector<2x32xbf16>
    %217 = arith.addf %216, %215 : vector<2x32xbf16>
    %218 = arith.divf %216, %217 : vector<2x32xbf16>
    %219 = vector.extract_strided_slice %206 {offsets = [0, 64], sizes = [2, 32], strides = [1, 1]} : vector<2x128xbf16> to vector<2x32xbf16>
    %220 = math.tanh %219 : vector<2x32xbf16>
    %221 = vector.extract_strided_slice %206 {offsets = [0, 96], sizes = [2, 32], strides = [1, 1]} : vector<2x128xbf16> to vector<2x32xbf16>
    %222 = arith.negf %221 : vector<2x32xbf16>
    %223 = math.exp %222 : vector<2x32xbf16>
    %cst_64 = arith.constant 1.000000e+00 : bf16
    %224 = vector.broadcast %cst_64 : bf16 to vector<2x32xbf16>
    %225 = arith.addf %224, %223 : vector<2x32xbf16>
    %226 = arith.divf %224, %225 : vector<2x32xbf16>
    %227 = arith.extf %218 : vector<2x32xbf16> to vector<2x32xf32>
    %228 = arith.mulf %227, %186 : vector<2x32xf32>
    %229 = arith.mulf %212, %220 : vector<2x32xbf16>
    %230 = arith.extf %229 : vector<2x32xbf16> to vector<2x32xf32>
    %231 = arith.addf %228, %230 : vector<2x32xf32>
    %232 = arith.truncf %231 : vector<2x32xf32> to vector<2x32xbf16>
    %233 = math.tanh %232 : vector<2x32xbf16>
    %234 = arith.mulf %226, %233 : vector<2x32xbf16>
    %c0_65 = arith.constant 0 : index
    %235 = arith.index_cast %197 : i32 to index
    %c0_66 = arith.constant 0 : index
    %c0_67 = arith.constant 0 : index
    %236 = vector.load %arg5[%c0_65, %235, %c0_66, %c0_67] : memref<1x8x2x32xbf16, #tpu.memory_space<vmem>>, vector<1x1x2x32xbf16>
    %237 = vector.shape_cast %236 : vector<1x1x2x32xbf16> to vector<2x32xbf16>
    %238 = vector.shape_cast %234 : vector<2x32xbf16> to vector<1x1x2x32xbf16>
    tpu.vector_store %arg5[%c0_65, %235, %c0_66, %c0_67], %238 {strides = array<i32>} : memref<1x8x2x32xbf16, #tpu.memory_space<vmem>>, vector<1x1x2x32xbf16>,
    %c5_i32 = arith.constant 5 : i32
    %c2_i32_68 = arith.constant 2 : i32
    %239 = arith.muli %c2_i32_68, %c5_i32 : i32
    %c7_i32_69 = arith.constant 7 : i32
    %240 = arith.subi %c7_i32_69, %239 : i32
    %241 = arith.muli %arg0, %240 : i32
    %242 = arith.addi %c5_i32, %241 : i32
    %cst_70 = arith.constant dense<0.000000e+00> : vector<2x128xf32>
    %243 = tpu.matmul %234, %5, %cst_70 {dimension_numbers = #tpu.dot_dimension_numbers<[1], [0], [0], [1], [0, 0, 1, 1], [], []>} : vector<2x32xbf16>, vector<32x128xbf16>, vector<2x128xf32> -> vector<2x128xf32>
    %c0_71 = arith.constant 0 : index
    %244 = arith.index_cast %242 : i32 to index
    %c0_72 = arith.constant 0 : index
    %c0_73 = arith.constant 0 : index
    %245 = vector.load %arg2[%c0_71, %244, %c0_72, %c0_73] : memref<1x8x2x128xbf16, #tpu.memory_space<vmem>>, vector<1x1x2x128xbf16>
    %246 = vector.shape_cast %245 : vector<1x1x2x128xbf16> to vector<2x128xbf16>
    %247 = arith.extf %246 : vector<2x128xbf16> to vector<2x128xf32>
    %248 = arith.addf %243, %247 : vector<2x128xf32>
    %249 = vector.broadcast %7 : vector<1x128xf32> to vector<2x128xf32>
    %250 = arith.addf %248, %249 : vector<2x128xf32>
    %251 = arith.truncf %250 : vector<2x128xf32> to vector<2x128xbf16>
    %252 = vector.extract_strided_slice %251 {offsets = [0, 0], sizes = [2, 32], strides = [1, 1]} : vector<2x128xbf16> to vector<2x32xbf16>
    %253 = arith.negf %252 : vector<2x32xbf16>
    %254 = math.exp %253 : vector<2x32xbf16>
    %cst_74 = arith.constant 1.000000e+00 : bf16
    %255 = vector.broadcast %cst_74 : bf16 to vector<2x32xbf16>
    %256 = arith.addf %255, %254 : vector<2x32xbf16>
    %257 = arith.divf %255, %256 : vector<2x32xbf16>
    %258 = vector.extract_strided_slice %251 {offsets = [0, 32], sizes = [2, 32], strides = [1, 1]} : vector<2x128xbf16> to vector<2x32xbf16>
    %259 = arith.negf %258 : vector<2x32xbf16>
    %260 = math.exp %259 : vector<2x32xbf16>
    %cst_75 = arith.constant 1.000000e+00 : bf16
    %261 = vector.broadcast %cst_75 : bf16 to vector<2x32xbf16>
    %262 = arith.addf %261, %260 : vector<2x32xbf16>
    %263 = arith.divf %261, %262 : vector<2x32xbf16>
    %264 = vector.extract_strided_slice %251 {offsets = [0, 64], sizes = [2, 32], strides = [1, 1]} : vector<2x128xbf16> to vector<2x32xbf16>
    %265 = math.tanh %264 : vector<2x32xbf16>
    %266 = vector.extract_strided_slice %251 {offsets = [0, 96], sizes = [2, 32], strides = [1, 1]} : vector<2x128xbf16> to vector<2x32xbf16>
    %267 = arith.negf %266 : vector<2x32xbf16>
    %268 = math.exp %267 : vector<2x32xbf16>
    %cst_76 = arith.constant 1.000000e+00 : bf16
    %269 = vector.broadcast %cst_76 : bf16 to vector<2x32xbf16>
    %270 = arith.addf %269, %268 : vector<2x32xbf16>
    %271 = arith.divf %269, %270 : vector<2x32xbf16>
    %272 = arith.extf %263 : vector<2x32xbf16> to vector<2x32xf32>
    %273 = arith.mulf %272, %231 : vector<2x32xf32>
    %274 = arith.mulf %257, %265 : vector<2x32xbf16>
    %275 = arith.extf %274 : vector<2x32xbf16> to vector<2x32xf32>
    %276 = arith.addf %273, %275 : vector<2x32xf32>
    %277 = arith.truncf %276 : vector<2x32xf32> to vector<2x32xbf16>
    %278 = math.tanh %277 : vector<2x32xbf16>
    %279 = arith.mulf %271, %278 : vector<2x32xbf16>
    %c0_77 = arith.constant 0 : index
    %280 = arith.index_cast %242 : i32 to index
    %c0_78 = arith.constant 0 : index
    %c0_79 = arith.constant 0 : index
    %281 = vector.load %arg5[%c0_77, %280, %c0_78, %c0_79] : memref<1x8x2x32xbf16, #tpu.memory_space<vmem>>, vector<1x1x2x32xbf16>
    %282 = vector.shape_cast %281 : vector<1x1x2x32xbf16> to vector<2x32xbf16>
    %283 = vector.shape_cast %279 : vector<2x32xbf16> to vector<1x1x2x32xbf16>
    tpu.vector_store %arg5[%c0_77, %280, %c0_78, %c0_79], %283 {strides = array<i32>} : memref<1x8x2x32xbf16, #tpu.memory_space<vmem>>, vector<1x1x2x32xbf16>,
    %c6_i32 = arith.constant 6 : i32
    %c2_i32_80 = arith.constant 2 : i32
    %284 = arith.muli %c2_i32_80, %c6_i32 : i32
    %c7_i32_81 = arith.constant 7 : i32
    %285 = arith.subi %c7_i32_81, %284 : i32
    %286 = arith.muli %arg0, %285 : i32
    %287 = arith.addi %c6_i32, %286 : i32
    %cst_82 = arith.constant dense<0.000000e+00> : vector<2x128xf32>
    %288 = tpu.matmul %279, %5, %cst_82 {dimension_numbers = #tpu.dot_dimension_numbers<[1], [0], [0], [1], [0, 0, 1, 1], [], []>} : vector<2x32xbf16>, vector<32x128xbf16>, vector<2x128xf32> -> vector<2x128xf32>
    %c0_83 = arith.constant 0 : index
    %289 = arith.index_cast %287 : i32 to index
    %c0_84 = arith.constant 0 : index
    %c0_85 = arith.constant 0 : index
    %290 = vector.load %arg2[%c0_83, %289, %c0_84, %c0_85] : memref<1x8x2x128xbf16, #tpu.memory_space<vmem>>, vector<1x1x2x128xbf16>
    %291 = vector.shape_cast %290 : vector<1x1x2x128xbf16> to vector<2x128xbf16>
    %292 = arith.extf %291 : vector<2x128xbf16> to vector<2x128xf32>
    %293 = arith.addf %288, %292 : vector<2x128xf32>
    %294 = vector.broadcast %7 : vector<1x128xf32> to vector<2x128xf32>
    %295 = arith.addf %293, %294 : vector<2x128xf32>
    %296 = arith.truncf %295 : vector<2x128xf32> to vector<2x128xbf16>
    %297 = vector.extract_strided_slice %296 {offsets = [0, 0], sizes = [2, 32], strides = [1, 1]} : vector<2x128xbf16> to vector<2x32xbf16>
    %298 = arith.negf %297 : vector<2x32xbf16>
    %299 = math.exp %298 : vector<2x32xbf16>
    %cst_86 = arith.constant 1.000000e+00 : bf16
    %300 = vector.broadcast %cst_86 : bf16 to vector<2x32xbf16>
    %301 = arith.addf %300, %299 : vector<2x32xbf16>
    %302 = arith.divf %300, %301 : vector<2x32xbf16>
    %303 = vector.extract_strided_slice %296 {offsets = [0, 32], sizes = [2, 32], strides = [1, 1]} : vector<2x128xbf16> to vector<2x32xbf16>
    %304 = arith.negf %303 : vector<2x32xbf16>
    %305 = math.exp %304 : vector<2x32xbf16>
    %cst_87 = arith.constant 1.000000e+00 : bf16
    %306 = vector.broadcast %cst_87 : bf16 to vector<2x32xbf16>
    %307 = arith.addf %306, %305 : vector<2x32xbf16>
    %308 = arith.divf %306, %307 : vector<2x32xbf16>
    %309 = vector.extract_strided_slice %296 {offsets = [0, 64], sizes = [2, 32], strides = [1, 1]} : vector<2x128xbf16> to vector<2x32xbf16>
    %310 = math.tanh %309 : vector<2x32xbf16>
    %311 = vector.extract_strided_slice %296 {offsets = [0, 96], sizes = [2, 32], strides = [1, 1]} : vector<2x128xbf16> to vector<2x32xbf16>
    %312 = arith.negf %311 : vector<2x32xbf16>
    %313 = math.exp %312 : vector<2x32xbf16>
    %cst_88 = arith.constant 1.000000e+00 : bf16
    %314 = vector.broadcast %cst_88 : bf16 to vector<2x32xbf16>
    %315 = arith.addf %314, %313 : vector<2x32xbf16>
    %316 = arith.divf %314, %315 : vector<2x32xbf16>
    %317 = arith.extf %308 : vector<2x32xbf16> to vector<2x32xf32>
    %318 = arith.mulf %317, %276 : vector<2x32xf32>
    %319 = arith.mulf %302, %310 : vector<2x32xbf16>
    %320 = arith.extf %319 : vector<2x32xbf16> to vector<2x32xf32>
    %321 = arith.addf %318, %320 : vector<2x32xf32>
    %322 = arith.truncf %321 : vector<2x32xf32> to vector<2x32xbf16>
    %323 = math.tanh %322 : vector<2x32xbf16>
    %324 = arith.mulf %316, %323 : vector<2x32xbf16>
    %c0_89 = arith.constant 0 : index
    %325 = arith.index_cast %287 : i32 to index
    %c0_90 = arith.constant 0 : index
    %c0_91 = arith.constant 0 : index
    %326 = vector.load %arg5[%c0_89, %325, %c0_90, %c0_91] : memref<1x8x2x32xbf16, #tpu.memory_space<vmem>>, vector<1x1x2x32xbf16>
    %327 = vector.shape_cast %326 : vector<1x1x2x32xbf16> to vector<2x32xbf16>
    %328 = vector.shape_cast %324 : vector<2x32xbf16> to vector<1x1x2x32xbf16>
    tpu.vector_store %arg5[%c0_89, %325, %c0_90, %c0_91], %328 {strides = array<i32>} : memref<1x8x2x32xbf16, #tpu.memory_space<vmem>>, vector<1x1x2x32xbf16>,
    %c7_i32_92 = arith.constant 7 : i32
    %c2_i32_93 = arith.constant 2 : i32
    %329 = arith.muli %c2_i32_93, %c7_i32_92 : i32
    %c7_i32_94 = arith.constant 7 : i32
    %330 = arith.subi %c7_i32_94, %329 : i32
    %331 = arith.muli %arg0, %330 : i32
    %332 = arith.addi %c7_i32_92, %331 : i32
    %cst_95 = arith.constant dense<0.000000e+00> : vector<2x128xf32>
    %333 = tpu.matmul %324, %5, %cst_95 {dimension_numbers = #tpu.dot_dimension_numbers<[1], [0], [0], [1], [0, 0, 1, 1], [], []>} : vector<2x32xbf16>, vector<32x128xbf16>, vector<2x128xf32> -> vector<2x128xf32>
    %c0_96 = arith.constant 0 : index
    %334 = arith.index_cast %332 : i32 to index
    %c0_97 = arith.constant 0 : index
    %c0_98 = arith.constant 0 : index
    %335 = vector.load %arg2[%c0_96, %334, %c0_97, %c0_98] : memref<1x8x2x128xbf16, #tpu.memory_space<vmem>>, vector<1x1x2x128xbf16>
    %336 = vector.shape_cast %335 : vector<1x1x2x128xbf16> to vector<2x128xbf16>
    %337 = arith.extf %336 : vector<2x128xbf16> to vector<2x128xf32>
    %338 = arith.addf %333, %337 : vector<2x128xf32>
    %339 = vector.broadcast %7 : vector<1x128xf32> to vector<2x128xf32>
    %340 = arith.addf %338, %339 : vector<2x128xf32>
    %341 = arith.truncf %340 : vector<2x128xf32> to vector<2x128xbf16>
    %342 = vector.extract_strided_slice %341 {offsets = [0, 0], sizes = [2, 32], strides = [1, 1]} : vector<2x128xbf16> to vector<2x32xbf16>
    %343 = arith.negf %342 : vector<2x32xbf16>
    %344 = math.exp %343 : vector<2x32xbf16>
    %cst_99 = arith.constant 1.000000e+00 : bf16
    %345 = vector.broadcast %cst_99 : bf16 to vector<2x32xbf16>
    %346 = arith.addf %345, %344 : vector<2x32xbf16>
    %347 = arith.divf %345, %346 : vector<2x32xbf16>
    %348 = vector.extract_strided_slice %341 {offsets = [0, 32], sizes = [2, 32], strides = [1, 1]} : vector<2x128xbf16> to vector<2x32xbf16>
    %349 = arith.negf %348 : vector<2x32xbf16>
    %350 = math.exp %349 : vector<2x32xbf16>
    %cst_100 = arith.constant 1.000000e+00 : bf16
    %351 = vector.broadcast %cst_100 : bf16 to vector<2x32xbf16>
    %352 = arith.addf %351, %350 : vector<2x32xbf16>
    %353 = arith.divf %351, %352 : vector<2x32xbf16>
    %354 = vector.extract_strided_slice %341 {offsets = [0, 64], sizes = [2, 32], strides = [1, 1]} : vector<2x128xbf16> to vector<2x32xbf16>
    %355 = math.tanh %354 : vector<2x32xbf16>
    %356 = vector.extract_strided_slice %341 {offsets = [0, 96], sizes = [2, 32], strides = [1, 1]} : vector<2x128xbf16> to vector<2x32xbf16>
    %357 = arith.negf %356 : vector<2x32xbf16>
    %358 = math.exp %357 : vector<2x32xbf16>
    %cst_101 = arith.constant 1.000000e+00 : bf16
    %359 = vector.broadcast %cst_101 : bf16 to vector<2x32xbf16>
    %360 = arith.addf %359, %358 : vector<2x32xbf16>
    %361 = arith.divf %359, %360 : vector<2x32xbf16>
    %362 = arith.extf %353 : vector<2x32xbf16> to vector<2x32xf32>
    %363 = arith.mulf %362, %321 : vector<2x32xf32>
    %364 = arith.mulf %347, %355 : vector<2x32xbf16>
    %365 = arith.extf %364 : vector<2x32xbf16> to vector<2x32xf32>
    %366 = arith.addf %363, %365 : vector<2x32xf32>
    %367 = arith.truncf %366 : vector<2x32xf32> to vector<2x32xbf16>
    %368 = math.tanh %367 : vector<2x32xbf16>
    %369 = arith.mulf %361, %368 : vector<2x32xbf16>
    %c0_102 = arith.constant 0 : index
    %370 = arith.index_cast %332 : i32 to index
    %c0_103 = arith.constant 0 : index
    %c0_104 = arith.constant 0 : index
    %371 = vector.load %arg5[%c0_102, %370, %c0_103, %c0_104] : memref<1x8x2x32xbf16, #tpu.memory_space<vmem>>, vector<1x1x2x32xbf16>
    %372 = vector.shape_cast %371 : vector<1x1x2x32xbf16> to vector<2x32xbf16>
    %373 = vector.shape_cast %369 : vector<2x32xbf16> to vector<1x1x2x32xbf16>
    tpu.vector_store %arg5[%c0_102, %370, %c0_103, %c0_104], %373 {strides = array<i32>} : memref<1x8x2x32xbf16, #tpu.memory_space<vmem>>, vector<1x1x2x32xbf16>,
    %c8_i32 = arith.constant 8 : i32
    %374 = arith.index_cast %arg0 : i32 to index
    %c0_105 = arith.constant 0 : index
    %c0_106 = arith.constant 0 : index
    %375 = vector.load %arg7[%374, %c0_105, %c0_106] : memref<2x2x32xbf16, #tpu.memory_space<vmem>>, vector<1x2x32xbf16>
    %376 = vector.shape_cast %375 : vector<1x2x32xbf16> to vector<2x32xbf16>
    %377 = vector.shape_cast %369 : vector<2x32xbf16> to vector<1x2x32xbf16>
    tpu.vector_store %arg7[%374, %c0_105, %c0_106], %377 {strides = array<i32>} : memref<2x2x32xbf16, #tpu.memory_space<vmem>>, vector<1x2x32xbf16>,
    %378 = arith.index_cast %arg0 : i32 to index
    %c0_107 = arith.constant 0 : index
    %c0_108 = arith.constant 0 : index
    %379 = vector.load %arg8[%378, %c0_107, %c0_108] : memref<2x2x32xf32, #tpu.memory_space<vmem>>, vector<1x2x32xf32>
    %380 = vector.shape_cast %379 : vector<1x2x32xf32> to vector<2x32xf32>
    %381 = vector.shape_cast %366 : vector<2x32xf32> to vector<1x2x32xf32>
    tpu.vector_store %arg8[%378, %c0_107, %c0_108], %381 {strides = array<i32>} : memref<2x2x32xf32, #tpu.memory_space<vmem>>, vector<1x2x32xf32>,
    return
  }
  func.func @transform_0(%arg0: i32, %arg1: i32) -> (i32, i32, i32, i32) {
    %c2_i32 = arith.constant 2 : i32
    %0 = arith.muli %c2_i32, %arg1 : i32
    %c0_i32 = arith.constant 0 : i32
    %1 = arith.subi %c0_i32, %0 : i32
    %2 = arith.muli %arg0, %1 : i32
    %3 = arith.addi %arg1, %2 : i32
    %c0_i32_0 = arith.constant 0 : i32
    %c0_i32_1 = arith.constant 0 : i32
    %c0_i32_2 = arith.constant 0 : i32
    return %arg0, %3, %c0_i32_0, %c0_i32_1 : i32, i32, i32, i32
  }
  func.func @transform_1(%arg0: i32, %arg1: i32) -> (i32, i32, i32) {
    %c0_i32 = arith.constant 0 : i32
    %c0_i32_0 = arith.constant 0 : i32
    %c0_i32_1 = arith.constant 0 : i32
    return %arg0, %c0_i32, %c0_i32_0 : i32, i32, i32
  }
  func.func @transform_3(%arg0: i32, %arg1: i32) -> (i32, i32, i32, i32) {
    %c2_i32 = arith.constant 2 : i32
    %0 = arith.muli %c2_i32, %arg1 : i32
    %c0_i32 = arith.constant 0 : i32
    %1 = arith.subi %c0_i32, %0 : i32
    %2 = arith.muli %arg0, %1 : i32
    %3 = arith.addi %arg1, %2 : i32
    %c0_i32_0 = arith.constant 0 : i32
    %c0_i32_1 = arith.constant 0 : i32
    %c0_i32_2 = arith.constant 0 : i32
    return %arg0, %3, %c0_i32_0, %c0_i32_1 : i32, i32, i32, i32
  }
}

module attributes {stable_mosaic.version = 11 : i64} {
  func.func @_lstm_rev_last_h_kernel(%arg0: i32, %arg1: memref<8x2x128xbf16, #tpu.memory_space<vmem>>, %arg2: memref<1x128xf32, #tpu.memory_space<vmem>>, %arg3: memref<32x128xbf16, #tpu.memory_space<any>>, %arg4: memref<2x32xf32, #tpu.memory_space<vmem>>, %arg5: memref<32x128xbf16, #tpu.memory_space<vmem>>, %arg6: memref<2x32xbf16, #tpu.memory_space<vmem>>, %arg7: memref<2x32xf32, #tpu.memory_space<vmem>>, %arg8: memref<!tpu.dma_semaphore, #tpu.memory_space<semaphore_mem>>) attributes {dimension_semantics = [#tpu.dimension_semantics<arbitrary>], iteration_bounds = array<i64: 1>, scalar_prefetch = 0 : i64, scratch_operands = 4 : i64, tpu.core_type = #tpu.core_type<tc>, window_params = [{transform_indices = @transform_0, window_bounds = array<i64: 8, 2, 128>}, {pipeline_mode = #tpu.pipeline_mode<synchronous>, transform_indices = @transform_1, window_bounds = array<i64: 1, 128>}, {}, {pipeline_mode = #tpu.pipeline_mode<synchronous>, transform_indices = @transform_3, window_bounds = array<i64: 2, 32>}]} {
    %c0_i32 = arith.constant 0 : i32
    %0 = arith.cmpi eq, %arg0, %c0_i32 : i32
    %1 = arith.extui %0 : i1 to i32
    %c0_i32_0 = arith.constant 0 : i32
    %2 = arith.cmpi ne, %1, %c0_i32_0 : i32
    scf.if %2 {
      %cst_70 = arith.constant 0.000000e+00 : bf16
      %315 = vector.broadcast %cst_70 : bf16 to vector<2x32xbf16>
      %c0_71 = arith.constant 0 : index
      %c0_72 = arith.constant 0 : index
      %316 = vector.load %arg6[%c0_71, %c0_72] : memref<2x32xbf16, #tpu.memory_space<vmem>>, vector<2x32xbf16>
      tpu.vector_store %arg6[%c0_71, %c0_72], %315 {strides = array<i32>} : memref<2x32xbf16, #tpu.memory_space<vmem>>, vector<2x32xbf16>,
      %cst_73 = arith.constant 0.000000e+00 : f32
      %317 = vector.broadcast %cst_73 : f32 to vector<2x32xf32>
      %c0_74 = arith.constant 0 : index
      %c0_75 = arith.constant 0 : index
      %318 = vector.load %arg7[%c0_74, %c0_75] : memref<2x32xf32, #tpu.memory_space<vmem>>, vector<2x32xf32>
      tpu.vector_store %arg7[%c0_74, %c0_75], %317 {strides = array<i32>} : memref<2x32xf32, #tpu.memory_space<vmem>>, vector<2x32xf32>,
      tpu.enqueue_dma source(%arg3 : memref<32x128xbf16, #tpu.memory_space<any>>) target(%arg5 : memref<32x128xbf16, #tpu.memory_space<vmem>>) target_semaphore(%arg8 : memref<!tpu.dma_semaphore, #tpu.memory_space<semaphore_mem>>)
      tpu.wait_dma2 semaphore(%arg8 : memref<!tpu.dma_semaphore, #tpu.memory_space<semaphore_mem>>) src(%arg3 : memref<32x128xbf16, #tpu.memory_space<any>>) dst(%arg5 : memref<32x128xbf16, #tpu.memory_space<vmem>>)
    } else {
    }
    %c0 = arith.constant 0 : index
    %c0_1 = arith.constant 0 : index
    %3 = vector.load %arg5[%c0, %c0_1] : memref<32x128xbf16, #tpu.memory_space<vmem>>, vector<32x128xbf16>
    %c0_2 = arith.constant 0 : index
    %c0_3 = arith.constant 0 : index
    %4 = vector.load %arg2[%c0_2, %c0_3] : memref<1x128xf32, #tpu.memory_space<vmem>>, vector<1x128xf32>
    %c0_4 = arith.constant 0 : index
    %c0_5 = arith.constant 0 : index
    %5 = vector.load %arg6[%c0_4, %c0_5] : memref<2x32xbf16, #tpu.memory_space<vmem>>, vector<2x32xbf16>
    %c0_6 = arith.constant 0 : index
    %c0_7 = arith.constant 0 : index
    %6 = vector.load %arg7[%c0_6, %c0_7] : memref<2x32xf32, #tpu.memory_space<vmem>>, vector<2x32xf32>
    %c0_i32_8 = arith.constant 0 : i32
    %c7_i32 = arith.constant 7 : i32
    %7 = arith.subi %c7_i32, %c0_i32_8 : i32
    %cst = arith.constant dense<0.000000e+00> : vector<2x128xf32>
    %8 = tpu.matmul %5, %3, %cst {dimension_numbers = #tpu.dot_dimension_numbers<[1], [0], [0], [1], [0, 0, 1, 1], [], []>} : vector<2x32xbf16>, vector<32x128xbf16>, vector<2x128xf32> -> vector<2x128xf32>
    %9 = arith.index_cast %7 : i32 to index
    %c0_9 = arith.constant 0 : index
    %c0_10 = arith.constant 0 : index
    %10 = vector.load %arg1[%9, %c0_9, %c0_10] : memref<8x2x128xbf16, #tpu.memory_space<vmem>>, vector<1x2x128xbf16>
    %11 = vector.shape_cast %10 : vector<1x2x128xbf16> to vector<2x128xbf16>
    %12 = arith.extf %11 : vector<2x128xbf16> to vector<2x128xf32>
    %13 = arith.addf %8, %12 : vector<2x128xf32>
    %14 = vector.broadcast %4 : vector<1x128xf32> to vector<2x128xf32>
    %15 = arith.addf %13, %14 : vector<2x128xf32>
    %16 = arith.truncf %15 : vector<2x128xf32> to vector<2x128xbf16>
    %17 = vector.extract_strided_slice %16 {offsets = [0, 0], sizes = [2, 32], strides = [1, 1]} : vector<2x128xbf16> to vector<2x32xbf16>
    %18 = arith.negf %17 : vector<2x32xbf16>
    %19 = math.exp %18 : vector<2x32xbf16>
    %cst_11 = arith.constant 1.000000e+00 : bf16
    %20 = vector.broadcast %cst_11 : bf16 to vector<2x32xbf16>
    %21 = arith.addf %20, %19 : vector<2x32xbf16>
    %22 = arith.divf %20, %21 : vector<2x32xbf16>
    %23 = vector.extract_strided_slice %16 {offsets = [0, 32], sizes = [2, 32], strides = [1, 1]} : vector<2x128xbf16> to vector<2x32xbf16>
    %24 = arith.negf %23 : vector<2x32xbf16>
    %25 = math.exp %24 : vector<2x32xbf16>
    %cst_12 = arith.constant 1.000000e+00 : bf16
    %26 = vector.broadcast %cst_12 : bf16 to vector<2x32xbf16>
    %27 = arith.addf %26, %25 : vector<2x32xbf16>
    %28 = arith.divf %26, %27 : vector<2x32xbf16>
    %29 = vector.extract_strided_slice %16 {offsets = [0, 64], sizes = [2, 32], strides = [1, 1]} : vector<2x128xbf16> to vector<2x32xbf16>
    %30 = math.tanh %29 : vector<2x32xbf16>
    %31 = vector.extract_strided_slice %16 {offsets = [0, 96], sizes = [2, 32], strides = [1, 1]} : vector<2x128xbf16> to vector<2x32xbf16>
    %32 = arith.negf %31 : vector<2x32xbf16>
    %33 = math.exp %32 : vector<2x32xbf16>
    %cst_13 = arith.constant 1.000000e+00 : bf16
    %34 = vector.broadcast %cst_13 : bf16 to vector<2x32xbf16>
    %35 = arith.addf %34, %33 : vector<2x32xbf16>
    %36 = arith.divf %34, %35 : vector<2x32xbf16>
    %37 = arith.extf %28 : vector<2x32xbf16> to vector<2x32xf32>
    %38 = arith.mulf %37, %6 : vector<2x32xf32>
    %39 = arith.mulf %22, %30 : vector<2x32xbf16>
    %40 = arith.extf %39 : vector<2x32xbf16> to vector<2x32xf32>
    %41 = arith.addf %38, %40 : vector<2x32xf32>
    %42 = arith.truncf %41 : vector<2x32xf32> to vector<2x32xbf16>
    %43 = math.tanh %42 : vector<2x32xbf16>
    %44 = arith.mulf %36, %43 : vector<2x32xbf16>
    %c1_i32 = arith.constant 1 : i32
    %c7_i32_14 = arith.constant 7 : i32
    %45 = arith.subi %c7_i32_14, %c1_i32 : i32
    %cst_15 = arith.constant dense<0.000000e+00> : vector<2x128xf32>
    %46 = tpu.matmul %44, %3, %cst_15 {dimension_numbers = #tpu.dot_dimension_numbers<[1], [0], [0], [1], [0, 0, 1, 1], [], []>} : vector<2x32xbf16>, vector<32x128xbf16>, vector<2x128xf32> -> vector<2x128xf32>
    %47 = arith.index_cast %45 : i32 to index
    %c0_16 = arith.constant 0 : index
    %c0_17 = arith.constant 0 : index
    %48 = vector.load %arg1[%47, %c0_16, %c0_17] : memref<8x2x128xbf16, #tpu.memory_space<vmem>>, vector<1x2x128xbf16>
    %49 = vector.shape_cast %48 : vector<1x2x128xbf16> to vector<2x128xbf16>
    %50 = arith.extf %49 : vector<2x128xbf16> to vector<2x128xf32>
    %51 = arith.addf %46, %50 : vector<2x128xf32>
    %52 = vector.broadcast %4 : vector<1x128xf32> to vector<2x128xf32>
    %53 = arith.addf %51, %52 : vector<2x128xf32>
    %54 = arith.truncf %53 : vector<2x128xf32> to vector<2x128xbf16>
    %55 = vector.extract_strided_slice %54 {offsets = [0, 0], sizes = [2, 32], strides = [1, 1]} : vector<2x128xbf16> to vector<2x32xbf16>
    %56 = arith.negf %55 : vector<2x32xbf16>
    %57 = math.exp %56 : vector<2x32xbf16>
    %cst_18 = arith.constant 1.000000e+00 : bf16
    %58 = vector.broadcast %cst_18 : bf16 to vector<2x32xbf16>
    %59 = arith.addf %58, %57 : vector<2x32xbf16>
    %60 = arith.divf %58, %59 : vector<2x32xbf16>
    %61 = vector.extract_strided_slice %54 {offsets = [0, 32], sizes = [2, 32], strides = [1, 1]} : vector<2x128xbf16> to vector<2x32xbf16>
    %62 = arith.negf %61 : vector<2x32xbf16>
    %63 = math.exp %62 : vector<2x32xbf16>
    %cst_19 = arith.constant 1.000000e+00 : bf16
    %64 = vector.broadcast %cst_19 : bf16 to vector<2x32xbf16>
    %65 = arith.addf %64, %63 : vector<2x32xbf16>
    %66 = arith.divf %64, %65 : vector<2x32xbf16>
    %67 = vector.extract_strided_slice %54 {offsets = [0, 64], sizes = [2, 32], strides = [1, 1]} : vector<2x128xbf16> to vector<2x32xbf16>
    %68 = math.tanh %67 : vector<2x32xbf16>
    %69 = vector.extract_strided_slice %54 {offsets = [0, 96], sizes = [2, 32], strides = [1, 1]} : vector<2x128xbf16> to vector<2x32xbf16>
    %70 = arith.negf %69 : vector<2x32xbf16>
    %71 = math.exp %70 : vector<2x32xbf16>
    %cst_20 = arith.constant 1.000000e+00 : bf16
    %72 = vector.broadcast %cst_20 : bf16 to vector<2x32xbf16>
    %73 = arith.addf %72, %71 : vector<2x32xbf16>
    %74 = arith.divf %72, %73 : vector<2x32xbf16>
    %75 = arith.extf %66 : vector<2x32xbf16> to vector<2x32xf32>
    %76 = arith.mulf %75, %41 : vector<2x32xf32>
    %77 = arith.mulf %60, %68 : vector<2x32xbf16>
    %78 = arith.extf %77 : vector<2x32xbf16> to vector<2x32xf32>
    %79 = arith.addf %76, %78 : vector<2x32xf32>
    %80 = arith.truncf %79 : vector<2x32xf32> to vector<2x32xbf16>
    %81 = math.tanh %80 : vector<2x32xbf16>
    %82 = arith.mulf %74, %81 : vector<2x32xbf16>
    %c2_i32 = arith.constant 2 : i32
    %c7_i32_21 = arith.constant 7 : i32
    %83 = arith.subi %c7_i32_21, %c2_i32 : i32
    %cst_22 = arith.constant dense<0.000000e+00> : vector<2x128xf32>
    %84 = tpu.matmul %82, %3, %cst_22 {dimension_numbers = #tpu.dot_dimension_numbers<[1], [0], [0], [1], [0, 0, 1, 1], [], []>} : vector<2x32xbf16>, vector<32x128xbf16>, vector<2x128xf32> -> vector<2x128xf32>
    %85 = arith.index_cast %83 : i32 to index
    %c0_23 = arith.constant 0 : index
    %c0_24 = arith.constant 0 : index
    %86 = vector.load %arg1[%85, %c0_23, %c0_24] : memref<8x2x128xbf16, #tpu.memory_space<vmem>>, vector<1x2x128xbf16>
    %87 = vector.shape_cast %86 : vector<1x2x128xbf16> to vector<2x128xbf16>
    %88 = arith.extf %87 : vector<2x128xbf16> to vector<2x128xf32>
    %89 = arith.addf %84, %88 : vector<2x128xf32>
    %90 = vector.broadcast %4 : vector<1x128xf32> to vector<2x128xf32>
    %91 = arith.addf %89, %90 : vector<2x128xf32>
    %92 = arith.truncf %91 : vector<2x128xf32> to vector<2x128xbf16>
    %93 = vector.extract_strided_slice %92 {offsets = [0, 0], sizes = [2, 32], strides = [1, 1]} : vector<2x128xbf16> to vector<2x32xbf16>
    %94 = arith.negf %93 : vector<2x32xbf16>
    %95 = math.exp %94 : vector<2x32xbf16>
    %cst_25 = arith.constant 1.000000e+00 : bf16
    %96 = vector.broadcast %cst_25 : bf16 to vector<2x32xbf16>
    %97 = arith.addf %96, %95 : vector<2x32xbf16>
    %98 = arith.divf %96, %97 : vector<2x32xbf16>
    %99 = vector.extract_strided_slice %92 {offsets = [0, 32], sizes = [2, 32], strides = [1, 1]} : vector<2x128xbf16> to vector<2x32xbf16>
    %100 = arith.negf %99 : vector<2x32xbf16>
    %101 = math.exp %100 : vector<2x32xbf16>
    %cst_26 = arith.constant 1.000000e+00 : bf16
    %102 = vector.broadcast %cst_26 : bf16 to vector<2x32xbf16>
    %103 = arith.addf %102, %101 : vector<2x32xbf16>
    %104 = arith.divf %102, %103 : vector<2x32xbf16>
    %105 = vector.extract_strided_slice %92 {offsets = [0, 64], sizes = [2, 32], strides = [1, 1]} : vector<2x128xbf16> to vector<2x32xbf16>
    %106 = math.tanh %105 : vector<2x32xbf16>
    %107 = vector.extract_strided_slice %92 {offsets = [0, 96], sizes = [2, 32], strides = [1, 1]} : vector<2x128xbf16> to vector<2x32xbf16>
    %108 = arith.negf %107 : vector<2x32xbf16>
    %109 = math.exp %108 : vector<2x32xbf16>
    %cst_27 = arith.constant 1.000000e+00 : bf16
    %110 = vector.broadcast %cst_27 : bf16 to vector<2x32xbf16>
    %111 = arith.addf %110, %109 : vector<2x32xbf16>
    %112 = arith.divf %110, %111 : vector<2x32xbf16>
    %113 = arith.extf %104 : vector<2x32xbf16> to vector<2x32xf32>
    %114 = arith.mulf %113, %79 : vector<2x32xf32>
    %115 = arith.mulf %98, %106 : vector<2x32xbf16>
    %116 = arith.extf %115 : vector<2x32xbf16> to vector<2x32xf32>
    %117 = arith.addf %114, %116 : vector<2x32xf32>
    %118 = arith.truncf %117 : vector<2x32xf32> to vector<2x32xbf16>
    %119 = math.tanh %118 : vector<2x32xbf16>
    %120 = arith.mulf %112, %119 : vector<2x32xbf16>
    %c3_i32 = arith.constant 3 : i32
    %c7_i32_28 = arith.constant 7 : i32
    %121 = arith.subi %c7_i32_28, %c3_i32 : i32
    %cst_29 = arith.constant dense<0.000000e+00> : vector<2x128xf32>
    %122 = tpu.matmul %120, %3, %cst_29 {dimension_numbers = #tpu.dot_dimension_numbers<[1], [0], [0], [1], [0, 0, 1, 1], [], []>} : vector<2x32xbf16>, vector<32x128xbf16>, vector<2x128xf32> -> vector<2x128xf32>
    %123 = arith.index_cast %121 : i32 to index
    %c0_30 = arith.constant 0 : index
    %c0_31 = arith.constant 0 : index
    %124 = vector.load %arg1[%123, %c0_30, %c0_31] : memref<8x2x128xbf16, #tpu.memory_space<vmem>>, vector<1x2x128xbf16>
    %125 = vector.shape_cast %124 : vector<1x2x128xbf16> to vector<2x128xbf16>
    %126 = arith.extf %125 : vector<2x128xbf16> to vector<2x128xf32>
    %127 = arith.addf %122, %126 : vector<2x128xf32>
    %128 = vector.broadcast %4 : vector<1x128xf32> to vector<2x128xf32>
    %129 = arith.addf %127, %128 : vector<2x128xf32>
    %130 = arith.truncf %129 : vector<2x128xf32> to vector<2x128xbf16>
    %131 = vector.extract_strided_slice %130 {offsets = [0, 0], sizes = [2, 32], strides = [1, 1]} : vector<2x128xbf16> to vector<2x32xbf16>
    %132 = arith.negf %131 : vector<2x32xbf16>
    %133 = math.exp %132 : vector<2x32xbf16>
    %cst_32 = arith.constant 1.000000e+00 : bf16
    %134 = vector.broadcast %cst_32 : bf16 to vector<2x32xbf16>
    %135 = arith.addf %134, %133 : vector<2x32xbf16>
    %136 = arith.divf %134, %135 : vector<2x32xbf16>
    %137 = vector.extract_strided_slice %130 {offsets = [0, 32], sizes = [2, 32], strides = [1, 1]} : vector<2x128xbf16> to vector<2x32xbf16>
    %138 = arith.negf %137 : vector<2x32xbf16>
    %139 = math.exp %138 : vector<2x32xbf16>
    %cst_33 = arith.constant 1.000000e+00 : bf16
    %140 = vector.broadcast %cst_33 : bf16 to vector<2x32xbf16>
    %141 = arith.addf %140, %139 : vector<2x32xbf16>
    %142 = arith.divf %140, %141 : vector<2x32xbf16>
    %143 = vector.extract_strided_slice %130 {offsets = [0, 64], sizes = [2, 32], strides = [1, 1]} : vector<2x128xbf16> to vector<2x32xbf16>
    %144 = math.tanh %143 : vector<2x32xbf16>
    %145 = vector.extract_strided_slice %130 {offsets = [0, 96], sizes = [2, 32], strides = [1, 1]} : vector<2x128xbf16> to vector<2x32xbf16>
    %146 = arith.negf %145 : vector<2x32xbf16>
    %147 = math.exp %146 : vector<2x32xbf16>
    %cst_34 = arith.constant 1.000000e+00 : bf16
    %148 = vector.broadcast %cst_34 : bf16 to vector<2x32xbf16>
    %149 = arith.addf %148, %147 : vector<2x32xbf16>
    %150 = arith.divf %148, %149 : vector<2x32xbf16>
    %151 = arith.extf %142 : vector<2x32xbf16> to vector<2x32xf32>
    %152 = arith.mulf %151, %117 : vector<2x32xf32>
    %153 = arith.mulf %136, %144 : vector<2x32xbf16>
    %154 = arith.extf %153 : vector<2x32xbf16> to vector<2x32xf32>
    %155 = arith.addf %152, %154 : vector<2x32xf32>
    %156 = arith.truncf %155 : vector<2x32xf32> to vector<2x32xbf16>
    %157 = math.tanh %156 : vector<2x32xbf16>
    %158 = arith.mulf %150, %157 : vector<2x32xbf16>
    %c4_i32 = arith.constant 4 : i32
    %c7_i32_35 = arith.constant 7 : i32
    %159 = arith.subi %c7_i32_35, %c4_i32 : i32
    %cst_36 = arith.constant dense<0.000000e+00> : vector<2x128xf32>
    %160 = tpu.matmul %158, %3, %cst_36 {dimension_numbers = #tpu.dot_dimension_numbers<[1], [0], [0], [1], [0, 0, 1, 1], [], []>} : vector<2x32xbf16>, vector<32x128xbf16>, vector<2x128xf32> -> vector<2x128xf32>
    %161 = arith.index_cast %159 : i32 to index
    %c0_37 = arith.constant 0 : index
    %c0_38 = arith.constant 0 : index
    %162 = vector.load %arg1[%161, %c0_37, %c0_38] : memref<8x2x128xbf16, #tpu.memory_space<vmem>>, vector<1x2x128xbf16>
    %163 = vector.shape_cast %162 : vector<1x2x128xbf16> to vector<2x128xbf16>
    %164 = arith.extf %163 : vector<2x128xbf16> to vector<2x128xf32>
    %165 = arith.addf %160, %164 : vector<2x128xf32>
    %166 = vector.broadcast %4 : vector<1x128xf32> to vector<2x128xf32>
    %167 = arith.addf %165, %166 : vector<2x128xf32>
    %168 = arith.truncf %167 : vector<2x128xf32> to vector<2x128xbf16>
    %169 = vector.extract_strided_slice %168 {offsets = [0, 0], sizes = [2, 32], strides = [1, 1]} : vector<2x128xbf16> to vector<2x32xbf16>
    %170 = arith.negf %169 : vector<2x32xbf16>
    %171 = math.exp %170 : vector<2x32xbf16>
    %cst_39 = arith.constant 1.000000e+00 : bf16
    %172 = vector.broadcast %cst_39 : bf16 to vector<2x32xbf16>
    %173 = arith.addf %172, %171 : vector<2x32xbf16>
    %174 = arith.divf %172, %173 : vector<2x32xbf16>
    %175 = vector.extract_strided_slice %168 {offsets = [0, 32], sizes = [2, 32], strides = [1, 1]} : vector<2x128xbf16> to vector<2x32xbf16>
    %176 = arith.negf %175 : vector<2x32xbf16>
    %177 = math.exp %176 : vector<2x32xbf16>
    %cst_40 = arith.constant 1.000000e+00 : bf16
    %178 = vector.broadcast %cst_40 : bf16 to vector<2x32xbf16>
    %179 = arith.addf %178, %177 : vector<2x32xbf16>
    %180 = arith.divf %178, %179 : vector<2x32xbf16>
    %181 = vector.extract_strided_slice %168 {offsets = [0, 64], sizes = [2, 32], strides = [1, 1]} : vector<2x128xbf16> to vector<2x32xbf16>
    %182 = math.tanh %181 : vector<2x32xbf16>
    %183 = vector.extract_strided_slice %168 {offsets = [0, 96], sizes = [2, 32], strides = [1, 1]} : vector<2x128xbf16> to vector<2x32xbf16>
    %184 = arith.negf %183 : vector<2x32xbf16>
    %185 = math.exp %184 : vector<2x32xbf16>
    %cst_41 = arith.constant 1.000000e+00 : bf16
    %186 = vector.broadcast %cst_41 : bf16 to vector<2x32xbf16>
    %187 = arith.addf %186, %185 : vector<2x32xbf16>
    %188 = arith.divf %186, %187 : vector<2x32xbf16>
    %189 = arith.extf %180 : vector<2x32xbf16> to vector<2x32xf32>
    %190 = arith.mulf %189, %155 : vector<2x32xf32>
    %191 = arith.mulf %174, %182 : vector<2x32xbf16>
    %192 = arith.extf %191 : vector<2x32xbf16> to vector<2x32xf32>
    %193 = arith.addf %190, %192 : vector<2x32xf32>
    %194 = arith.truncf %193 : vector<2x32xf32> to vector<2x32xbf16>
    %195 = math.tanh %194 : vector<2x32xbf16>
    %196 = arith.mulf %188, %195 : vector<2x32xbf16>
    %c5_i32 = arith.constant 5 : i32
    %c7_i32_42 = arith.constant 7 : i32
    %197 = arith.subi %c7_i32_42, %c5_i32 : i32
    %cst_43 = arith.constant dense<0.000000e+00> : vector<2x128xf32>
    %198 = tpu.matmul %196, %3, %cst_43 {dimension_numbers = #tpu.dot_dimension_numbers<[1], [0], [0], [1], [0, 0, 1, 1], [], []>} : vector<2x32xbf16>, vector<32x128xbf16>, vector<2x128xf32> -> vector<2x128xf32>
    %199 = arith.index_cast %197 : i32 to index
    %c0_44 = arith.constant 0 : index
    %c0_45 = arith.constant 0 : index
    %200 = vector.load %arg1[%199, %c0_44, %c0_45] : memref<8x2x128xbf16, #tpu.memory_space<vmem>>, vector<1x2x128xbf16>
    %201 = vector.shape_cast %200 : vector<1x2x128xbf16> to vector<2x128xbf16>
    %202 = arith.extf %201 : vector<2x128xbf16> to vector<2x128xf32>
    %203 = arith.addf %198, %202 : vector<2x128xf32>
    %204 = vector.broadcast %4 : vector<1x128xf32> to vector<2x128xf32>
    %205 = arith.addf %203, %204 : vector<2x128xf32>
    %206 = arith.truncf %205 : vector<2x128xf32> to vector<2x128xbf16>
    %207 = vector.extract_strided_slice %206 {offsets = [0, 0], sizes = [2, 32], strides = [1, 1]} : vector<2x128xbf16> to vector<2x32xbf16>
    %208 = arith.negf %207 : vector<2x32xbf16>
    %209 = math.exp %208 : vector<2x32xbf16>
    %cst_46 = arith.constant 1.000000e+00 : bf16
    %210 = vector.broadcast %cst_46 : bf16 to vector<2x32xbf16>
    %211 = arith.addf %210, %209 : vector<2x32xbf16>
    %212 = arith.divf %210, %211 : vector<2x32xbf16>
    %213 = vector.extract_strided_slice %206 {offsets = [0, 32], sizes = [2, 32], strides = [1, 1]} : vector<2x128xbf16> to vector<2x32xbf16>
    %214 = arith.negf %213 : vector<2x32xbf16>
    %215 = math.exp %214 : vector<2x32xbf16>
    %cst_47 = arith.constant 1.000000e+00 : bf16
    %216 = vector.broadcast %cst_47 : bf16 to vector<2x32xbf16>
    %217 = arith.addf %216, %215 : vector<2x32xbf16>
    %218 = arith.divf %216, %217 : vector<2x32xbf16>
    %219 = vector.extract_strided_slice %206 {offsets = [0, 64], sizes = [2, 32], strides = [1, 1]} : vector<2x128xbf16> to vector<2x32xbf16>
    %220 = math.tanh %219 : vector<2x32xbf16>
    %221 = vector.extract_strided_slice %206 {offsets = [0, 96], sizes = [2, 32], strides = [1, 1]} : vector<2x128xbf16> to vector<2x32xbf16>
    %222 = arith.negf %221 : vector<2x32xbf16>
    %223 = math.exp %222 : vector<2x32xbf16>
    %cst_48 = arith.constant 1.000000e+00 : bf16
    %224 = vector.broadcast %cst_48 : bf16 to vector<2x32xbf16>
    %225 = arith.addf %224, %223 : vector<2x32xbf16>
    %226 = arith.divf %224, %225 : vector<2x32xbf16>
    %227 = arith.extf %218 : vector<2x32xbf16> to vector<2x32xf32>
    %228 = arith.mulf %227, %193 : vector<2x32xf32>
    %229 = arith.mulf %212, %220 : vector<2x32xbf16>
    %230 = arith.extf %229 : vector<2x32xbf16> to vector<2x32xf32>
    %231 = arith.addf %228, %230 : vector<2x32xf32>
    %232 = arith.truncf %231 : vector<2x32xf32> to vector<2x32xbf16>
    %233 = math.tanh %232 : vector<2x32xbf16>
    %234 = arith.mulf %226, %233 : vector<2x32xbf16>
    %c6_i32 = arith.constant 6 : i32
    %c7_i32_49 = arith.constant 7 : i32
    %235 = arith.subi %c7_i32_49, %c6_i32 : i32
    %cst_50 = arith.constant dense<0.000000e+00> : vector<2x128xf32>
    %236 = tpu.matmul %234, %3, %cst_50 {dimension_numbers = #tpu.dot_dimension_numbers<[1], [0], [0], [1], [0, 0, 1, 1], [], []>} : vector<2x32xbf16>, vector<32x128xbf16>, vector<2x128xf32> -> vector<2x128xf32>
    %237 = arith.index_cast %235 : i32 to index
    %c0_51 = arith.constant 0 : index
    %c0_52 = arith.constant 0 : index
    %238 = vector.load %arg1[%237, %c0_51, %c0_52] : memref<8x2x128xbf16, #tpu.memory_space<vmem>>, vector<1x2x128xbf16>
    %239 = vector.shape_cast %238 : vector<1x2x128xbf16> to vector<2x128xbf16>
    %240 = arith.extf %239 : vector<2x128xbf16> to vector<2x128xf32>
    %241 = arith.addf %236, %240 : vector<2x128xf32>
    %242 = vector.broadcast %4 : vector<1x128xf32> to vector<2x128xf32>
    %243 = arith.addf %241, %242 : vector<2x128xf32>
    %244 = arith.truncf %243 : vector<2x128xf32> to vector<2x128xbf16>
    %245 = vector.extract_strided_slice %244 {offsets = [0, 0], sizes = [2, 32], strides = [1, 1]} : vector<2x128xbf16> to vector<2x32xbf16>
    %246 = arith.negf %245 : vector<2x32xbf16>
    %247 = math.exp %246 : vector<2x32xbf16>
    %cst_53 = arith.constant 1.000000e+00 : bf16
    %248 = vector.broadcast %cst_53 : bf16 to vector<2x32xbf16>
    %249 = arith.addf %248, %247 : vector<2x32xbf16>
    %250 = arith.divf %248, %249 : vector<2x32xbf16>
    %251 = vector.extract_strided_slice %244 {offsets = [0, 32], sizes = [2, 32], strides = [1, 1]} : vector<2x128xbf16> to vector<2x32xbf16>
    %252 = arith.negf %251 : vector<2x32xbf16>
    %253 = math.exp %252 : vector<2x32xbf16>
    %cst_54 = arith.constant 1.000000e+00 : bf16
    %254 = vector.broadcast %cst_54 : bf16 to vector<2x32xbf16>
    %255 = arith.addf %254, %253 : vector<2x32xbf16>
    %256 = arith.divf %254, %255 : vector<2x32xbf16>
    %257 = vector.extract_strided_slice %244 {offsets = [0, 64], sizes = [2, 32], strides = [1, 1]} : vector<2x128xbf16> to vector<2x32xbf16>
    %258 = math.tanh %257 : vector<2x32xbf16>
    %259 = vector.extract_strided_slice %244 {offsets = [0, 96], sizes = [2, 32], strides = [1, 1]} : vector<2x128xbf16> to vector<2x32xbf16>
    %260 = arith.negf %259 : vector<2x32xbf16>
    %261 = math.exp %260 : vector<2x32xbf16>
    %cst_55 = arith.constant 1.000000e+00 : bf16
    %262 = vector.broadcast %cst_55 : bf16 to vector<2x32xbf16>
    %263 = arith.addf %262, %261 : vector<2x32xbf16>
    %264 = arith.divf %262, %263 : vector<2x32xbf16>
    %265 = arith.extf %256 : vector<2x32xbf16> to vector<2x32xf32>
    %266 = arith.mulf %265, %231 : vector<2x32xf32>
    %267 = arith.mulf %250, %258 : vector<2x32xbf16>
    %268 = arith.extf %267 : vector<2x32xbf16> to vector<2x32xf32>
    %269 = arith.addf %266, %268 : vector<2x32xf32>
    %270 = arith.truncf %269 : vector<2x32xf32> to vector<2x32xbf16>
    %271 = math.tanh %270 : vector<2x32xbf16>
    %272 = arith.mulf %264, %271 : vector<2x32xbf16>
    %c7_i32_56 = arith.constant 7 : i32
    %c7_i32_57 = arith.constant 7 : i32
    %273 = arith.subi %c7_i32_57, %c7_i32_56 : i32
    %cst_58 = arith.constant dense<0.000000e+00> : vector<2x128xf32>
    %274 = tpu.matmul %272, %3, %cst_58 {dimension_numbers = #tpu.dot_dimension_numbers<[1], [0], [0], [1], [0, 0, 1, 1], [], []>} : vector<2x32xbf16>, vector<32x128xbf16>, vector<2x128xf32> -> vector<2x128xf32>
    %275 = arith.index_cast %273 : i32 to index
    %c0_59 = arith.constant 0 : index
    %c0_60 = arith.constant 0 : index
    %276 = vector.load %arg1[%275, %c0_59, %c0_60] : memref<8x2x128xbf16, #tpu.memory_space<vmem>>, vector<1x2x128xbf16>
    %277 = vector.shape_cast %276 : vector<1x2x128xbf16> to vector<2x128xbf16>
    %278 = arith.extf %277 : vector<2x128xbf16> to vector<2x128xf32>
    %279 = arith.addf %274, %278 : vector<2x128xf32>
    %280 = vector.broadcast %4 : vector<1x128xf32> to vector<2x128xf32>
    %281 = arith.addf %279, %280 : vector<2x128xf32>
    %282 = arith.truncf %281 : vector<2x128xf32> to vector<2x128xbf16>
    %283 = vector.extract_strided_slice %282 {offsets = [0, 0], sizes = [2, 32], strides = [1, 1]} : vector<2x128xbf16> to vector<2x32xbf16>
    %284 = arith.negf %283 : vector<2x32xbf16>
    %285 = math.exp %284 : vector<2x32xbf16>
    %cst_61 = arith.constant 1.000000e+00 : bf16
    %286 = vector.broadcast %cst_61 : bf16 to vector<2x32xbf16>
    %287 = arith.addf %286, %285 : vector<2x32xbf16>
    %288 = arith.divf %286, %287 : vector<2x32xbf16>
    %289 = vector.extract_strided_slice %282 {offsets = [0, 32], sizes = [2, 32], strides = [1, 1]} : vector<2x128xbf16> to vector<2x32xbf16>
    %290 = arith.negf %289 : vector<2x32xbf16>
    %291 = math.exp %290 : vector<2x32xbf16>
    %cst_62 = arith.constant 1.000000e+00 : bf16
    %292 = vector.broadcast %cst_62 : bf16 to vector<2x32xbf16>
    %293 = arith.addf %292, %291 : vector<2x32xbf16>
    %294 = arith.divf %292, %293 : vector<2x32xbf16>
    %295 = vector.extract_strided_slice %282 {offsets = [0, 64], sizes = [2, 32], strides = [1, 1]} : vector<2x128xbf16> to vector<2x32xbf16>
    %296 = math.tanh %295 : vector<2x32xbf16>
    %297 = vector.extract_strided_slice %282 {offsets = [0, 96], sizes = [2, 32], strides = [1, 1]} : vector<2x128xbf16> to vector<2x32xbf16>
    %298 = arith.negf %297 : vector<2x32xbf16>
    %299 = math.exp %298 : vector<2x32xbf16>
    %cst_63 = arith.constant 1.000000e+00 : bf16
    %300 = vector.broadcast %cst_63 : bf16 to vector<2x32xbf16>
    %301 = arith.addf %300, %299 : vector<2x32xbf16>
    %302 = arith.divf %300, %301 : vector<2x32xbf16>
    %303 = arith.extf %294 : vector<2x32xbf16> to vector<2x32xf32>
    %304 = arith.mulf %303, %269 : vector<2x32xf32>
    %305 = arith.mulf %288, %296 : vector<2x32xbf16>
    %306 = arith.extf %305 : vector<2x32xbf16> to vector<2x32xf32>
    %307 = arith.addf %304, %306 : vector<2x32xf32>
    %308 = arith.truncf %307 : vector<2x32xf32> to vector<2x32xbf16>
    %309 = math.tanh %308 : vector<2x32xbf16>
    %310 = arith.mulf %302, %309 : vector<2x32xbf16>
    %c8_i32 = arith.constant 8 : i32
    %c0_64 = arith.constant 0 : index
    %c0_65 = arith.constant 0 : index
    %311 = vector.load %arg6[%c0_64, %c0_65] : memref<2x32xbf16, #tpu.memory_space<vmem>>, vector<2x32xbf16>
    tpu.vector_store %arg6[%c0_64, %c0_65], %310 {strides = array<i32>} : memref<2x32xbf16, #tpu.memory_space<vmem>>, vector<2x32xbf16>,
    %c0_66 = arith.constant 0 : index
    %c0_67 = arith.constant 0 : index
    %312 = vector.load %arg7[%c0_66, %c0_67] : memref<2x32xf32, #tpu.memory_space<vmem>>, vector<2x32xf32>
    tpu.vector_store %arg7[%c0_66, %c0_67], %307 {strides = array<i32>} : memref<2x32xf32, #tpu.memory_space<vmem>>, vector<2x32xf32>,
    %313 = arith.extf %310 : vector<2x32xbf16> to vector<2x32xf32>
    %c0_68 = arith.constant 0 : index
    %c0_69 = arith.constant 0 : index
    %314 = vector.load %arg4[%c0_68, %c0_69] : memref<2x32xf32, #tpu.memory_space<vmem>>, vector<2x32xf32>
    tpu.vector_store %arg4[%c0_68, %c0_69], %313 {strides = array<i32>} : memref<2x32xf32, #tpu.memory_space<vmem>>, vector<2x32xf32>,
    return
  }
  func.func @transform_0(%arg0: i32) -> (i32, i32, i32) {
    %c0_i32 = arith.constant 0 : i32
    %0 = arith.subi %c0_i32, %arg0 : i32
    %c0_i32_0 = arith.constant 0 : i32
    %c0_i32_1 = arith.constant 0 : i32
    %c0_i32_2 = arith.constant 0 : i32
    return %0, %c0_i32_0, %c0_i32_1 : i32, i32, i32
  }
  func.func @transform_1(%arg0: i32) -> (i32, i32) {
    %c0_i32 = arith.constant 0 : i32
    %c0_i32_0 = arith.constant 0 : i32
    %c0_i32_1 = arith.constant 0 : i32
    return %c0_i32, %c0_i32_0 : i32, i32
  }
  func.func @transform_3(%arg0: i32) -> (i32, i32) {
    %c0_i32 = arith.constant 0 : i32
    %c0_i32_0 = arith.constant 0 : i32
    %c0_i32_1 = arith.constant 0 : i32
    return %c0_i32, %c0_i32_0 : i32, i32
  }
}

module attributes {stable_mosaic.version = 11 : i64} {
  func.func @_relu_fc_kernel(%arg0: memref<2x64xf32, #tpu.memory_space<vmem>>, %arg1: memref<64x128xbf16, #tpu.memory_space<vmem>>, %arg2: memref<2x128xf32, #tpu.memory_space<vmem>>) attributes {dimension_semantics = [], scalar_prefetch = 0 : i64, scratch_operands = 0 : i64, tpu.core_type = #tpu.core_type<tc>} {
    %c0 = arith.constant 0 : index
    %c0_0 = arith.constant 0 : index
    %0 = vector.load %arg0[%c0, %c0_0] : memref<2x64xf32, #tpu.memory_space<vmem>>, vector<2x64xf32>
    %cst = arith.constant 0.000000e+00 : f32
    %1 = vector.broadcast %cst : f32 to vector<2x64xf32>
    %2 = arith.maximumf %0, %1 : vector<2x64xf32>
    %3 = arith.truncf %2 : vector<2x64xf32> to vector<2x64xbf16>
    %c0_1 = arith.constant 0 : index
    %c0_2 = arith.constant 0 : index
    %4 = vector.load %arg1[%c0_1, %c0_2] : memref<64x128xbf16, #tpu.memory_space<vmem>>, vector<64x128xbf16>
    %cst_3 = arith.constant dense<0.000000e+00> : vector<2x128xf32>
    %5 = tpu.matmul %3, %4, %cst_3 {dimension_numbers = #tpu.dot_dimension_numbers<[1], [0], [0], [1], [0, 0, 1, 1], [], []>} : vector<2x64xbf16>, vector<64x128xbf16>, vector<2x128xf32> -> vector<2x128xf32>
    %c0_4 = arith.constant 0 : index
    %c0_5 = arith.constant 0 : index
    %6 = vector.load %arg2[%c0_4, %c0_5] : memref<2x128xf32, #tpu.memory_space<vmem>>, vector<2x128xf32>
    tpu.vector_store %arg2[%c0_4, %c0_5], %5 {strides = array<i32>} : memref<2x128xf32, #tpu.memory_space<vmem>>, vector<2x128xf32>,
    return
  }
}

</mosaic_0001>

<llo_original>
// kernel: my_model_forward.5
$region0: #{my_model_forward.5}
  #allocation0 [shape = 'u32[]', space=smem, size = 0x4, offset = 0x4, fixed_abs, tag = 'smem constant byte address 0x4 - core index']
  #allocation1 [shape = 'u32[144,128]{1,0:T(1,128)}', space=vmem, size = 0x12000, scoped, tag = 'internal scratch']
  %s0 = inlined_call_operand.vmem [shape: f32[2,64], index: 0, kind: input, shape index: {}]
  %s1 = inlined_call_operand.vmem [shape: bf16[64,128], index: 1, kind: input, shape index: {}]
  %s2 = inlined_call_operand.hbm [shape: f32[2,128], index: 2, kind: output, shape index: {}]
  %s3 = sld [smem:[#allocation0]]
  $region18: #{my_model_forward.5} parent=0
    _
  %s5 = ssub.s32 1, %s3
  %s6 = scalar_select 0, %s5, %s3
  $region1: #{my_model_forward.5} parent=0
    #allocation2 [shape = 'u8[1024]{0}', space=vmem, size = 0x400, scoped, tag = 'output window, operand 0, single buffered']
    #allocation3 [shape = 's32[1]{0}', space=sflag, size = 0x4, scoped, tag = 'scoped memory for my_model_forward.5']
    %7 = vsyncpa [#allocation3], 0
    // Predicated region
    $region2: #{my_model_forward.5} parent=1 // pred_check
      _
    $region3: #{my_model_forward.5} parent=1 // pred_check_branch
      %9 = sbr.rel (0) target = $region5
    $region4: #{my_model_forward.5} parent=1 // pred_region
      _
    $region5: #{my_model_forward.5} parent=1 // pred_fallthru
      _
    // Predicated region
    $region6: #{my_model_forward.5} parent=1 // pred_check
      _
    $region7: #{my_model_forward.5} parent=1 // pred_check_branch
      %11 = sbr.rel (0) target = $region9
    $region8: #{my_model_forward.5} parent=1 // pred_region
      _
    $region9: #{my_model_forward.5} parent=1 // pred_fallthru
      _
    %v13 = vld [vmem:[%s0] sm:$0x3]
    %v14 = vmax.f32 %v13, 0.0
    %v15 = vpack.c.bf16 %v14, %v14
    %v16 = vld [vmem:[%s1] sm:$0xf]
    %v17 = vld [vmem:[%s1 + $0x4] sm:$0xf]
    %v18 = vld [vmem:[%s1 + $0x8] sm:$0xf]
    %v19 = vld [vmem:[%s1 + $0xc] sm:$0xf]
    %v20 = vld [vmem:[%s1 + $0x10] sm:$0xf]
    %v21 = vld [vmem:[%s1 + $0x14] sm:$0xf]
    %v22 = vld [vmem:[%s1 + $0x18] sm:$0xf]
    %v23 = vld [vmem:[%s1 + $0x1c] sm:$0xf]
    %v32 = vunpack.c.l.b16 %v16
    %v33 = vunpack.c.l.b16 %v17
    %v34 = vunpack.c.l.b16 %v18
    %v35 = vunpack.c.l.b16 %v19
    %v36 = vunpack.c.l.b16 %v20
    %v37 = vunpack.c.l.b16 %v21
    %v38 = vunpack.c.l.b16 %v22
    %v39 = vunpack.c.l.b16 %v23
    %v40 = vpack.c.b16 %v33, %v32
    %v41 = vpack.c.b16 %v35, %v34
    %v42 = vpack.c.b16 %v37, %v36
    %v43 = vpack.c.b16 %v39, %v38
    %vm48 = vcmask 523264
    %v50 = vsel %vm48, %v15, 0
    %52 = vmatprep.subr.bf16.mxu0 0
    %53 = vmatpush1.bf16.msra.mxu0 0
    %54 = vmatprep.subr.bf16.mxu0 0
    %55 = vmatpush1.bf16.msra.mxu0 0
    %56 = vmatprep.subr.bf16.mxu0 0
    %57 = vmatpush1.bf16.msra.mxu0 0
    %58 = vmatprep.subr.bf16.mxu0 0
    %59 = vmatpush1.bf16.msra.mxu0 0
    %60 = vmatprep.subr.bf16.mxu0 0
    %61 = vmatpush1.bf16.msra.mxu0 %v43
    %62 = vmatprep.subr.bf16.mxu0 0
    %63 = vmatpush1.bf16.msra.mxu0 %v42
    %64 = vmatprep.subr.bf16.mxu0 0
    %65 = vmatpush1.bf16.msra.mxu0 %v41
    %66 = vmatprep.subr.bf16.mxu0 0
    %67 = vmatpush1.bf16.msra.mxu0 %v40
    %68 = vmatprep.subr.bf16.mxu0 0
    %69 = vmatpush2.bf16.msra.mxu0 0
    %70 = vmatprep.subr.bf16.mxu0 0
    %71 = vmatpush2.bf16.msra.mxu0 0
    %72 = vmatprep.subr.bf16.mxu0 0
    %73 = vmatpush2.bf16.msra.mxu0 0
    %74 = vmatprep.subr.bf16.mxu0 0
    %75 = vmatpush2.bf16.msra.mxu0 0
    %76 = vmatprep.subr.bf16.mxu0 0
    %77 = vmatpush2.bf16.msra.mxu0 0
    %78 = vmatprep.subr.bf16.mxu0 0
    %79 = vmatpush2.bf16.msra.mxu0 0
    %80 = vmatprep.subr.bf16.mxu0 0
    %81 = vmatpush2.bf16.msra.mxu0 0
    %82 = vmatprep.subr.bf16.mxu0 0
    %83 = vmatpush2.bf16.msra.mxu0 0
    %84 = vmatprep.mubr.bf16.mxu0 0
    %85 = vmatmul.mubr.bf16.gmra.mxu0 %v50
    %v86 = vpop.f32.mrf.mxu0
    %v87 = vadd.f32 0.0, %v86
    %v88 = vpop.f32.mrf.mxu0
    %v89 = vpop.f32.mrf.mxu0
    %v90 = vpop.f32.mrf.mxu0
    %91 = vdwg.mxu0
    %92 = vst [vmem:[#allocation2] sm:$0x3] %v87
    // Predicated region
    $region10: #{my_model_forward.5} parent=1 // pred_check
      _
    $region11: #{my_model_forward.5} parent=1 // pred_check_branch
      %94 = sbr.rel (0) target = $region13
    $region12: #{my_model_forward.5} parent=1 // pred_region
      %s96 = ssub.s32 32, 32
      %97 = vsyncadd [#allocation3], %s96
      %s99 = sshll.u32 [#allocation2], 4
      %s100 = int_to_ptr.vmem [resolvable:$true] %s99
      %102 = dma.vmem_to_hbm [thread:$0]  %s100, 32, %s2, [#allocation3]
    $region13: #{my_model_forward.5} parent=1 // pred_fallthru
      _
    // Predicated region
    $region14: #{my_model_forward.5} parent=1 // pred_check
      _
    $region15: #{my_model_forward.5} parent=1 // pred_check_branch
      %104 = sbr.rel (0) target = $region17
    $region16: #{my_model_forward.5} parent=1 // pred_region
      %105 = dma.done [#allocation3], 32
    $region17: #{my_model_forward.5} parent=1 // pred_fallthru
      _
    %106 = vsyncpa [#allocation3], 1

// kernel: my_model_forward.3
$region0: #{my_model_forward.3}
  #allocation0 [shape = 'u32[]', space=smem, size = 0x4, offset = 0x4, fixed_abs, tag = 'smem constant byte address 0x4 - core index']
  #allocation1 [shape = 'u32[144,128]{1,0:T(1,128)}', space=vmem, size = 0x12000, scoped, tag = 'internal scratch']
  #allocation2 [shape = 'bf16[2,32,128]{2,1,0:T(8,128)(2,1)}', space=vmem, size = 0x4000, scoped, tag = 'scratch operand']
  #allocation3 [shape = 'bf16[2,2,32]{2,1,0:T(2,128)(2,1)}', space=vmem, size = 0x400, scoped, tag = 'scratch operand']
  #allocation4 [shape = 'f32[2,2,32]{2,1,0:T(2,128)}', space=vmem, size = 0x800, scoped, tag = 'scratch operand']
  #allocation5 [shape = 's32[1]{0}', space=sflag, size = 0x4, scoped, tag = 'scratch operand']
  #allocation6 [shape = 's32[]', space=sflag, size = 0x4, offset = 0, fixed_abs, tag = 'sflag constant byte address 0x0 - dummy sync flag']
  %s0 = inlined_call_operand.vmem [shape: bf16[2,8,2,128], index: 0, kind: input, shape index: {}]
  %s1 = inlined_call_operand.vmem [shape: f32[2,1,128], index: 1, kind: input, shape index: {}]
  %s2 = inlined_call_operand.vmem [shape: bf16[2,32,128], index: 2, kind: input, shape index: {}]
  %s3 = inlined_call_operand.vmem [shape: bf16[2,8,2,32], index: 3, kind: output, shape index: {}]
  %s4 = sld [smem:[#allocation0]]
  $region79: #{my_model_forward.3} parent=0
    _
  %s6 = ssub.s32 1, %s4
  %s7 = scalar_select 0, %s6, %s4
  loop: start=0, step=1, limit=4
  $region2: #{my_model_forward.3} parent=0 // loop_pre_header
    _
  $region3: #{my_model_forward.3} parent=0 // loop_header
    %s9 = sphi 0, %s13
    %p10 = scmp.ge.s32.totalorder %s9, 4
    %s16 = sphi 0, %s28
    %s17 = sphi 0, %s24
    %s18 = sphi 0, %s16
    %s19 = sphi 0, %s17
    %s20 = sphi 0, %s18
    %s21 = sphi 0, %s19
    %s41 = sphi 0, %s43
    %s44 = sphi 0, %s41
    %s45 = sphi 0, %s44
    %s61 = sphi 0, %s45
    %s67 = sphi 0, %s69
    %s70 = sphi 0, %s67
    %s71 = sphi 0, %s70
    %s87 = sphi 0, %s71
    %s103 = sphi 0, %s105
    %s106 = sphi 0, %s103
    %s107 = sphi 0, %s106
    %s123 = sphi 0, %s107
  $region4: #{my_model_forward.3} parent=0 // loop_header_branch
    %12 = sbr.rel (%p10) target = $region8
  $region5: #{my_model_forward.3} parent=0 // loop_body
    %s14 = ssub.s32 %s9, 1
    %s15 = ssub.s32 %s9, 2
    %s22 = sadd.s32 1, %s17
    %p23 = scmp.ge.s32.totalorder %s22, 1
    %s24 = scalar_select %p23, 0, %s22
    %s25 = sadd.s32 1, %s16
    %s26 = scalar_select %p23, %s25, %s16
    %p27 = scmp.ge.s32.totalorder %s26, 2
    %s28 = scalar_select %p27, 0, %s26
    %s29 = smul.u32 %s17, 2
    %s30 = ssub.s32 0, %s29
    %s31 = smul.u32 %s16, %s30
    %s32 = sadd.s32 %s17, %s31
    %s33 = smul.u32 %s24, 2
    %s34 = ssub.s32 0, %s33
    %s35 = smul.u32 %s28, %s34
    %s36 = sadd.s32 %s24, %s35
    %s37 = ssub.s32 %s16, %s28
    %s38 = ssub.s32 %s32, %s36
    %s39 = sor.u32 %s37, %s38
    %p40 = scmp.eq.s32.totalorder %s39, 0
    %s42 = sadd.s32 %s41, 1
    %s43 = scalar_select %p40, %s41, %s42
    %p46 = pneg %p40
    %p47 = scmp.eq.s32.totalorder %s9, 1
    %p48 = por %p46, %p47
    %p49 = scmp.ne.s32.totalorder %s41, %s44
    %p50 = scmp.eq.s32.totalorder %s9, 0
    %p51 = por %p49, %p50
    %p52 = scmp.ne.s32.totalorder %s41, %s44
    %p53 = scmp.eq.s32.totalorder %s14, 1
    %p54 = por %p52, %p53
    %p55 = scmp.ne.s32.totalorder %s44, %s45
    %p56 = scmp.eq.s32.totalorder %s14, 0
    %p57 = por %p55, %p56
    %p58 = scmp.ne.s32.totalorder %s44, %s45
    %p59 = scmp.eq.s32.totalorder %s15, 1
    %p60 = por %p58, %p59
    %p62 = scmp.ne.s32.totalorder %s45, %s61
    %p63 = scmp.eq.s32.totalorder %s15, 0
    %p64 = por %p62, %p63
    %s65 = ssub.s32 %s16, %s28
    %p66 = scmp.eq.s32.totalorder %s65, 0
    %s68 = sadd.s32 %s67, 1
    %s69 = scalar_select %p66, %s67, %s68
    %p72 = pneg %p66
    %p73 = scmp.eq.s32.totalorder %s9, 1
    %p74 = por %p72, %p73
    %p75 = scmp.ne.s32.totalorder %s67, %s70
    %p76 = scmp.eq.s32.totalorder %s9, 0
    %p77 = por %p75, %p76
    %p78 = scmp.ne.s32.totalorder %s67, %s70
    %p79 = scmp.eq.s32.totalorder %s14, 1
    %p80 = por %p78, %p79
    %p81 = scmp.ne.s32.totalorder %s70, %s71
    %p82 = scmp.eq.s32.totalorder %s14, 0
    %p83 = por %p81, %p82
    %p84 = scmp.ne.s32.totalorder %s70, %s71
    %p85 = scmp.eq.s32.totalorder %s15, 1
    %p86 = por %p84, %p85
    %p88 = scmp.ne.s32.totalorder %s71, %s87
    %p89 = scmp.eq.s32.totalorder %s15, 0
    %p90 = por %p88, %p89
    %s91 = smul.u32 %s17, 2
    %s92 = ssub.s32 0, %s91
    %s93 = smul.u32 %s16, %s92
    %s94 = sadd.s32 %s17, %s93
    %s95 = smul.u32 %s24, 2
    %s96 = ssub.s32 0, %s95
    %s97 = smul.u32 %s28, %s96
    %s98 = sadd.s32 %s24, %s97
    %s99 = ssub.s32 %s16, %s28
    %s100 = ssub.s32 %s94, %s98
    %s101 = sor.u32 %s99, %s100
    %p102 = scmp.eq.s32.totalorder %s101, 0
    %s104 = sadd.s32 %s103, 1
    %s105 = scalar_select %p102, %s103, %s104
    %p108 = pneg %p102
    %p109 = scmp.eq.s32.totalorder %s9, 1
    %p110 = por %p108, %p109
    %p111 = scmp.ne.s32.totalorder %s103, %s106
    %p112 = scmp.eq.s32.totalorder %s9, 0
    %p113 = por %p111, %p112
    %p114 = scmp.ne.s32.totalorder %s103, %s106
    %p115 = scmp.eq.s32.totalorder %s14, 1
    %p116 = por %p114, %p115
    %p117 = scmp.ne.s32.totalorder %s106, %s107
    %p118 = scmp.eq.s32.totalorder %s14, 0
    %p119 = por %p117, %p118
    %p120 = scmp.ne.s32.totalorder %s106, %s107
    %p121 = scmp.eq.s32.totalorder %s15, 1
    %p122 = por %p120, %p121
    %p124 = scmp.ne.s32.totalorder %s107, %s123
    %p125 = scmp.eq.s32.totalorder %s15, 0
    %p126 = por %p124, %p125
    %p127 = scmp.le.s32.totalorder 1, %s9
    %p128 = scmp.lt.s32.totalorder %s9, 3
    %p129 = pnand %p127, %p128
    %p130 = pneg %p129
    // Predicated region
    $region9: #{my_model_forward.3} parent=5 // pred_check
      _
    $region10: #{my_model_forward.3} parent=5 // pred_check_branch
      %132 = sbr.rel (%p129) target = $region12
    $region11: #{my_model_forward.3} parent=5 // pred_region
      %s133 = ssub.s32 %s9, 1
    $region12: #{my_model_forward.3} parent=5 // pred_fallthru
      _
    %p134 = scmp.lt.s32.totalorder %s9, 2
    // Predicated region
    $region13: #{my_model_forward.3} parent=5 // pred_check
      %p135 = pneg %p134
    $region14: #{my_model_forward.3} parent=5 // pred_check_branch
      %137 = sbr.rel (%p135) target = $region16
    $region15: #{my_model_forward.3} parent=5 // pred_region
      // Predicated region
      $region17: #{my_model_forward.3} parent=15 // pred_check
        %p138 = pneg %p51
      $region18: #{my_model_forward.3} parent=15 // pred_check_branch
        %140 = sbr.rel (%p138) target = $region20
      $region19: #{my_model_forward.3} parent=15 // pred_region
        %s141 = smul.u32 %s17, 2
        %s142 = ssub.s32 0, %s141
        %s143 = smul.u32 %s16, %s142
        %s144 = sadd.s32 %s17, %s143
        %s145 = smul.u32 8, %s144
        %p146 = scmp.lt.s32.totalorder %s16, 1
        %s147 = scalar_select %p146, %s16, 1
        %p148 = scmp.lt.s32.totalorder %s145, 7
        %s149 = scalar_select %p148, %s145, 7
        %s150 = smul.addr %s147, 8
        %s151 = sadd.s32 %s149, %s150
        %s152 = scalar_lea.vmem %s0, %s151
        %s153 = smul.u32 %s17, 2
        %s154 = ssub.s32 0, %s153
        %s155 = smul.u32 %s16, %s154
        %s156 = sadd.s32 %s17, %s155
        %s157 = smul.u32 8, %s156
      $region20: #{my_model_forward.3} parent=15 // pred_fallthru
        _
      // Predicated region
      $region21: #{my_model_forward.3} parent=15 // pred_check
        %p158 = pneg %p77
      $region22: #{my_model_forward.3} parent=15 // pred_check_branch
        %160 = sbr.rel (%p158) target = $region24
      $region23: #{my_model_forward.3} parent=15 // pred_region
        %p161 = scmp.lt.s32.totalorder %s16, 1
        %s162 = scalar_select %p161, %s16, 1
        %s163 = scalar_lea.vmem %s1, %s162
      $region24: #{my_model_forward.3} parent=15 // pred_fallthru
        _
    $region16: #{my_model_forward.3} parent=5 // pred_fallthru
      _
    %p164 = scmp.le.s32.totalorder 1, %s9
    %p165 = scmp.lt.s32.totalorder %s9, 3
    %p166 = pnand %p164, %p165
    %p167 = pneg %p166
    // Predicated region
    $region25: #{my_model_forward.3} parent=5 // pred_check
      _
    $region26: #{my_model_forward.3} parent=5 // pred_check_branch
      %169 = sbr.rel (%p166) target = $region28
    $region27: #{my_model_forward.3} parent=5 // pred_region
      %s170 = ssub.s32 %s9, 1
      %s171 = smul.u32 %s19, 2
      %s172 = ssub.s32 0, %s171
      %s173 = smul.u32 %s18, %s172
      %s174 = sadd.s32 %s19, %s173
      %s175 = smul.u32 8, %s174
      %p176 = scmp.lt.s32.totalorder %s18, 1
      %s177 = scalar_select %p176, %s18, 1
      %p178 = scmp.lt.s32.totalorder %s175, 7
      %s179 = scalar_select %p178, %s175, 7
      %s180 = smul.addr %s177, 8
      %s181 = sadd.s32 %s179, %s180
      %s182 = scalar_lea.vmem %s0, %s181
      %p183 = pneg %p57
      %p184 = pneg %p54
      %p185 = scmp.lt.s32.totalorder %s18, 1
      %s186 = scalar_select %p185, %s18, 1
      %s187 = scalar_lea.vmem %s1, %s186
      %p188 = pneg %p83
      %p189 = pneg %p80
      %p190 = pneg %p119
      %p191 = pneg %p116
      %s192 = smul.u32 %s19, 2
      %s193 = ssub.s32 0, %s192
      %s194 = smul.u32 %s18, %s193
      %s195 = sadd.s32 %s19, %s194
      %s196 = smul.u32 8, %s195
      %p197 = scmp.lt.s32.totalorder %s18, 1
      %s198 = scalar_select %p197, %s18, 1
      %p199 = scmp.lt.s32.totalorder %s196, 7
      %s200 = scalar_select %p199, %s196, 7
      %s201 = smul.addr %s198, 8
      %s202 = sadd.s32 %s200, %s201
      %s203 = scalar_lea.vmem %s3, %s202
      %s204 = smul.u32 %s19, 2
      %s205 = ssub.s32 0, %s204
      %s206 = smul.u32 %s18, %s205
      %s207 = sadd.s32 %s19, %s206
      %s208 = smul.u32 8, %s207
      %p209 = scmp.lt.s32.totalorder %s18, 1
      %s210 = scalar_select %p209, %s18, 1
      %p211 = scmp.lt.s32.totalorder %s208, 7
      %s212 = scalar_select %p211, %s208, 7
      %s213 = smul.addr %s210, 8
      %s214 = sadd.s32 %s212, %s213
      %s215 = scalar_lea.vmem %s0, %s214
      %s216 = smul.u32 %s19, 2
      %s217 = ssub.s32 0, %s216
      %s218 = smul.u32 %s18, %s217
      %s219 = sadd.s32 %s19, %s218
      %s220 = smul.u32 8, %s219
      %p221 = scmp.lt.s32.totalorder %s18, 1
      %s222 = scalar_select %p221, %s18, 1
      %s223 = scalar_lea.vmem %s1, %s222
      %s224 = smul.u32 %s19, 2
      %s225 = ssub.s32 0, %s224
      %s226 = smul.u32 %s18, %s225
      %s227 = sadd.s32 %s19, %s226
      %s228 = smul.u32 8, %s227
      %p229 = scmp.lt.s32.totalorder %s18, 1
      %s230 = scalar_select %p229, %s18, 1
      %p231 = scmp.lt.s32.totalorder %s228, 7
      %s232 = scalar_select %p231, %s228, 7
      %s233 = smul.addr %s230, 8
      %s234 = sadd.s32 %s232, %s233
      %s235 = scalar_lea.vmem %s3, %s234
      %s236 = smul.u32 %s19, 2
      %s237 = ssub.s32 0, %s236
      %s238 = smul.u32 %s18, %s237
      %s239 = sadd.s32 %s19, %s238
      %s240 = smul.u32 8, %s239
      %p243 = scmp.eq.s32.totalorder %s19, 0
      // Predicated region
      $region29: #{my_model_forward.3} parent=27 // pred_check
        %p244 = pneg %p243
      $region30: #{my_model_forward.3} parent=27 // pred_check_branch
        %246 = sbr.rel (%p244) target = $region32
      $region31: #{my_model_forward.3} parent=27 // pred_region
        %s247 = scalar_lea.vmem [#allocation3], %s18
        %vm248 = vcmask 253952
        %249 = vst.msk [vmem:[%s247] sm:$0x1] %vm248, 0
        %s250 = smul.u32 %s18, 2
        %s251 = scalar_lea.vmem [#allocation4], %s250
        %vm252 = vcmask 254976
        %253 = vst.msk [vmem:[%s251] sm:$0x3] %vm252, 0.0
        %s254 = smul.u32 %s18, 4
        %s255 = smul.addr %s254, 4
        %s256 = scalar_lea.vmem %s2, %s255
        %s257 = smul.addr %s254, 4
        %s258 = scalar_lea.vmem [#allocation2], %s257
        %p260 = scmp.lt.u32.totalorder 16, 8
        %p261 = pneg %p260
        // Predicated region
        $region33: #{my_model_forward.3} parent=31 // pred_check
          _
        $region34: #{my_model_forward.3} parent=31 // pred_check_branch
          %263 = sbr.rel (%p260) target = $region36
        $region35: #{my_model_forward.3} parent=31 // pred_region
          %s279 = sand.u32 16, 7
          %p280 = scmp.eq.s32.totalorder %s279, 0
          // Predicated region
          $region48: #{my_model_forward.3} parent=35 // pred_check
            %p281 = pneg %p280
          $region49: #{my_model_forward.3} parent=35 // pred_check_branch
            %283 = sbr.rel (%p281) target = $region51
          $region50: #{my_model_forward.3} parent=35 // pred_region
            loop: start=0, step=1, limit=1
            $region52: #{my_model_forward.3} parent=50 // loop_pre_header
              _
            $region53: #{my_model_forward.3} parent=50 // loop_header
              %s285 = sphi 0, %s289
              %p286 = scmp.ge.s32.totalorder %s285, 1
              %s290 = sphi %s256, %s256
              %s291 = sphi %s258, %s258
            $region54: #{my_model_forward.3} parent=50 // loop_header_branch
              %288 = sbr.rel (%p286) target = $region58
            $region55: #{my_model_forward.3} parent=50 // loop_body
              %v292 = vld [vmem:[%s290] sm:$0xff]
              %293 = vst [vmem:[%s291] sm:$0xff] %v292
              %v294 = vld [vmem:[%s290 + $0x8] sm:$0xff]
              %295 = vst [vmem:[%s291 + $0x8] sm:$0xff] %v294
            $region56: #{my_model_forward.3} parent=50 // loop_footer
              %s289 = sadd.s32 1, %s285
            $region57: #{my_model_forward.3} parent=50 // loop_footer_branch
              %284 = sbr.rel target = $region53
            $region58: #{my_model_forward.3} parent=50 // loop_exit
              _
          $region51: #{my_model_forward.3} parent=35 // pred_fallthru
            _
          %p296 = pneg %p280
          // Predicated region
          $region59: #{my_model_forward.3} parent=35 // pred_check
            _
          $region60: #{my_model_forward.3} parent=35 // pred_check_branch
            %298 = sbr.rel (%p280) target = $region62
          $region61: #{my_model_forward.3} parent=35 // pred_region
            %s299 = sand.u32 16, 7
          $region62: #{my_model_forward.3} parent=35 // pred_fallthru
            _
        $region36: #{my_model_forward.3} parent=31 // pred_fallthru
          _
        // Predicated region
        $region37: #{my_model_forward.3} parent=31 // pred_check
          %p264 = pneg %p260
        $region38: #{my_model_forward.3} parent=31 // pred_check_branch
          %266 = sbr.rel (%p264) target = $region40
        $region39: #{my_model_forward.3} parent=31 // pred_region
          %s267 = sshll.u32 1, 16
          %s268 = ssub.s32 %s267, 1
          loop: start=0, step=1, limit=1
          $region41: #{my_model_forward.3} parent=39 // loop_pre_header
            _
          $region42: #{my_model_forward.3} parent=39 // loop_header
            %s270 = sphi 0, %s274
            %p271 = scmp.ge.s32.totalorder %s270, 1
            %s275 = sphi %s256, %s256
            %s276 = sphi %s258, %s258
          $region43: #{my_model_forward.3} parent=39 // loop_header_branch
            %273 = sbr.rel (%p271) target = $region47
          $region44: #{my_model_forward.3} parent=39 // loop_body
            %v277 = vld [vmem:[%s275] sm:%s268]
            %278 = vst [vmem:[%s276] sm:%s268] %v277
          $region45: #{my_model_forward.3} parent=39 // loop_footer
            %s274 = sadd.s32 1, %s270
          $region46: #{my_model_forward.3} parent=39 // loop_footer_branch
            %269 = sbr.rel target = $region42
          $region47: #{my_model_forward.3} parent=39 // loop_exit
            _
        $region40: #{my_model_forward.3} parent=31 // pred_fallthru
          _
        // Predicated region
        $region63: #{my_model_forward.3} parent=31 // pred_check
          _
        $region64: #{my_model_forward.3} parent=31 // pred_check_branch
          %302 = sbr.rel (0) target = $region66
        $region65: #{my_model_forward.3} parent=31 // pred_region
          %303 = vsyncadd [#allocation5], 256
        $region66: #{my_model_forward.3} parent=31 // pred_fallthru
          _
        %s304 = smul.u32 4, 4
        %s305 = smul.u32 %s304, 1
        %s306 = sshll.u32 %s305, 4
        %307 = dma.done [#allocation5], %s306
      $region32: #{my_model_forward.3} parent=27 // pred_fallthru
        _
      %s308 = smul.u32 %s18, 4
      %s309 = smul.addr %s308, 4
      %s310 = scalar_lea.vmem [#allocation2], %s309
      %v311 = vld [vmem:[%s310] sm:$0xf]
      %v312 = vld [vmem:[%s310 + $0x4] sm:$0xf]
      %v313 = vld [vmem:[%s310 + $0x8] sm:$0xf]
      %v314 = vld [vmem:[%s310 + $0xc] sm:$0xf]
      %v315 = vld [vmem:[%s223] sm:$0x1]
      %s316 = scalar_lea.vmem [#allocation3], %s18
      %v317 = vld [vmem:[%s316] sm:$0x1]
      %s318 = smul.u32 %s18, 2
      %s319 = scalar_lea.vmem [#allocation4], %s318
      %v320 = vld [vmem:[%s319] sm:$0x3]
      %s321 = smul.u32 %s18, 7
      %s322 = scalar_lea.vmem %s215, %s321
      %v323 = vld [vmem:[%s322] sm:$0x1]
      %v324 = vunpack.c.l.bf16 %v323
      %v329 = vunpack.c.l.b16 %v311
      %v330 = vunpack.c.l.b16 %v312
      %v331 = vunpack.c.l.b16 %v313
      %v332 = vunpack.c.l.b16 %v314
      %v333 = vpack.c.b16 %v330, %v329
      %v334 = vpack.c.b16 %v332, %v331
      %vm337 = vcmask 261120
      %v339 = vsel %vm337, %v317, 0
      %341 = vmatprep.subr.bf16.mxu0 0
      %342 = vmatpush1.bf16.msra.mxu0 0
      %343 = vmatprep.subr.bf16.mxu0 0
      %344 = vmatpush1.bf16.msra.mxu0 0
      %345 = vmatprep.subr.bf16.mxu0 0
      %346 = vmatpush1.bf16.msra.mxu0 0
      %347 = vmatprep.subr.bf16.mxu0 0
      %348 = vmatpush1.bf16.msra.mxu0 0
      %349 = vmatprep.subr.bf16.mxu0 0
      %350 = vmatpush1.bf16.msra.mxu0 0
      %351 = vmatprep.subr.bf16.mxu0 0
      %352 = vmatpush1.bf16.msra.mxu0 0
      %353 = vmatprep.subr.bf16.mxu0 0
      %354 = vmatpush1.bf16.msra.mxu0 %v334
      %355 = vmatprep.subr.bf16.mxu0 0
      %356 = vmatpush1.bf16.msra.mxu0 %v333
      %357 = vmatprep.subr.bf16.mxu0 0
      %358 = vmatpush2.bf16.msra.mxu0 0
      %359 = vmatprep.subr.bf16.mxu0 0
      %360 = vmatpush2.bf16.msra.mxu0 0
      %361 = vmatprep.subr.bf16.mxu0 0
      %362 = vmatpush2.bf16.msra.mxu0 0
      %363 = vmatprep.subr.bf16.mxu0 0
      %364 = vmatpush2.bf16.msra.mxu0 0
      %365 = vmatprep.subr.bf16.mxu0 0
      %366 = vmatpush2.bf16.msra.mxu0 0
      %367 = vmatprep.subr.bf16.mxu0 0
      %368 = vmatpush2.bf16.msra.mxu0 0
      %369 = vmatprep.subr.bf16.mxu0 0
      %370 = vmatpush2.bf16.msra.mxu0 0
      %371 = vmatprep.subr.bf16.mxu0 0
      %372 = vmatpush2.bf16.msra.mxu0 0
      %373 = vmatprep.mubr.bf16.mxu0 0
      %374 = vmatmul.mubr.bf16.gmra.mxu0 %v339
      %v375 = vpop.f32.mrf.mxu0
      %v376 = vadd.f32 %v324, %v375
      %v377 = vpop.f32.mrf.mxu0
      %v378 = vpop.f32.mrf.mxu0
      %v379 = vpop.f32.mrf.mxu0
      %380 = vdwg.mxu0
      %v382 = vlaneseq
      %v383 = vshrl.u32 %v382, 7
      %v384 = vsub.s32 0, %v383
      %v385 = vrot.slane %v315, %v384
      %v387 = vadd.f32 %v376, %v385
      %v388 = vpack.c.bf16 %v387, %v387
      %v389 = vxor.u32 %v388, 2147516416
      %v391 = vmul.bf16 %v389, 1069105081
      %v392 = vpow.bf16.pop %v391
      %v393 = vadd.bf16 %v392, 1065369472
      %v394 = vrcp.bf16.pop %v393
      %v395 = vmul.bf16 1065369472, %v394
      %v396 = vtanh.bf16.pop %v388
      %v397 = vunpack.c.l.bf16 %v395
      %399 = vrot.lane.b32.xlu0 %v320, 32
      %v400 = vpop.permute.xlu0 %399
      %v402 = vmul.f32 %v397, %v400
      %404 = vrot.lane.b32.xlu0 %v396, 64
      %v405 = vpop.permute.xlu0 %404
      %v407 = vmul.bf16 %v395, %v405
      %v408 = vunpack.c.l.bf16 %v407
      %410 = vrot.lane.b32.xlu0 %v408, 32
      %v411 = vpop.permute.xlu0 %410
      %v413 = vadd.f32 %v402, %v411
      %v414 = vpack.c.bf16 %v413, %v413
      %v415 = vtanh.bf16.pop %v414
      %417 = vrot.lane.b32.xlu0 %v415, 64
      %v418 = vpop.permute.xlu0 %417
      %v420 = vmul.bf16 %v395, %v418
      %v423 = vunpack.c.l.s4 1966171168
      %v424 = vunpack.c.0.s8 %v423
      %v425 = vlaneseq
      %v426 = vshrl.u32 %v425, 7
      %v427 = vsub.s32 %v424, %v426
      %v428 = vrot.slane %v420, %v427
      %v430 = vunpack.c.l.s4 1966171168
      %v431 = vunpack.c.0.s8 %v430
      %v432 = vlaneseq
      %v433 = vshrl.u32 %v432, 7
      %v434 = vsub.s32 %v431, %v433
      %v435 = vrot.slane %v428, %v434
      %436 = vrot.lane.b32.xlu0 %v435, 32
      %v437 = vpop.permute.xlu0 %436
      %s439 = scalar_lea.vmem %s235, %s321
      %vm440 = vcmask 253952
      %441 = vst.msk [vmem:[%s439] sm:$0x1] %vm440, %v437
      %s442 = smul.u32 %s18, 5
      %s443 = sadd.s32 %s442, 1
      %s444 = scalar_lea.vmem %s215, %s443
      %v445 = vld [vmem:[%s444] sm:$0x1]
      %v446 = vunpack.c.l.bf16 %v445
      %447 = vrot.lane.b32.xlu0 %v420, 32
      %v448 = vpop.permute.xlu0 %447
      %v450 = vsel %vm337, %v448, 0
      %452 = vmatprep.subr.bf16.mxu0 0
      %453 = vmatpush1.bf16.msra.mxu0 0
      %454 = vmatprep.subr.bf16.mxu0 0
      %455 = vmatpush1.bf16.msra.mxu0 0
      %456 = vmatprep.subr.bf16.mxu0 0
      %457 = vmatpush1.bf16.msra.mxu0 0
      %458 = vmatprep.subr.bf16.mxu0 0
      %459 = vmatpush1.bf16.msra.mxu0 0
      %460 = vmatprep.subr.bf16.mxu0 0
      %461 = vmatpush1.bf16.msra.mxu0 0
      %462 = vmatprep.subr.bf16.mxu0 0
      %463 = vmatpush1.bf16.msra.mxu0 0
      %464 = vmatprep.subr.bf16.mxu0 0
      %465 = vmatpush1.bf16.msra.mxu0 %v334
      %466 = vmatprep.subr.bf16.mxu0 0
      %467 = vmatpush1.bf16.msra.mxu0 %v333
      %468 = vmatprep.subr.bf16.mxu0 0
      %469 = vmatpush2.bf16.msra.mxu0 0
      %470 = vmatprep.subr.bf16.mxu0 0
      %471 = vmatpush2.bf16.msra.mxu0 0
      %472 = vmatprep.subr.bf16.mxu0 0
      %473 = vmatpush2.bf16.msra.mxu0 0
      %474 = vmatprep.subr.bf16.mxu0 0
      %475 = vmatpush2.bf16.msra.mxu0 0
      %476 = vmatprep.subr.bf16.mxu0 0
      %477 = vmatpush2.bf16.msra.mxu0 0
      %478 = vmatprep.subr.bf16.mxu0 0
      %479 = vmatpush2.bf16.msra.mxu0 0
      %480 = vmatprep.subr.bf16.mxu0 0
      %481 = vmatpush2.bf16.msra.mxu0 0
      %482 = vmatprep.subr.bf16.mxu0 0
      %483 = vmatpush2.bf16.msra.mxu0 0
      %484 = vmatprep.mubr.bf16.mxu0 0
      %485 = vmatmul.mubr.bf16.gmra.mxu0 %v450
      %v486 = vpop.f32.mrf.mxu0
      %v487 = vadd.f32 %v446, %v486
      %v488 = vpop.f32.mrf.mxu0
      %v489 = vpop.f32.mrf.mxu0
      %v490 = vpop.f32.mrf.mxu0
      %491 = vdwg.mxu0
      %v492 = vadd.f32 %v487, %v385
      %v493 = vpack.c.bf16 %v492, %v492
      %v494 = vxor.u32 %v493, 2147516416
      %v496 = vmul.bf16 %v494, 1069105081
      %v497 = vpow.bf16.pop %v496
      %v498 = vadd.bf16 %v497, 1065369472
      %v499 = vrcp.bf16.pop %v498
      %v500 = vmul.bf16 1065369472, %v499
      %v501 = vtanh.bf16.pop %v493
      %v502 = vunpack.c.l.bf16 %v500
      %v503 = vmul.f32 %v502, %v413
      %505 = vrot.lane.b32.xlu0 %v501, 64
      %v506 = vpop.permute.xlu0 %505
      %v508 = vmul.bf16 %v500, %v506
      %v509 = vunpack.c.l.bf16 %v508
      %511 = vrot.lane.b32.xlu0 %v509, 32
      %v512 = vpop.permute.xlu0 %511
      %v514 = vadd.f32 %v503, %v512
      %v515 = vpack.c.bf16 %v514, %v514
      %v516 = vtanh.bf16.pop %v515
      %518 = vrot.lane.b32.xlu0 %v516, 64
      %v519 = vpop.permute.xlu0 %518
      %v521 = vmul.bf16 %v500, %v519
      %v524 = vunpack.c.l.s4 1966171168
      %v525 = vunpack.c.0.s8 %v524
      %v526 = vlaneseq
      %v527 = vshrl.u32 %v526, 7
      %v528 = vsub.s32 %v525, %v527
      %v529 = vrot.slane %v521, %v528
      %v531 = vunpack.c.l.s4 1966171168
      %v532 = vunpack.c.0.s8 %v531
      %v533 = vlaneseq
      %v534 = vshrl.u32 %v533, 7
      %v535 = vsub.s32 %v532, %v534
      %v536 = vrot.slane %v529, %v535
      %537 = vrot.lane.b32.xlu0 %v536, 32
      %v538 = vpop.permute.xlu0 %537
      %s540 = scalar_lea.vmem %s235, %s443
      %541 = vst.msk [vmem:[%s540] sm:$0x1] %vm440, %v538
      %s542 = smul.u32 %s18, 3
      %s543 = sadd.s32 %s542, 2
      %s544 = scalar_lea.vmem %s215, %s543
      %v545 = vld [vmem:[%s544] sm:$0x1]
      %v546 = vunpack.c.l.bf16 %v545
      %547 = vrot.lane.b32.xlu0 %v521, 32
      %v548 = vpop.permute.xlu0 %547
      %v550 = vsel %vm337, %v548, 0
      %552 = vmatprep.subr.bf16.mxu0 0
      %553 = vmatpush1.bf16.msra.mxu0 0
      %554 = vmatprep.subr.bf16.mxu0 0
      %555 = vmatpush1.bf16.msra.mxu0 0
      %556 = vmatprep.subr.bf16.mxu0 0
      %557 = vmatpush1.bf16.msra.mxu0 0
      %558 = vmatprep.subr.bf16.mxu0 0
      %559 = vmatpush1.bf16.msra.mxu0 0
      %560 = vmatprep.subr.bf16.mxu0 0
      %561 = vmatpush1.bf16.msra.mxu0 0
      %562 = vmatprep.subr.bf16.mxu0 0
      %563 = vmatpush1.bf16.msra.mxu0 0
      %564 = vmatprep.subr.bf16.mxu0 0
      %565 = vmatpush1.bf16.msra.mxu0 %v334
      %566 = vmatprep.subr.bf16.mxu0 0
      %567 = vmatpush1.bf16.msra.mxu0 %v333
      %568 = vmatprep.subr.bf16.mxu0 0
      %569 = vmatpush2.bf16.msra.mxu0 0
      %570 = vmatprep.subr.bf16.mxu0 0
      %571 = vmatpush2.bf16.msra.mxu0 0
      %572 = vmatprep.subr.bf16.mxu0 0
      %573 = vmatpush2.bf16.msra.mxu0 0
      %574 = vmatprep.subr.bf16.mxu0 0
      %575 = vmatpush2.bf16.msra.mxu0 0
      %576 = vmatprep.subr.bf16.mxu0 0
      %577 = vmatpush2.bf16.msra.mxu0 0
      %578 = vmatprep.subr.bf16.mxu0 0
      %579 = vmatpush2.bf16.msra.mxu0 0
      %580 = vmatprep.subr.bf16.mxu0 0
      %581 = vmatpush2.bf16.msra.mxu0 0
      %582 = vmatprep.subr.bf16.mxu0 0
      %583 = vmatpush2.bf16.msra.mxu0 0
      %584 = vmatprep.mubr.bf16.mxu0 0
      %585 = vmatmul.mubr.bf16.gmra.mxu0 %v550
      %v586 = vpop.f32.mrf.mxu0
      %v587 = vadd.f32 %v546, %v586
      %v588 = vpop.f32.mrf.mxu0
      %v589 = vpop.f32.mrf.mxu0
      %v590 = vpop.f32.mrf.mxu0
      %591 = vdwg.mxu0
      %v592 = vadd.f32 %v587, %v385
      %v593 = vpack.c.bf16 %v592, %v592
      %v594 = vxor.u32 %v593, 2147516416
      %v596 = vmul.bf16 %v594, 1069105081
      %v597 = vpow.bf16.pop %v596
      %v598 = vadd.bf16 %v597, 1065369472
      %v599 = vrcp.bf16.pop %v598
      %v600 = vmul.bf16 1065369472, %v599
      %v601 = vtanh.bf16.pop %v593
      %v602 = vunpack.c.l.bf16 %v600
      %v603 = vmul.f32 %v602, %v514
      %605 = vrot.lane.b32.xlu0 %v601, 64
      %v606 = vpop.permute.xlu0 %605
      %v608 = vmul.bf16 %v600, %v606
      %v609 = vunpack.c.l.bf16 %v608
      %611 = vrot.lane.b32.xlu0 %v609, 32
      %v612 = vpop.permute.xlu0 %611
      %v614 = vadd.f32 %v603, %v612
      %v615 = vpack.c.bf16 %v614, %v614
      %v616 = vtanh.bf16.pop %v615
      %618 = vrot.lane.b32.xlu0 %v616, 64
      %v619 = vpop.permute.xlu0 %618
      %v621 = vmul.bf16 %v600, %v619
      %v624 = vunpack.c.l.s4 1966171168
      %v625 = vunpack.c.0.s8 %v624
      %v626 = vlaneseq
      %v627 = vshrl.u32 %v626, 7
      %v628 = vsub.s32 %v625, %v627
      %v629 = vrot.slane %v621, %v628
      %v631 = vunpack.c.l.s4 1966171168
      %v632 = vunpack.c.0.s8 %v631
      %v633 = vlaneseq
      %v634 = vshrl.u32 %v633, 7
      %v635 = vsub.s32 %v632, %v634
      %v636 = vrot.slane %v629, %v635
      %637 = vrot.lane.b32.xlu0 %v636, 32
      %v638 = vpop.permute.xlu0 %637
      %s640 = scalar_lea.vmem %s235, %s543
      %641 = vst.msk [vmem:[%s640] sm:$0x1] %vm440, %v638
      %s642 = sadd.s32 %s18, 3
      %s643 = scalar_lea.vmem %s215, %s642
      %v644 = vld [vmem:[%s643] sm:$0x1]
      %v645 = vunpack.c.l.bf16 %v644
      %646 = vrot.lane.b32.xlu0 %v621, 32
      %v647 = vpop.permute.xlu0 %646
      %v649 = vsel %vm337, %v647, 0
      %651 = vmatprep.subr.bf16.mxu0 0
      %652 = vmatpush1.bf16.msra.mxu0 0
      %653 = vmatprep.subr.bf16.mxu0 0
      %654 = vmatpush1.bf16.msra.mxu0 0
      %655 = vmatprep.subr.bf16.mxu0 0
      %656 = vmatpush1.bf16.msra.mxu0 0
      %657 = vmatprep.subr.bf16.mxu0 0
      %658 = vmatpush1.bf16.msra.mxu0 0
      %659 = vmatprep.subr.bf16.mxu0 0
      %660 = vmatpush1.bf16.msra.mxu0 0
      %661 = vmatprep.subr.bf16.mxu0 0
      %662 = vmatpush1.bf16.msra.mxu0 0
      %663 = vmatprep.subr.bf16.mxu0 0
      %664 = vmatpush1.bf16.msra.mxu0 %v334
      %665 = vmatprep.subr.bf16.mxu0 0
      %666 = vmatpush1.bf16.msra.mxu0 %v333
      %667 = vmatprep.subr.bf16.mxu0 0
      %668 = vmatpush2.bf16.msra.mxu0 0
      %669 = vmatprep.subr.bf16.mxu0 0
      %670 = vmatpush2.bf16.msra.mxu0 0
      %671 = vmatprep.subr.bf16.mxu0 0
      %672 = vmatpush2.bf16.msra.mxu0 0
      %673 = vmatprep.subr.bf16.mxu0 0
      %674 = vmatpush2.bf16.msra.mxu0 0
      %675 = vmatprep.subr.bf16.mxu0 0
      %676 = vmatpush2.bf16.msra.mxu0 0
      %677 = vmatprep.subr.bf16.mxu0 0
      %678 = vmatpush2.bf16.msra.mxu0 0
      %679 = vmatprep.subr.bf16.mxu0 0
      %680 = vmatpush2.bf16.msra.mxu0 0
      %681 = vmatprep.subr.bf16.mxu0 0
      %682 = vmatpush2.bf16.msra.mxu0 0
      %683 = vmatprep.mubr.bf16.mxu0 0
      %684 = vmatmul.mubr.bf16.gmra.mxu0 %v649
      %v685 = vpop.f32.mrf.mxu0
      %v686 = vadd.f32 %v645, %v685
      %v687 = vpop.f32.mrf.mxu0
      %v688 = vpop.f32.mrf.mxu0
      %v689 = vpop.f32.mrf.mxu0
      %690 = vdwg.mxu0
      %v691 = vadd.f32 %v686, %v385
      %v692 = vpack.c.bf16 %v691, %v691
      %v693 = vxor.u32 %v692, 2147516416
      %v695 = vmul.bf16 %v693, 1069105081
      %v696 = vpow.bf16.pop %v695
      %v697 = vadd.bf16 %v696, 1065369472
      %v698 = vrcp.bf16.pop %v697
      %v699 = vmul.bf16 1065369472, %v698
      %v700 = vtanh.bf16.pop %v692
      %v701 = vunpack.c.l.bf16 %v699
      %v702 = vmul.f32 %v701, %v614
      %704 = vrot.lane.b32.xlu0 %v700, 64
      %v705 = vpop.permute.xlu0 %704
      %v707 = vmul.bf16 %v699, %v705
      %v708 = vunpack.c.l.bf16 %v707
      %710 = vrot.lane.b32.xlu0 %v708, 32
      %v711 = vpop.permute.xlu0 %710
      %v713 = vadd.f32 %v702, %v711
      %v714 = vpack.c.bf16 %v713, %v713
      %v715 = vtanh.bf16.pop %v714
      %717 = vrot.lane.b32.xlu0 %v715, 64
      %v718 = vpop.permute.xlu0 %717
      %v720 = vmul.bf16 %v699, %v718
      %v723 = vunpack.c.l.s4 1966171168
      %v724 = vunpack.c.0.s8 %v723
      %v725 = vlaneseq
      %v726 = vshrl.u32 %v725, 7
      %v727 = vsub.s32 %v724, %v726
      %v728 = vrot.slane %v720, %v727
      %v730 = vunpack.c.l.s4 1966171168
      %v731 = vunpack.c.0.s8 %v730
      %v732 = vlaneseq
      %v733 = vshrl.u32 %v732, 7
      %v734 = vsub.s32 %v731, %v733
      %v735 = vrot.slane %v728, %v734
      %736 = vrot.lane.b32.xlu0 %v735, 32
      %v737 = vpop.permute.xlu0 %736
      %s739 = scalar_lea.vmem %s235, %s642
      %740 = vst.msk [vmem:[%s739] sm:$0x1] %vm440, %v737
      %s741 = ssub.s32 4, %s18
      %s742 = scalar_lea.vmem %s215, %s741
      %v743 = vld [vmem:[%s742] sm:$0x1]
      %v744 = vunpack.c.l.bf16 %v743
      %745 = vrot.lane.b32.xlu0 %v720, 32
      %v746 = vpop.permute.xlu0 %745
      %v748 = vsel %vm337, %v746, 0
      %750 = vmatprep.subr.bf16.mxu0 0
      %751 = vmatpush1.bf16.msra.mxu0 0
      %752 = vmatprep.subr.bf16.mxu0 0
      %753 = vmatpush1.bf16.msra.mxu0 0
      %754 = vmatprep.subr.bf16.mxu0 0
      %755 = vmatpush1.bf16.msra.mxu0 0
      %756 = vmatprep.subr.bf16.mxu0 0
      %757 = vmatpush1.bf16.msra.mxu0 0
      %758 = vmatprep.subr.bf16.mxu0 0
      %759 = vmatpush1.bf16.msra.mxu0 0
      %760 = vmatprep.subr.bf16.mxu0 0
      %761 = vmatpush1.bf16.msra.mxu0 0
      %762 = vmatprep.subr.bf16.mxu0 0
      %763 = vmatpush1.bf16.msra.mxu0 %v334
      %764 = vmatprep.subr.bf16.mxu0 0
      %765 = vmatpush1.bf16.msra.mxu0 %v333
      %766 = vmatprep.subr.bf16.mxu0 0
      %767 = vmatpush2.bf16.msra.mxu0 0
      %768 = vmatprep.subr.bf16.mxu0 0
      %769 = vmatpush2.bf16.msra.mxu0 0
      %770 = vmatprep.subr.bf16.mxu0 0
      %771 = vmatpush2.bf16.msra.mxu0 0
      %772 = vmatprep.subr.bf16.mxu0 0
      %773 = vmatpush2.bf16.msra.mxu0 0
      %774 = vmatprep.subr.bf16.mxu0 0
      %775 = vmatpush2.bf16.msra.mxu0 0
      %776 = vmatprep.subr.bf16.mxu0 0
      %777 = vmatpush2.bf16.msra.mxu0 0
      %778 = vmatprep.subr.bf16.mxu0 0
      %779 = vmatpush2.bf16.msra.mxu0 0
      %780 = vmatprep.subr.bf16.mxu0 0
      %781 = vmatpush2.bf16.msra.mxu0 0
      %782 = vmatprep.mubr.bf16.mxu0 0
      %783 = vmatmul.mubr.bf16.gmra.mxu0 %v748
      %v784 = vpop.f32.mrf.mxu0
      %v785 = vadd.f32 %v744, %v784
      %v786 = vpop.f32.mrf.mxu0
      %v787 = vpop.f32.mrf.mxu0
      %v788 = vpop.f32.mrf.mxu0
      %789 = vdwg.mxu0
      %v790 = vadd.f32 %v785, %v385
      %v791 = vpack.c.bf16 %v790, %v790
      %v792 = vxor.u32 %v791, 2147516416
      %v794 = vmul.bf16 %v792, 1069105081
      %v795 = vpow.bf16.pop %v794
      %v796 = vadd.bf16 %v795, 1065369472
      %v797 = vrcp.bf16.pop %v796
      %v798 = vmul.bf16 1065369472, %v797
      %v799 = vtanh.bf16.pop %v791
      %v800 = vunpack.c.l.bf16 %v798
      %v801 = vmul.f32 %v800, %v713
      %803 = vrot.lane.b32.xlu0 %v799, 64
      %v804 = vpop.permute.xlu0 %803
      %v806 = vmul.bf16 %v798, %v804
      %v807 = vunpack.c.l.bf16 %v806
      %809 = vrot.lane.b32.xlu0 %v807, 32
      %v810 = vpop.permute.xlu0 %809
      %v812 = vadd.f32 %v801, %v810
      %v813 = vpack.c.bf16 %v812, %v812
      %v814 = vtanh.bf16.pop %v813
      %816 = vrot.lane.b32.xlu0 %v814, 64
      %v817 = vpop.permute.xlu0 %816
      %v819 = vmul.bf16 %v798, %v817
      %v822 = vunpack.c.l.s4 1966171168
      %v823 = vunpack.c.0.s8 %v822
      %v824 = vlaneseq
      %v825 = vshrl.u32 %v824, 7
      %v826 = vsub.s32 %v823, %v825
      %v827 = vrot.slane %v819, %v826
      %v829 = vunpack.c.l.s4 1966171168
      %v830 = vunpack.c.0.s8 %v829
      %v831 = vlaneseq
      %v832 = vshrl.u32 %v831, 7
      %v833 = vsub.s32 %v830, %v832
      %v834 = vrot.slane %v827, %v833
      %835 = vrot.lane.b32.xlu0 %v834, 32
      %v836 = vpop.permute.xlu0 %835
      %s838 = scalar_lea.vmem %s235, %s741
      %839 = vst.msk [vmem:[%s838] sm:$0x1] %vm440, %v836
      %s840 = smul.u32 %s18, 4294967293
      %s841 = sadd.s32 %s840, 5
      %s842 = scalar_lea.vmem %s215, %s841
      %v843 = vld [vmem:[%s842] sm:$0x1]
      %v844 = vunpack.c.l.bf16 %v843
      %845 = vrot.lane.b32.xlu0 %v819, 32
      %v846 = vpop.permute.xlu0 %845
      %v848 = vsel %vm337, %v846, 0
      %850 = vmatprep.subr.bf16.mxu0 0
      %851 = vmatpush1.bf16.msra.mxu0 0
      %852 = vmatprep.subr.bf16.mxu0 0
      %853 = vmatpush1.bf16.msra.mxu0 0
      %854 = vmatprep.subr.bf16.mxu0 0
      %855 = vmatpush1.bf16.msra.mxu0 0
      %856 = vmatprep.subr.bf16.mxu0 0
      %857 = vmatpush1.bf16.msra.mxu0 0
      %858 = vmatprep.subr.bf16.mxu0 0
      %859 = vmatpush1.bf16.msra.mxu0 0
      %860 = vmatprep.subr.bf16.mxu0 0
      %861 = vmatpush1.bf16.msra.mxu0 0
      %862 = vmatprep.subr.bf16.mxu0 0
      %863 = vmatpush1.bf16.msra.mxu0 %v334
      %864 = vmatprep.subr.bf16.mxu0 0
      %865 = vmatpush1.bf16.msra.mxu0 %v333
      %866 = vmatprep.subr.bf16.mxu0 0
      %867 = vmatpush2.bf16.msra.mxu0 0
      %868 = vmatprep.subr.bf16.mxu0 0
      %869 = vmatpush2.bf16.msra.mxu0 0
      %870 = vmatprep.subr.bf16.mxu0 0
      %871 = vmatpush2.bf16.msra.mxu0 0
      %872 = vmatprep.subr.bf16.mxu0 0
      %873 = vmatpush2.bf16.msra.mxu0 0
      %874 = vmatprep.subr.bf16.mxu0 0
      %875 = vmatpush2.bf16.msra.mxu0 0
      %876 = vmatprep.subr.bf16.mxu0 0
      %877 = vmatpush2.bf16.msra.mxu0 0
      %878 = vmatprep.subr.bf16.mxu0 0
      %879 = vmatpush2.bf16.msra.mxu0 0
      %880 = vmatprep.subr.bf16.mxu0 0
      %881 = vmatpush2.bf16.msra.mxu0 0
      %882 = vmatprep.mubr.bf16.mxu0 0
      %883 = vmatmul.mubr.bf16.gmra.mxu0 %v848
      %v884 = vpop.f32.mrf.mxu0
      %v885 = vadd.f32 %v844, %v884
      %v886 = vpop.f32.mrf.mxu0
      %v887 = vpop.f32.mrf.mxu0
      %v888 = vpop.f32.mrf.mxu0
      %889 = vdwg.mxu0
      %v890 = vadd.f32 %v885, %v385
      %v891 = vpack.c.bf16 %v890, %v890
      %v892 = vxor.u32 %v891, 2147516416
      %v894 = vmul.bf16 %v892, 1069105081
      %v895 = vpow.bf16.pop %v894
      %v896 = vadd.bf16 %v895, 1065369472
      %v897 = vrcp.bf16.pop %v896
      %v898 = vmul.bf16 1065369472, %v897
      %v899 = vtanh.bf16.pop %v891
      %v900 = vunpack.c.l.bf16 %v898
      %v901 = vmul.f32 %v900, %v812
      %903 = vrot.lane.b32.xlu0 %v899, 64
      %v904 = vpop.permute.xlu0 %903
      %v906 = vmul.bf16 %v898, %v904
      %v907 = vunpack.c.l.bf16 %v906
      %909 = vrot.lane.b32.xlu0 %v907, 32
      %v910 = vpop.permute.xlu0 %909
      %v912 = vadd.f32 %v901, %v910
      %v913 = vpack.c.bf16 %v912, %v912
      %v914 = vtanh.bf16.pop %v913
      %916 = vrot.lane.b32.xlu0 %v914, 64
      %v917 = vpop.permute.xlu0 %916
      %v919 = vmul.bf16 %v898, %v917
      %v922 = vunpack.c.l.s4 1966171168
      %v923 = vunpack.c.0.s8 %v922
      %v924 = vlaneseq
      %v925 = vshrl.u32 %v924, 7
      %v926 = vsub.s32 %v923, %v925
      %v927 = vrot.slane %v919, %v926
      %v929 = vunpack.c.l.s4 1966171168
      %v930 = vunpack.c.0.s8 %v929
      %v931 = vlaneseq
      %v932 = vshrl.u32 %v931, 7
      %v933 = vsub.s32 %v930, %v932
      %v934 = vrot.slane %v927, %v933
      %935 = vrot.lane.b32.xlu0 %v934, 32
      %v936 = vpop.permute.xlu0 %935
      %s938 = scalar_lea.vmem %s235, %s841
      %939 = vst.msk [vmem:[%s938] sm:$0x1] %vm440, %v936
      %s940 = smul.u32 %s18, 4294967291
      %s941 = sadd.s32 %s940, 6
      %s942 = scalar_lea.vmem %s215, %s941
      %v943 = vld [vmem:[%s942] sm:$0x1]
      %v944 = vunpack.c.l.bf16 %v943
      %945 = vrot.lane.b32.xlu0 %v919, 32
      %v946 = vpop.permute.xlu0 %945
      %v948 = vsel %vm337, %v946, 0
      %950 = vmatprep.subr.bf16.mxu0 0
      %951 = vmatpush1.bf16.msra.mxu0 0
      %952 = vmatprep.subr.bf16.mxu0 0
      %953 = vmatpush1.bf16.msra.mxu0 0
      %954 = vmatprep.subr.bf16.mxu0 0
      %955 = vmatpush1.bf16.msra.mxu0 0
      %956 = vmatprep.subr.bf16.mxu0 0
      %957 = vmatpush1.bf16.msra.mxu0 0
      %958 = vmatprep.subr.bf16.mxu0 0
      %959 = vmatpush1.bf16.msra.mxu0 0
      %960 = vmatprep.subr.bf16.mxu0 0
      %961 = vmatpush1.bf16.msra.mxu0 0
      %962 = vmatprep.subr.bf16.mxu0 0
      %963 = vmatpush1.bf16.msra.mxu0 %v334
      %964 = vmatprep.subr.bf16.mxu0 0
      %965 = vmatpush1.bf16.msra.mxu0 %v333
      %966 = vmatprep.subr.bf16.mxu0 0
      %967 = vmatpush2.bf16.msra.mxu0 0
      %968 = vmatprep.subr.bf16.mxu0 0
      %969 = vmatpush2.bf16.msra.mxu0 0
      %970 = vmatprep.subr.bf16.mxu0 0
      %971 = vmatpush2.bf16.msra.mxu0 0
      %972 = vmatprep.subr.bf16.mxu0 0
      %973 = vmatpush2.bf16.msra.mxu0 0
      %974 = vmatprep.subr.bf16.mxu0 0
      %975 = vmatpush2.bf16.msra.mxu0 0
      %976 = vmatprep.subr.bf16.mxu0 0
      %977 = vmatpush2.bf16.msra.mxu0 0
      %978 = vmatprep.subr.bf16.mxu0 0
      %979 = vmatpush2.bf16.msra.mxu0 0
      %980 = vmatprep.subr.bf16.mxu0 0
      %981 = vmatpush2.bf16.msra.mxu0 0
      %982 = vmatprep.mubr.bf16.mxu0 0
      %983 = vmatmul.mubr.bf16.gmra.mxu0 %v948
      %v984 = vpop.f32.mrf.mxu0
      %v985 = vadd.f32 %v944, %v984
      %v986 = vpop.f32.mrf.mxu0
      %v987 = vpop.f32.mrf.mxu0
      %v988 = vpop.f32.mrf.mxu0
      %989 = vdwg.mxu0
      %v990 = vadd.f32 %v985, %v385
      %v991 = vpack.c.bf16 %v990, %v990
      %v992 = vxor.u32 %v991, 2147516416
      %v994 = vmul.bf16 %v992, 1069105081
      %v995 = vpow.bf16.pop %v994
      %v996 = vadd.bf16 %v995, 1065369472
      %v997 = vrcp.bf16.pop %v996
      %v998 = vmul.bf16 1065369472, %v997
      %v999 = vtanh.bf16.pop %v991
      %v1000 = vunpack.c.l.bf16 %v998
      %v1001 = vmul.f32 %v1000, %v912
      %1003 = vrot.lane.b32.xlu0 %v999, 64
      %v1004 = vpop.permute.xlu0 %1003
      %v1006 = vmul.bf16 %v998, %v1004
      %v1007 = vunpack.c.l.bf16 %v1006
      %1009 = vrot.lane.b32.xlu0 %v1007, 32
      %v1010 = vpop.permute.xlu0 %1009
      %v1012 = vadd.f32 %v1001, %v1010
      %v1013 = vpack.c.bf16 %v1012, %v1012
      %v1014 = vtanh.bf16.pop %v1013
      %1016 = vrot.lane.b32.xlu0 %v1014, 64
      %v1017 = vpop.permute.xlu0 %1016
      %v1019 = vmul.bf16 %v998, %v1017
      %v1022 = vunpack.c.l.s4 1966171168
      %v1023 = vunpack.c.0.s8 %v1022
      %v1024 = vlaneseq
      %v1025 = vshrl.u32 %v1024, 7
      %v1026 = vsub.s32 %v1023, %v1025
      %v1027 = vrot.slane %v1019, %v1026
      %v1029 = vunpack.c.l.s4 1966171168
      %v1030 = vunpack.c.0.s8 %v1029
      %v1031 = vlaneseq
      %v1032 = vshrl.u32 %v1031, 7
      %v1033 = vsub.s32 %v1030, %v1032
      %v1034 = vrot.slane %v1027, %v1033
      %1035 = vrot.lane.b32.xlu0 %v1034, 32
      %v1036 = vpop.permute.xlu0 %1035
      %s1038 = scalar_lea.vmem %s235, %s941
      %1039 = vst.msk [vmem:[%s1038] sm:$0x1] %vm440, %v1036
      %s1040 = smul.u32 %s18, 4294967289
      %s1041 = sadd.s32 %s1040, 7
      %s1042 = scalar_lea.vmem %s215, %s1041
      %v1043 = vld [vmem:[%s1042] sm:$0x1]
      %v1044 = vunpack.c.l.bf16 %v1043
      %1045 = vrot.lane.b32.xlu0 %v1019, 32
      %v1046 = vpop.permute.xlu0 %1045
      %v1048 = vsel %vm337, %v1046, 0
      %1050 = vmatprep.subr.bf16.mxu0 0
      %1051 = vmatpush1.bf16.msra.mxu0 0
      %1052 = vmatprep.subr.bf16.mxu0 0
      %1053 = vmatpush1.bf16.msra.mxu0 0
      %1054 = vmatprep.subr.bf16.mxu0 0
      %1055 = vmatpush1.bf16.msra.mxu0 0
      %1056 = vmatprep.subr.bf16.mxu0 0
      %1057 = vmatpush1.bf16.msra.mxu0 0
      %1058 = vmatprep.subr.bf16.mxu0 0
      %1059 = vmatpush1.bf16.msra.mxu0 0
      %1060 = vmatprep.subr.bf16.mxu0 0
      %1061 = vmatpush1.bf16.msra.mxu0 0
      %1062 = vmatprep.subr.bf16.mxu0 0
      %1063 = vmatpush1.bf16.msra.mxu0 %v334
      %1064 = vmatprep.subr.bf16.mxu0 0
      %1065 = vmatpush1.bf16.msra.mxu0 %v333
      %1066 = vmatprep.subr.bf16.mxu0 0
      %1067 = vmatpush2.bf16.msra.mxu0 0
      %1068 = vmatprep.subr.bf16.mxu0 0
      %1069 = vmatpush2.bf16.msra.mxu0 0
      %1070 = vmatprep.subr.bf16.mxu0 0
      %1071 = vmatpush2.bf16.msra.mxu0 0
      %1072 = vmatprep.subr.bf16.mxu0 0
      %1073 = vmatpush2.bf16.msra.mxu0 0
      %1074 = vmatprep.subr.bf16.mxu0 0
      %1075 = vmatpush2.bf16.msra.mxu0 0
      %1076 = vmatprep.subr.bf16.mxu0 0
      %1077 = vmatpush2.bf16.msra.mxu0 0
      %1078 = vmatprep.subr.bf16.mxu0 0
      %1079 = vmatpush2.bf16.msra.mxu0 0
      %1080 = vmatprep.subr.bf16.mxu0 0
      %1081 = vmatpush2.bf16.msra.mxu0 0
      %1082 = vmatprep.mubr.bf16.mxu0 0
      %1083 = vmatmul.mubr.bf16.gmra.mxu0 %v1048
      %v1084 = vpop.f32.mrf.mxu0
      %v1085 = vadd.f32 %v1044, %v1084
      %v1086 = vpop.f32.mrf.mxu0
      %v1087 = vpop.f32.mrf.mxu0
      %v1088 = vpop.f32.mrf.mxu0
      %1089 = vdwg.mxu0
      %v1090 = vadd.f32 %v1085, %v385
      %v1091 = vpack.c.bf16 %v1090, %v1090
      %v1092 = vxor.u32 %v1091, 2147516416
      %v1094 = vmul.bf16 %v1092, 1069105081
      %v1095 = vpow.bf16.pop %v1094
      %v1096 = vadd.bf16 %v1095, 1065369472
      %v1097 = vrcp.bf16.pop %v1096
      %v1098 = vmul.bf16 1065369472, %v1097
      %v1099 = vtanh.bf16.pop %v1091
      %v1100 = vunpack.c.l.bf16 %v1098
      %v1101 = vmul.f32 %v1100, %v1012
      %1103 = vrot.lane.b32.xlu0 %v1099, 64
      %v1104 = vpop.permute.xlu0 %1103
      %v1106 = vmul.bf16 %v1098, %v1104
      %v1107 = vunpack.c.l.bf16 %v1106
      %1109 = vrot.lane.b32.xlu0 %v1107, 32
      %v1110 = vpop.permute.xlu0 %1109
      %v1112 = vadd.f32 %v1101, %v1110
      %v1113 = vpack.c.bf16 %v1112, %v1112
      %v1114 = vtanh.bf16.pop %v1113
      %1116 = vrot.lane.b32.xlu0 %v1114, 64
      %v1117 = vpop.permute.xlu0 %1116
      %v1119 = vmul.bf16 %v1098, %v1117
      %v1122 = vunpack.c.l.s4 1966171168
      %v1123 = vunpack.c.0.s8 %v1122
      %v1124 = vlaneseq
      %v1125 = vshrl.u32 %v1124, 7
      %v1126 = vsub.s32 %v1123, %v1125
      %v1127 = vrot.slane %v1119, %v1126
      %v1129 = vunpack.c.l.s4 1966171168
      %v1130 = vunpack.c.0.s8 %v1129
      %v1131 = vlaneseq
      %v1132 = vshrl.u32 %v1131, 7
      %v1133 = vsub.s32 %v1130, %v1132
      %v1134 = vrot.slane %v1127, %v1133
      %1135 = vrot.lane.b32.xlu0 %v1134, 32
      %v1136 = vpop.permute.xlu0 %1135
      %s1138 = scalar_lea.vmem %s235, %s1041
      %1139 = vst.msk [vmem:[%s1138] sm:$0x1] %vm440, %v1136
      %1140 = vst.msk [vmem:[%s316] sm:$0x1] %vm440, %v1136
      %1142 = vrot.lane.b32.xlu0 %v1112, 96
      %v1143 = vpop.permute.xlu0 %1142
      %vm1145 = vcmask 254976
      %1146 = vst.msk [vmem:[%s319] sm:$0x3] %vm1145, %v1143
      %s1147 = smul.u32 %s19, 2
      %s1148 = ssub.s32 0, %s1147
      %s1149 = smul.u32 %s18, %s1148
      %s1150 = sadd.s32 %s19, %s1149
      %s1151 = smul.u32 8, %s1150
      %p1152 = scmp.lt.s32.totalorder %s18, 1
      %s1153 = scalar_select %p1152, %s18, 1
      %p1154 = scmp.lt.s32.totalorder %s1151, 7
      %s1155 = scalar_select %p1154, %s1151, 7
      %s1156 = smul.addr %s1153, 8
      %s1157 = sadd.s32 %s1155, %s1156
      %s1158 = scalar_lea.vmem %s3, %s1157
      // Predicated region
      $region67: #{my_model_forward.3} parent=27 // pred_check
        %p1159 = pneg %p116
      $region68: #{my_model_forward.3} parent=27 // pred_check_branch
        %1161 = sbr.rel (%p1159) target = $region70
      $region69: #{my_model_forward.3} parent=27 // pred_region
        %s1162 = smul.u32 %s19, 2
        %s1163 = ssub.s32 0, %s1162
        %s1164 = smul.u32 %s18, %s1163
        %s1165 = sadd.s32 %s19, %s1164
        %s1166 = smul.u32 8, %s1165
      $region70: #{my_model_forward.3} parent=27 // pred_fallthru
        _
    $region28: #{my_model_forward.3} parent=5 // pred_fallthru
      _
    %p1167 = scmp.le.s32.totalorder 2, %s9
    // Predicated region
    $region71: #{my_model_forward.3} parent=5 // pred_check
      %p1168 = pneg %p1167
    $region72: #{my_model_forward.3} parent=5 // pred_check_branch
      %1170 = sbr.rel (%p1168) target = $region74
    $region73: #{my_model_forward.3} parent=5 // pred_region
      %s1171 = ssub.s32 %s9, 2
      // Predicated region
      $region75: #{my_model_forward.3} parent=73 // pred_check
        %p1172 = pneg %p122
      $region76: #{my_model_forward.3} parent=73 // pred_check_branch
        %1174 = sbr.rel (%p1172) target = $region78
      $region77: #{my_model_forward.3} parent=73 // pred_region
        %s1175 = smul.u32 %s21, 2
        %s1176 = ssub.s32 0, %s1175
        %s1177 = smul.u32 %s20, %s1176
        %s1178 = sadd.s32 %s21, %s1177
        %s1179 = smul.u32 8, %s1178
        %p1180 = scmp.lt.s32.totalorder %s20, 1
        %s1181 = scalar_select %p1180, %s20, 1
        %p1182 = scmp.lt.s32.totalorder %s1179, 7
        %s1183 = scalar_select %p1182, %s1179, 7
        %s1184 = smul.addr %s1181, 8
        %s1185 = sadd.s32 %s1183, %s1184
        %s1186 = scalar_lea.vmem %s3, %s1185
      $region78: #{my_model_forward.3} parent=73 // pred_fallthru
        _
    $region74: #{my_model_forward.3} parent=5 // pred_fallthru
      _
  $region6: #{my_model_forward.3} parent=0 // loop_footer
    %s13 = sadd.s32 1, %s9
  $region7: #{my_model_forward.3} parent=0 // loop_footer_branch
    %8 = sbr.rel target = $region3
  $region8: #{my_model_forward.3} parent=0 // loop_exit
    _
  %1187 = vsyncmov [#allocation5]
  %s1188 = vpop.sfrf %1187
  %p1189 = scmp.eq.s32.totalorder %s1188, 0
  %p1190 = pneg %p1189
  %1192 = shalt.err (%p1190)

// kernel: my_model_forward.4
$region0: #{my_model_forward.4}
  #allocation0 [shape = 'u32[]', space=smem, size = 0x4, offset = 0x4, fixed_abs, tag = 'smem constant byte address 0x4 - core index']
  #allocation1 [shape = 'u32[144,128]{1,0:T(1,128)}', space=vmem, size = 0x12000, scoped, tag = 'internal scratch']
  #allocation2 [shape = 'bf16[32,128]{1,0:T(8,128)(2,1)}', space=vmem, size = 0x2000, scoped, tag = 'scratch operand']
  #allocation3 [shape = 'bf16[2,32]{1,0:T(2,128)(2,1)}', space=vmem, size = 0x200, scoped, tag = 'scratch operand']
  #allocation4 [shape = 'f32[2,32]{1,0:T(2,128)}', space=vmem, size = 0x400, scoped, tag = 'scratch operand']
  #allocation5 [shape = 's32[1]{0}', space=sflag, size = 0x4, scoped, tag = 'scratch operand']
  #allocation6 [shape = 's32[]', space=sflag, size = 0x4, offset = 0, fixed_abs, tag = 'sflag constant byte address 0x0 - dummy sync flag']
  %s0 = inlined_call_operand.vmem [shape: bf16[8,2,128], index: 0, kind: input, shape index: {}]
  %s1 = inlined_call_operand.vmem [shape: f32[1,128], index: 1, kind: input, shape index: {}]
  %s2 = inlined_call_operand.vmem [shape: bf16[32,128], index: 2, kind: input, shape index: {}]
  %s3 = inlined_call_operand.vmem [shape: f32[2,32], index: 3, kind: output, shape index: {}]
  %s4 = sld [smem:[#allocation0]]
  $region56: #{my_model_forward.4} parent=0
    _
  %s6 = ssub.s32 1, %s4
  %s7 = scalar_select 0, %s6, %s4
  // Predicated region
  $region2: #{my_model_forward.4} parent=0 // pred_check
    _
  $region3: #{my_model_forward.4} parent=0 // pred_check_branch
    %9 = sbr.rel (0) target = $region5
  $region4: #{my_model_forward.4} parent=0 // pred_region
    %s10 = ssub.s32 0, 0
    %s11 = smul.u32 8, %s10
    %p12 = scmp.lt.s32.totalorder %s11, 7
    %s13 = scalar_select %p12, %s11, 7
    %s14 = scalar_lea.vmem %s0, %s13
    %s15 = ssub.s32 0, 0
    %s16 = smul.u32 8, %s15
  $region5: #{my_model_forward.4} parent=0 // pred_fallthru
    _
  // Predicated region
  $region6: #{my_model_forward.4} parent=0 // pred_check
    _
  $region7: #{my_model_forward.4} parent=0 // pred_check_branch
    %18 = sbr.rel (0) target = $region9
  $region8: #{my_model_forward.4} parent=0 // pred_region
    _
  $region9: #{my_model_forward.4} parent=0 // pred_fallthru
    _
  %s19 = ssub.s32 0, 0
  %s20 = smul.u32 8, %s19
  %p21 = scmp.lt.s32.totalorder %s20, 7
  %s22 = scalar_select %p21, %s20, 7
  %s23 = scalar_lea.vmem %s0, %s22
  %s24 = ssub.s32 0, 0
  %s25 = smul.u32 8, %s24
  %p26 = scmp.lt.s32.totalorder %s25, 7
  %s27 = scalar_select %p26, %s25, 7
  %s28 = scalar_lea.vmem %s0, %s27
  %s29 = ssub.s32 0, 0
  %s30 = smul.u32 8, %s29
  %p33 = scmp.eq.s32.totalorder 0, 0
  // Predicated region
  $region10: #{my_model_forward.4} parent=0 // pred_check
    %p34 = pneg %p33
  $region11: #{my_model_forward.4} parent=0 // pred_check_branch
    %36 = sbr.rel (%p34) target = $region13
  $region12: #{my_model_forward.4} parent=0 // pred_region
    %vm37 = vcmask 253952
    %38 = vst.msk [vmem:[#allocation3] sm:$0x1] %vm37, 0
    %vm39 = vcmask 254976
    %40 = vst.msk [vmem:[#allocation4] sm:$0x3] %vm39, 0.0
    %p42 = scmp.lt.u32.totalorder 16, 8
    %p43 = pneg %p42
    // Predicated region
    $region14: #{my_model_forward.4} parent=12 // pred_check
      _
    $region15: #{my_model_forward.4} parent=12 // pred_check_branch
      %45 = sbr.rel (%p42) target = $region17
    $region16: #{my_model_forward.4} parent=12 // pred_region
      %s61 = sand.u32 16, 7
      %p62 = scmp.eq.s32.totalorder %s61, 0
      // Predicated region
      $region29: #{my_model_forward.4} parent=16 // pred_check
        %p63 = pneg %p62
      $region30: #{my_model_forward.4} parent=16 // pred_check_branch
        %65 = sbr.rel (%p63) target = $region32
      $region31: #{my_model_forward.4} parent=16 // pred_region
        loop: start=0, step=1, limit=1
        $region33: #{my_model_forward.4} parent=31 // loop_pre_header
          _
        $region34: #{my_model_forward.4} parent=31 // loop_header
          %s67 = sphi 0, %s71
          %p68 = scmp.ge.s32.totalorder %s67, 1
          %s72 = sphi %s2, %s2
          %s73 = sphi [#allocation2], [#allocation2]
        $region35: #{my_model_forward.4} parent=31 // loop_header_branch
          %70 = sbr.rel (%p68) target = $region39
        $region36: #{my_model_forward.4} parent=31 // loop_body
          %v74 = vld [vmem:[%s72] sm:$0xff]
          %75 = vst [vmem:[%s73] sm:$0xff] %v74
          %v76 = vld [vmem:[%s72 + $0x8] sm:$0xff]
          %77 = vst [vmem:[%s73 + $0x8] sm:$0xff] %v76
        $region37: #{my_model_forward.4} parent=31 // loop_footer
          %s71 = sadd.s32 1, %s67
        $region38: #{my_model_forward.4} parent=31 // loop_footer_branch
          %66 = sbr.rel target = $region34
        $region39: #{my_model_forward.4} parent=31 // loop_exit
          _
      $region32: #{my_model_forward.4} parent=16 // pred_fallthru
        _
      %p78 = pneg %p62
      // Predicated region
      $region40: #{my_model_forward.4} parent=16 // pred_check
        _
      $region41: #{my_model_forward.4} parent=16 // pred_check_branch
        %80 = sbr.rel (%p62) target = $region43
      $region42: #{my_model_forward.4} parent=16 // pred_region
        %s81 = sand.u32 16, 7
      $region43: #{my_model_forward.4} parent=16 // pred_fallthru
        _
    $region17: #{my_model_forward.4} parent=12 // pred_fallthru
      _
    // Predicated region
    $region18: #{my_model_forward.4} parent=12 // pred_check
      %p46 = pneg %p42
    $region19: #{my_model_forward.4} parent=12 // pred_check_branch
      %48 = sbr.rel (%p46) target = $region21
    $region20: #{my_model_forward.4} parent=12 // pred_region
      %s49 = sshll.u32 1, 16
      %s50 = ssub.s32 %s49, 1
      loop: start=0, step=1, limit=1
      $region22: #{my_model_forward.4} parent=20 // loop_pre_header
        _
      $region23: #{my_model_forward.4} parent=20 // loop_header
        %s52 = sphi 0, %s56
        %p53 = scmp.ge.s32.totalorder %s52, 1
        %s57 = sphi %s2, %s2
        %s58 = sphi [#allocation2], [#allocation2]
      $region24: #{my_model_forward.4} parent=20 // loop_header_branch
        %55 = sbr.rel (%p53) target = $region28
      $region25: #{my_model_forward.4} parent=20 // loop_body
        %v59 = vld [vmem:[%s57] sm:%s50]
        %60 = vst [vmem:[%s58] sm:%s50] %v59
      $region26: #{my_model_forward.4} parent=20 // loop_footer
        %s56 = sadd.s32 1, %s52
      $region27: #{my_model_forward.4} parent=20 // loop_footer_branch
        %51 = sbr.rel target = $region23
      $region28: #{my_model_forward.4} parent=20 // loop_exit
        _
    $region21: #{my_model_forward.4} parent=12 // pred_fallthru
      _
    // Predicated region
    $region44: #{my_model_forward.4} parent=12 // pred_check
      _
    $region45: #{my_model_forward.4} parent=12 // pred_check_branch
      %84 = sbr.rel (0) target = $region47
    $region46: #{my_model_forward.4} parent=12 // pred_region
      %85 = vsyncadd [#allocation5], 256
    $region47: #{my_model_forward.4} parent=12 // pred_fallthru
      _
    %s86 = smul.u32 4, 4
    %s87 = smul.u32 %s86, 1
    %s88 = sshll.u32 %s87, 4
    %89 = dma.done [#allocation5], %s88
  $region13: #{my_model_forward.4} parent=0 // pred_fallthru
    _
  %v90 = vld [vmem:[#allocation2] sm:$0xf]
  %v91 = vld [vmem:[#allocation2 + $0x4] sm:$0xf]
  %v92 = vld [vmem:[#allocation2 + $0x8] sm:$0xf]
  %v93 = vld [vmem:[#allocation2 + $0xc] sm:$0xf]
  %v94 = vld [vmem:[%s1] sm:$0x1]
  %v95 = vld [vmem:[#allocation3] sm:$0x1]
  %v96 = vld [vmem:[#allocation4] sm:$0x3]
  %s97 = scalar_lea.vmem %s28, 7
  %v98 = vld [vmem:[%s97] sm:$0x1]
  %v99 = vunpack.c.l.bf16 %v98
  %v104 = vunpack.c.l.b16 %v90
  %v105 = vunpack.c.l.b16 %v91
  %v106 = vunpack.c.l.b16 %v92
  %v107 = vunpack.c.l.b16 %v93
  %v108 = vpack.c.b16 %v105, %v104
  %v109 = vpack.c.b16 %v107, %v106
  %vm112 = vcmask 261120
  %v114 = vsel %vm112, %v95, 0
  %116 = vmatprep.subr.bf16.mxu0 0
  %117 = vmatpush1.bf16.msra.mxu0 0
  %118 = vmatprep.subr.bf16.mxu0 0
  %119 = vmatpush1.bf16.msra.mxu0 0
  %120 = vmatprep.subr.bf16.mxu0 0
  %121 = vmatpush1.bf16.msra.mxu0 0
  %122 = vmatprep.subr.bf16.mxu0 0
  %123 = vmatpush1.bf16.msra.mxu0 0
  %124 = vmatprep.subr.bf16.mxu0 0
  %125 = vmatpush1.bf16.msra.mxu0 0
  %126 = vmatprep.subr.bf16.mxu0 0
  %127 = vmatpush1.bf16.msra.mxu0 0
  %128 = vmatprep.subr.bf16.mxu0 0
  %129 = vmatpush1.bf16.msra.mxu0 %v109
  %130 = vmatprep.subr.bf16.mxu0 0
  %131 = vmatpush1.bf16.msra.mxu0 %v108
  %132 = vmatprep.subr.bf16.mxu0 0
  %133 = vmatpush2.bf16.msra.mxu0 0
  %134 = vmatprep.subr.bf16.mxu0 0
  %135 = vmatpush2.bf16.msra.mxu0 0
  %136 = vmatprep.subr.bf16.mxu0 0
  %137 = vmatpush2.bf16.msra.mxu0 0
  %138 = vmatprep.subr.bf16.mxu0 0
  %139 = vmatpush2.bf16.msra.mxu0 0
  %140 = vmatprep.subr.bf16.mxu0 0
  %141 = vmatpush2.bf16.msra.mxu0 0
  %142 = vmatprep.subr.bf16.mxu0 0
  %143 = vmatpush2.bf16.msra.mxu0 0
  %144 = vmatprep.subr.bf16.mxu0 0
  %145 = vmatpush2.bf16.msra.mxu0 0
  %146 = vmatprep.subr.bf16.mxu0 0
  %147 = vmatpush2.bf16.msra.mxu0 0
  %148 = vmatprep.mubr.bf16.mxu0 0
  %149 = vmatmul.mubr.bf16.gmra.mxu0 %v114
  %v150 = vpop.f32.mrf.mxu0
  %v151 = vadd.f32 %v99, %v150
  %v152 = vpop.f32.mrf.mxu0
  %v153 = vpop.f32.mrf.mxu0
  %v154 = vpop.f32.mrf.mxu0
  %155 = vdwg.mxu0
  %v157 = vlaneseq
  %v158 = vshrl.u32 %v157, 7
  %v159 = vsub.s32 0, %v158
  %v160 = vrot.slane %v94, %v159
  %v162 = vadd.f32 %v151, %v160
  %v163 = vpack.c.bf16 %v162, %v162
  %v164 = vxor.u32 %v163, 2147516416
  %v166 = vmul.bf16 %v164, 1069105081
  %v167 = vpow.bf16.pop %v166
  %v168 = vadd.bf16 %v167, 1065369472
  %v169 = vrcp.bf16.pop %v168
  %v170 = vmul.bf16 1065369472, %v169
  %v171 = vtanh.bf16.pop %v163
  %v172 = vunpack.c.l.bf16 %v170
  %174 = vrot.lane.b32.xlu0 %v96, 32
  %v175 = vpop.permute.xlu0 %174
  %v177 = vmul.f32 %v172, %v175
  %179 = vrot.lane.b32.xlu0 %v171, 64
  %v180 = vpop.permute.xlu0 %179
  %v182 = vmul.bf16 %v170, %v180
  %v183 = vunpack.c.l.bf16 %v182
  %185 = vrot.lane.b32.xlu0 %v183, 32
  %v186 = vpop.permute.xlu0 %185
  %v188 = vadd.f32 %v177, %v186
  %v189 = vpack.c.bf16 %v188, %v188
  %v190 = vtanh.bf16.pop %v189
  %192 = vrot.lane.b32.xlu0 %v190, 64
  %v193 = vpop.permute.xlu0 %192
  %v195 = vmul.bf16 %v170, %v193
  %s196 = scalar_lea.vmem %s28, 6
  %v197 = vld [vmem:[%s196] sm:$0x1]
  %v198 = vunpack.c.l.bf16 %v197
  %200 = vrot.lane.b32.xlu0 %v195, 32
  %v201 = vpop.permute.xlu0 %200
  %v203 = vsel %vm112, %v201, 0
  %205 = vmatprep.subr.bf16.mxu0 0
  %206 = vmatpush1.bf16.msra.mxu0 0
  %207 = vmatprep.subr.bf16.mxu0 0
  %208 = vmatpush1.bf16.msra.mxu0 0
  %209 = vmatprep.subr.bf16.mxu0 0
  %210 = vmatpush1.bf16.msra.mxu0 0
  %211 = vmatprep.subr.bf16.mxu0 0
  %212 = vmatpush1.bf16.msra.mxu0 0
  %213 = vmatprep.subr.bf16.mxu0 0
  %214 = vmatpush1.bf16.msra.mxu0 0
  %215 = vmatprep.subr.bf16.mxu0 0
  %216 = vmatpush1.bf16.msra.mxu0 0
  %217 = vmatprep.subr.bf16.mxu0 0
  %218 = vmatpush1.bf16.msra.mxu0 %v109
  %219 = vmatprep.subr.bf16.mxu0 0
  %220 = vmatpush1.bf16.msra.mxu0 %v108
  %221 = vmatprep.subr.bf16.mxu0 0
  %222 = vmatpush2.bf16.msra.mxu0 0
  %223 = vmatprep.subr.bf16.mxu0 0
  %224 = vmatpush2.bf16.msra.mxu0 0
  %225 = vmatprep.subr.bf16.mxu0 0
  %226 = vmatpush2.bf16.msra.mxu0 0
  %227 = vmatprep.subr.bf16.mxu0 0
  %228 = vmatpush2.bf16.msra.mxu0 0
  %229 = vmatprep.subr.bf16.mxu0 0
  %230 = vmatpush2.bf16.msra.mxu0 0
  %231 = vmatprep.subr.bf16.mxu0 0
  %232 = vmatpush2.bf16.msra.mxu0 0
  %233 = vmatprep.subr.bf16.mxu0 0
  %234 = vmatpush2.bf16.msra.mxu0 0
  %235 = vmatprep.subr.bf16.mxu0 0
  %236 = vmatpush2.bf16.msra.mxu0 0
  %237 = vmatprep.mubr.bf16.mxu0 0
  %238 = vmatmul.mubr.bf16.gmra.mxu0 %v203
  %v239 = vpop.f32.mrf.mxu0
  %v240 = vadd.f32 %v198, %v239
  %v241 = vpop.f32.mrf.mxu0
  %v242 = vpop.f32.mrf.mxu0
  %v243 = vpop.f32.mrf.mxu0
  %244 = vdwg.mxu0
  %v245 = vadd.f32 %v240, %v160
  %v246 = vpack.c.bf16 %v245, %v245
  %v247 = vxor.u32 %v246, 2147516416
  %v249 = vmul.bf16 %v247, 1069105081
  %v250 = vpow.bf16.pop %v249
  %v251 = vadd.bf16 %v250, 1065369472
  %v252 = vrcp.bf16.pop %v251
  %v253 = vmul.bf16 1065369472, %v252
  %v254 = vtanh.bf16.pop %v246
  %v255 = vunpack.c.l.bf16 %v253
  %v256 = vmul.f32 %v255, %v188
  %258 = vrot.lane.b32.xlu0 %v254, 64
  %v259 = vpop.permute.xlu0 %258
  %v261 = vmul.bf16 %v253, %v259
  %v262 = vunpack.c.l.bf16 %v261
  %264 = vrot.lane.b32.xlu0 %v262, 32
  %v265 = vpop.permute.xlu0 %264
  %v267 = vadd.f32 %v256, %v265
  %v268 = vpack.c.bf16 %v267, %v267
  %v269 = vtanh.bf16.pop %v268
  %271 = vrot.lane.b32.xlu0 %v269, 64
  %v272 = vpop.permute.xlu0 %271
  %v274 = vmul.bf16 %v253, %v272
  %s275 = scalar_lea.vmem %s28, 5
  %v276 = vld [vmem:[%s275] sm:$0x1]
  %v277 = vunpack.c.l.bf16 %v276
  %279 = vrot.lane.b32.xlu0 %v274, 32
  %v280 = vpop.permute.xlu0 %279
  %v282 = vsel %vm112, %v280, 0
  %284 = vmatprep.subr.bf16.mxu0 0
  %285 = vmatpush1.bf16.msra.mxu0 0
  %286 = vmatprep.subr.bf16.mxu0 0
  %287 = vmatpush1.bf16.msra.mxu0 0
  %288 = vmatprep.subr.bf16.mxu0 0
  %289 = vmatpush1.bf16.msra.mxu0 0
  %290 = vmatprep.subr.bf16.mxu0 0
  %291 = vmatpush1.bf16.msra.mxu0 0
  %292 = vmatprep.subr.bf16.mxu0 0
  %293 = vmatpush1.bf16.msra.mxu0 0
  %294 = vmatprep.subr.bf16.mxu0 0
  %295 = vmatpush1.bf16.msra.mxu0 0
  %296 = vmatprep.subr.bf16.mxu0 0
  %297 = vmatpush1.bf16.msra.mxu0 %v109
  %298 = vmatprep.subr.bf16.mxu0 0
  %299 = vmatpush1.bf16.msra.mxu0 %v108
  %300 = vmatprep.subr.bf16.mxu0 0
  %301 = vmatpush2.bf16.msra.mxu0 0
  %302 = vmatprep.subr.bf16.mxu0 0
  %303 = vmatpush2.bf16.msra.mxu0 0
  %304 = vmatprep.subr.bf16.mxu0 0
  %305 = vmatpush2.bf16.msra.mxu0 0
  %306 = vmatprep.subr.bf16.mxu0 0
  %307 = vmatpush2.bf16.msra.mxu0 0
  %308 = vmatprep.subr.bf16.mxu0 0
  %309 = vmatpush2.bf16.msra.mxu0 0
  %310 = vmatprep.subr.bf16.mxu0 0
  %311 = vmatpush2.bf16.msra.mxu0 0
  %312 = vmatprep.subr.bf16.mxu0 0
  %313 = vmatpush2.bf16.msra.mxu0 0
  %314 = vmatprep.subr.bf16.mxu0 0
  %315 = vmatpush2.bf16.msra.mxu0 0
  %316 = vmatprep.mubr.bf16.mxu0 0
  %317 = vmatmul.mubr.bf16.gmra.mxu0 %v282
  %v318 = vpop.f32.mrf.mxu0
  %v319 = vadd.f32 %v277, %v318
  %v320 = vpop.f32.mrf.mxu0
  %v321 = vpop.f32.mrf.mxu0
  %v322 = vpop.f32.mrf.mxu0
  %323 = vdwg.mxu0
  %v324 = vadd.f32 %v319, %v160
  %v325 = vpack.c.bf16 %v324, %v324
  %v326 = vxor.u32 %v325, 2147516416
  %v328 = vmul.bf16 %v326, 1069105081
  %v329 = vpow.bf16.pop %v328
  %v330 = vadd.bf16 %v329, 1065369472
  %v331 = vrcp.bf16.pop %v330
  %v332 = vmul.bf16 1065369472, %v331
  %v333 = vtanh.bf16.pop %v325
  %v334 = vunpack.c.l.bf16 %v332
  %v335 = vmul.f32 %v334, %v267
  %337 = vrot.lane.b32.xlu0 %v333, 64
  %v338 = vpop.permute.xlu0 %337
  %v340 = vmul.bf16 %v332, %v338
  %v341 = vunpack.c.l.bf16 %v340
  %343 = vrot.lane.b32.xlu0 %v341, 32
  %v344 = vpop.permute.xlu0 %343
  %v346 = vadd.f32 %v335, %v344
  %v347 = vpack.c.bf16 %v346, %v346
  %v348 = vtanh.bf16.pop %v347
  %350 = vrot.lane.b32.xlu0 %v348, 64
  %v351 = vpop.permute.xlu0 %350
  %v353 = vmul.bf16 %v332, %v351
  %s354 = scalar_lea.vmem %s28, 4
  %v355 = vld [vmem:[%s354] sm:$0x1]
  %v356 = vunpack.c.l.bf16 %v355
  %358 = vrot.lane.b32.xlu0 %v353, 32
  %v359 = vpop.permute.xlu0 %358
  %v361 = vsel %vm112, %v359, 0
  %363 = vmatprep.subr.bf16.mxu0 0
  %364 = vmatpush1.bf16.msra.mxu0 0
  %365 = vmatprep.subr.bf16.mxu0 0
  %366 = vmatpush1.bf16.msra.mxu0 0
  %367 = vmatprep.subr.bf16.mxu0 0
  %368 = vmatpush1.bf16.msra.mxu0 0
  %369 = vmatprep.subr.bf16.mxu0 0
  %370 = vmatpush1.bf16.msra.mxu0 0
  %371 = vmatprep.subr.bf16.mxu0 0
  %372 = vmatpush1.bf16.msra.mxu0 0
  %373 = vmatprep.subr.bf16.mxu0 0
  %374 = vmatpush1.bf16.msra.mxu0 0
  %375 = vmatprep.subr.bf16.mxu0 0
  %376 = vmatpush1.bf16.msra.mxu0 %v109
  %377 = vmatprep.subr.bf16.mxu0 0
  %378 = vmatpush1.bf16.msra.mxu0 %v108
  %379 = vmatprep.subr.bf16.mxu0 0
  %380 = vmatpush2.bf16.msra.mxu0 0
  %381 = vmatprep.subr.bf16.mxu0 0
  %382 = vmatpush2.bf16.msra.mxu0 0
  %383 = vmatprep.subr.bf16.mxu0 0
  %384 = vmatpush2.bf16.msra.mxu0 0
  %385 = vmatprep.subr.bf16.mxu0 0
  %386 = vmatpush2.bf16.msra.mxu0 0
  %387 = vmatprep.subr.bf16.mxu0 0
  %388 = vmatpush2.bf16.msra.mxu0 0
  %389 = vmatprep.subr.bf16.mxu0 0
  %390 = vmatpush2.bf16.msra.mxu0 0
  %391 = vmatprep.subr.bf16.mxu0 0
  %392 = vmatpush2.bf16.msra.mxu0 0
  %393 = vmatprep.subr.bf16.mxu0 0
  %394 = vmatpush2.bf16.msra.mxu0 0
  %395 = vmatprep.mubr.bf16.mxu0 0
  %396 = vmatmul.mubr.bf16.gmra.mxu0 %v361
  %v397 = vpop.f32.mrf.mxu0
  %v398 = vadd.f32 %v356, %v397
  %v399 = vpop.f32.mrf.mxu0
  %v400 = vpop.f32.mrf.mxu0
  %v401 = vpop.f32.mrf.mxu0
  %402 = vdwg.mxu0
  %v403 = vadd.f32 %v398, %v160
  %v404 = vpack.c.bf16 %v403, %v403
  %v405 = vxor.u32 %v404, 2147516416
  %v407 = vmul.bf16 %v405, 1069105081
  %v408 = vpow.bf16.pop %v407
  %v409 = vadd.bf16 %v408, 1065369472
  %v410 = vrcp.bf16.pop %v409
  %v411 = vmul.bf16 1065369472, %v410
  %v412 = vtanh.bf16.pop %v404
  %v413 = vunpack.c.l.bf16 %v411
  %v414 = vmul.f32 %v413, %v346
  %416 = vrot.lane.b32.xlu0 %v412, 64
  %v417 = vpop.permute.xlu0 %416
  %v419 = vmul.bf16 %v411, %v417
  %v420 = vunpack.c.l.bf16 %v419
  %422 = vrot.lane.b32.xlu0 %v420, 32
  %v423 = vpop.permute.xlu0 %422
  %v425 = vadd.f32 %v414, %v423
  %v426 = vpack.c.bf16 %v425, %v425
  %v427 = vtanh.bf16.pop %v426
  %429 = vrot.lane.b32.xlu0 %v427, 64
  %v430 = vpop.permute.xlu0 %429
  %v432 = vmul.bf16 %v411, %v430
  %s433 = scalar_lea.vmem %s28, 3
  %v434 = vld [vmem:[%s433] sm:$0x1]
  %v435 = vunpack.c.l.bf16 %v434
  %437 = vrot.lane.b32.xlu0 %v432, 32
  %v438 = vpop.permute.xlu0 %437
  %v440 = vsel %vm112, %v438, 0
  %442 = vmatprep.subr.bf16.mxu0 0
  %443 = vmatpush1.bf16.msra.mxu0 0
  %444 = vmatprep.subr.bf16.mxu0 0
  %445 = vmatpush1.bf16.msra.mxu0 0
  %446 = vmatprep.subr.bf16.mxu0 0
  %447 = vmatpush1.bf16.msra.mxu0 0
  %448 = vmatprep.subr.bf16.mxu0 0
  %449 = vmatpush1.bf16.msra.mxu0 0
  %450 = vmatprep.subr.bf16.mxu0 0
  %451 = vmatpush1.bf16.msra.mxu0 0
  %452 = vmatprep.subr.bf16.mxu0 0
  %453 = vmatpush1.bf16.msra.mxu0 0
  %454 = vmatprep.subr.bf16.mxu0 0
  %455 = vmatpush1.bf16.msra.mxu0 %v109
  %456 = vmatprep.subr.bf16.mxu0 0
  %457 = vmatpush1.bf16.msra.mxu0 %v108
  %458 = vmatprep.subr.bf16.mxu0 0
  %459 = vmatpush2.bf16.msra.mxu0 0
  %460 = vmatprep.subr.bf16.mxu0 0
  %461 = vmatpush2.bf16.msra.mxu0 0
  %462 = vmatprep.subr.bf16.mxu0 0
  %463 = vmatpush2.bf16.msra.mxu0 0
  %464 = vmatprep.subr.bf16.mxu0 0
  %465 = vmatpush2.bf16.msra.mxu0 0
  %466 = vmatprep.subr.bf16.mxu0 0
  %467 = vmatpush2.bf16.msra.mxu0 0
  %468 = vmatprep.subr.bf16.mxu0 0
  %469 = vmatpush2.bf16.msra.mxu0 0
  %470 = vmatprep.subr.bf16.mxu0 0
  %471 = vmatpush2.bf16.msra.mxu0 0
  %472 = vmatprep.subr.bf16.mxu0 0
  %473 = vmatpush2.bf16.msra.mxu0 0
  %474 = vmatprep.mubr.bf16.mxu0 0
  %475 = vmatmul.mubr.bf16.gmra.mxu0 %v440
  %v476 = vpop.f32.mrf.mxu0
  %v477 = vadd.f32 %v435, %v476
  %v478 = vpop.f32.mrf.mxu0
  %v479 = vpop.f32.mrf.mxu0
  %v480 = vpop.f32.mrf.mxu0
  %481 = vdwg.mxu0
  %v482 = vadd.f32 %v477, %v160
  %v483 = vpack.c.bf16 %v482, %v482
  %v484 = vxor.u32 %v483, 2147516416
  %v486 = vmul.bf16 %v484, 1069105081
  %v487 = vpow.bf16.pop %v486
  %v488 = vadd.bf16 %v487, 1065369472
  %v489 = vrcp.bf16.pop %v488
  %v490 = vmul.bf16 1065369472, %v489
  %v491 = vtanh.bf16.pop %v483
  %v492 = vunpack.c.l.bf16 %v490
  %v493 = vmul.f32 %v492, %v425
  %495 = vrot.lane.b32.xlu0 %v491, 64
  %v496 = vpop.permute.xlu0 %495
  %v498 = vmul.bf16 %v490, %v496
  %v499 = vunpack.c.l.bf16 %v498
  %501 = vrot.lane.b32.xlu0 %v499, 32
  %v502 = vpop.permute.xlu0 %501
  %v504 = vadd.f32 %v493, %v502
  %v505 = vpack.c.bf16 %v504, %v504
  %v506 = vtanh.bf16.pop %v505
  %508 = vrot.lane.b32.xlu0 %v506, 64
  %v509 = vpop.permute.xlu0 %508
  %v511 = vmul.bf16 %v490, %v509
  %s512 = scalar_lea.vmem %s28, 2
  %v513 = vld [vmem:[%s512] sm:$0x1]
  %v514 = vunpack.c.l.bf16 %v513
  %516 = vrot.lane.b32.xlu0 %v511, 32
  %v517 = vpop.permute.xlu0 %516
  %v519 = vsel %vm112, %v517, 0
  %521 = vmatprep.subr.bf16.mxu0 0
  %522 = vmatpush1.bf16.msra.mxu0 0
  %523 = vmatprep.subr.bf16.mxu0 0
  %524 = vmatpush1.bf16.msra.mxu0 0
  %525 = vmatprep.subr.bf16.mxu0 0
  %526 = vmatpush1.bf16.msra.mxu0 0
  %527 = vmatprep.subr.bf16.mxu0 0
  %528 = vmatpush1.bf16.msra.mxu0 0
  %529 = vmatprep.subr.bf16.mxu0 0
  %530 = vmatpush1.bf16.msra.mxu0 0
  %531 = vmatprep.subr.bf16.mxu0 0
  %532 = vmatpush1.bf16.msra.mxu0 0
  %533 = vmatprep.subr.bf16.mxu0 0
  %534 = vmatpush1.bf16.msra.mxu0 %v109
  %535 = vmatprep.subr.bf16.mxu0 0
  %536 = vmatpush1.bf16.msra.mxu0 %v108
  %537 = vmatprep.subr.bf16.mxu0 0
  %538 = vmatpush2.bf16.msra.mxu0 0
  %539 = vmatprep.subr.bf16.mxu0 0
  %540 = vmatpush2.bf16.msra.mxu0 0
  %541 = vmatprep.subr.bf16.mxu0 0
  %542 = vmatpush2.bf16.msra.mxu0 0
  %543 = vmatprep.subr.bf16.mxu0 0
  %544 = vmatpush2.bf16.msra.mxu0 0
  %545 = vmatprep.subr.bf16.mxu0 0
  %546 = vmatpush2.bf16.msra.mxu0 0
  %547 = vmatprep.subr.bf16.mxu0 0
  %548 = vmatpush2.bf16.msra.mxu0 0
  %549 = vmatprep.subr.bf16.mxu0 0
  %550 = vmatpush2.bf16.msra.mxu0 0
  %551 = vmatprep.subr.bf16.mxu0 0
  %552 = vmatpush2.bf16.msra.mxu0 0
  %553 = vmatprep.mubr.bf16.mxu0 0
  %554 = vmatmul.mubr.bf16.gmra.mxu0 %v519
  %v555 = vpop.f32.mrf.mxu0
  %v556 = vadd.f32 %v514, %v555
  %v557 = vpop.f32.mrf.mxu0
  %v558 = vpop.f32.mrf.mxu0
  %v559 = vpop.f32.mrf.mxu0
  %560 = vdwg.mxu0
  %v561 = vadd.f32 %v556, %v160
  %v562 = vpack.c.bf16 %v561, %v561
  %v563 = vxor.u32 %v562, 2147516416
  %v565 = vmul.bf16 %v563, 1069105081
  %v566 = vpow.bf16.pop %v565
  %v567 = vadd.bf16 %v566, 1065369472
  %v568 = vrcp.bf16.pop %v567
  %v569 = vmul.bf16 1065369472, %v568
  %v570 = vtanh.bf16.pop %v562
  %v571 = vunpack.c.l.bf16 %v569
  %v572 = vmul.f32 %v571, %v504
  %574 = vrot.lane.b32.xlu0 %v570, 64
  %v575 = vpop.permute.xlu0 %574
  %v577 = vmul.bf16 %v569, %v575
  %v578 = vunpack.c.l.bf16 %v577
  %580 = vrot.lane.b32.xlu0 %v578, 32
  %v581 = vpop.permute.xlu0 %580
  %v583 = vadd.f32 %v572, %v581
  %v584 = vpack.c.bf16 %v583, %v583
  %v585 = vtanh.bf16.pop %v584
  %587 = vrot.lane.b32.xlu0 %v585, 64
  %v588 = vpop.permute.xlu0 %587
  %v590 = vmul.bf16 %v569, %v588
  %s591 = scalar_lea.vmem %s28, 1
  %v592 = vld [vmem:[%s591] sm:$0x1]
  %v593 = vunpack.c.l.bf16 %v592
  %595 = vrot.lane.b32.xlu0 %v590, 32
  %v596 = vpop.permute.xlu0 %595
  %v598 = vsel %vm112, %v596, 0
  %600 = vmatprep.subr.bf16.mxu0 0
  %601 = vmatpush1.bf16.msra.mxu0 0
  %602 = vmatprep.subr.bf16.mxu0 0
  %603 = vmatpush1.bf16.msra.mxu0 0
  %604 = vmatprep.subr.bf16.mxu0 0
  %605 = vmatpush1.bf16.msra.mxu0 0
  %606 = vmatprep.subr.bf16.mxu0 0
  %607 = vmatpush1.bf16.msra.mxu0 0
  %608 = vmatprep.subr.bf16.mxu0 0
  %609 = vmatpush1.bf16.msra.mxu0 0
  %610 = vmatprep.subr.bf16.mxu0 0
  %611 = vmatpush1.bf16.msra.mxu0 0
  %612 = vmatprep.subr.bf16.mxu0 0
  %613 = vmatpush1.bf16.msra.mxu0 %v109
  %614 = vmatprep.subr.bf16.mxu0 0
  %615 = vmatpush1.bf16.msra.mxu0 %v108
  %616 = vmatprep.subr.bf16.mxu0 0
  %617 = vmatpush2.bf16.msra.mxu0 0
  %618 = vmatprep.subr.bf16.mxu0 0
  %619 = vmatpush2.bf16.msra.mxu0 0
  %620 = vmatprep.subr.bf16.mxu0 0
  %621 = vmatpush2.bf16.msra.mxu0 0
  %622 = vmatprep.subr.bf16.mxu0 0
  %623 = vmatpush2.bf16.msra.mxu0 0
  %624 = vmatprep.subr.bf16.mxu0 0
  %625 = vmatpush2.bf16.msra.mxu0 0
  %626 = vmatprep.subr.bf16.mxu0 0
  %627 = vmatpush2.bf16.msra.mxu0 0
  %628 = vmatprep.subr.bf16.mxu0 0
  %629 = vmatpush2.bf16.msra.mxu0 0
  %630 = vmatprep.subr.bf16.mxu0 0
  %631 = vmatpush2.bf16.msra.mxu0 0
  %632 = vmatprep.mubr.bf16.mxu0 0
  %633 = vmatmul.mubr.bf16.gmra.mxu0 %v598
  %v634 = vpop.f32.mrf.mxu0
  %v635 = vadd.f32 %v593, %v634
  %v636 = vpop.f32.mrf.mxu0
  %v637 = vpop.f32.mrf.mxu0
  %v638 = vpop.f32.mrf.mxu0
  %639 = vdwg.mxu0
  %v640 = vadd.f32 %v635, %v160
  %v641 = vpack.c.bf16 %v640, %v640
  %v642 = vxor.u32 %v641, 2147516416
  %v644 = vmul.bf16 %v642, 1069105081
  %v645 = vpow.bf16.pop %v644
  %v646 = vadd.bf16 %v645, 1065369472
  %v647 = vrcp.bf16.pop %v646
  %v648 = vmul.bf16 1065369472, %v647
  %v649 = vtanh.bf16.pop %v641
  %v650 = vunpack.c.l.bf16 %v648
  %v651 = vmul.f32 %v650, %v583
  %653 = vrot.lane.b32.xlu0 %v649, 64
  %v654 = vpop.permute.xlu0 %653
  %v656 = vmul.bf16 %v648, %v654
  %v657 = vunpack.c.l.bf16 %v656
  %659 = vrot.lane.b32.xlu0 %v657, 32
  %v660 = vpop.permute.xlu0 %659
  %v662 = vadd.f32 %v651, %v660
  %v663 = vpack.c.bf16 %v662, %v662
  %v664 = vtanh.bf16.pop %v663
  %666 = vrot.lane.b32.xlu0 %v664, 64
  %v667 = vpop.permute.xlu0 %666
  %v669 = vmul.bf16 %v648, %v667
  %v670 = vld [vmem:[%s28] sm:$0x1]
  %v671 = vunpack.c.l.bf16 %v670
  %673 = vrot.lane.b32.xlu0 %v669, 32
  %v674 = vpop.permute.xlu0 %673
  %v676 = vsel %vm112, %v674, 0
  %678 = vmatprep.subr.bf16.mxu0 0
  %679 = vmatpush1.bf16.msra.mxu0 0
  %680 = vmatprep.subr.bf16.mxu0 0
  %681 = vmatpush1.bf16.msra.mxu0 0
  %682 = vmatprep.subr.bf16.mxu0 0
  %683 = vmatpush1.bf16.msra.mxu0 0
  %684 = vmatprep.subr.bf16.mxu0 0
  %685 = vmatpush1.bf16.msra.mxu0 0
  %686 = vmatprep.subr.bf16.mxu0 0
  %687 = vmatpush1.bf16.msra.mxu0 0
  %688 = vmatprep.subr.bf16.mxu0 0
  %689 = vmatpush1.bf16.msra.mxu0 0
  %690 = vmatprep.subr.bf16.mxu0 0
  %691 = vmatpush1.bf16.msra.mxu0 %v109
  %692 = vmatprep.subr.bf16.mxu0 0
  %693 = vmatpush1.bf16.msra.mxu0 %v108
  %694 = vmatprep.subr.bf16.mxu0 0
  %695 = vmatpush2.bf16.msra.mxu0 0
  %696 = vmatprep.subr.bf16.mxu0 0
  %697 = vmatpush2.bf16.msra.mxu0 0
  %698 = vmatprep.subr.bf16.mxu0 0
  %699 = vmatpush2.bf16.msra.mxu0 0
  %700 = vmatprep.subr.bf16.mxu0 0
  %701 = vmatpush2.bf16.msra.mxu0 0
  %702 = vmatprep.subr.bf16.mxu0 0
  %703 = vmatpush2.bf16.msra.mxu0 0
  %704 = vmatprep.subr.bf16.mxu0 0
  %705 = vmatpush2.bf16.msra.mxu0 0
  %706 = vmatprep.subr.bf16.mxu0 0
  %707 = vmatpush2.bf16.msra.mxu0 0
  %708 = vmatprep.subr.bf16.mxu0 0
  %709 = vmatpush2.bf16.msra.mxu0 0
  %710 = vmatprep.mubr.bf16.mxu0 0
  %711 = vmatmul.mubr.bf16.gmra.mxu0 %v676
  %v712 = vpop.f32.mrf.mxu0
  %v713 = vadd.f32 %v671, %v712
  %v714 = vpop.f32.mrf.mxu0
  %v715 = vpop.f32.mrf.mxu0
  %v716 = vpop.f32.mrf.mxu0
  %717 = vdwg.mxu0
  %v718 = vadd.f32 %v713, %v160
  %v719 = vpack.c.bf16 %v718, %v718
  %v720 = vxor.u32 %v719, 2147516416
  %v722 = vmul.bf16 %v720, 1069105081
  %v723 = vpow.bf16.pop %v722
  %v724 = vadd.bf16 %v723, 1065369472
  %v725 = vrcp.bf16.pop %v724
  %v726 = vmul.bf16 1065369472, %v725
  %v727 = vtanh.bf16.pop %v719
  %v728 = vunpack.c.l.bf16 %v726
  %v729 = vmul.f32 %v728, %v662
  %731 = vrot.lane.b32.xlu0 %v727, 64
  %v732 = vpop.permute.xlu0 %731
  %v734 = vmul.bf16 %v726, %v732
  %v735 = vunpack.c.l.bf16 %v734
  %737 = vrot.lane.b32.xlu0 %v735, 32
  %v738 = vpop.permute.xlu0 %737
  %v740 = vadd.f32 %v729, %v738
  %v741 = vpack.c.bf16 %v740, %v740
  %v742 = vtanh.bf16.pop %v741
  %744 = vrot.lane.b32.xlu0 %v742, 64
  %v745 = vpop.permute.xlu0 %744
  %v747 = vmul.bf16 %v726, %v745
  %v750 = vunpack.c.l.s4 1966171168
  %v751 = vunpack.c.0.s8 %v750
  %v752 = vlaneseq
  %v753 = vshrl.u32 %v752, 7
  %v754 = vsub.s32 %v751, %v753
  %v755 = vrot.slane %v747, %v754
  %v757 = vunpack.c.l.s4 1966171168
  %v758 = vunpack.c.0.s8 %v757
  %v759 = vlaneseq
  %v760 = vshrl.u32 %v759, 7
  %v761 = vsub.s32 %v758, %v760
  %v762 = vrot.slane %v755, %v761
  %763 = vrot.lane.b32.xlu0 %v762, 32
  %v764 = vpop.permute.xlu0 %763
  %vm766 = vcmask 253952
  %767 = vst.msk [vmem:[#allocation3] sm:$0x1] %vm766, %v764
  %769 = vrot.lane.b32.xlu0 %v740, 96
  %v770 = vpop.permute.xlu0 %769
  %vm772 = vcmask 254976
  %773 = vst.msk [vmem:[#allocation4] sm:$0x3] %vm772, %v770
  %v774 = vunpack.c.l.bf16 %v747
  %776 = vrot.lane.b32.xlu0 %v774, 32
  %v777 = vpop.permute.xlu0 %776
  %779 = vst.msk [vmem:[%s3] sm:$0x3] %vm772, %v777
  // Predicated region
  $region48: #{my_model_forward.4} parent=0 // pred_check
    _
  $region49: #{my_model_forward.4} parent=0 // pred_check_branch
    %781 = sbr.rel (0) target = $region51
  $region50: #{my_model_forward.4} parent=0 // pred_region
    _
  $region51: #{my_model_forward.4} parent=0 // pred_fallthru
    _
  // Predicated region
  $region52: #{my_model_forward.4} parent=0 // pred_check
    _
  $region53: #{my_model_forward.4} parent=0 // pred_check_branch
    %783 = sbr.rel (0) target = $region55
  $region54: #{my_model_forward.4} parent=0 // pred_region
    _
  $region55: #{my_model_forward.4} parent=0 // pred_fallthru
    _
  %784 = vsyncmov [#allocation5]
  %s785 = vpop.sfrf %784
  %p786 = scmp.eq.s32.totalorder %s785, 0
  %p787 = pneg %p786
  %789 = shalt.err (%p787)

</llo_original>
